<compile_context>
chip_gen: v7x
topology: tpu7x:2x2x1
jax: 0.10.0
libtpu: 0.0.40
codegen_flags: <defaults>
</compile_context>

<pallas_src>
import jax
import jax.numpy as jnp
from jax.experimental import pallas as pl
from jax.experimental.pallas import tpu as pltpu


def mlp_kernel(x_ref, w1_ref, b1_ref, w2_ref, b2_ref, w3_ref, b3_ref, o_ref):
    x = x_ref[...].astype(jnp.float32)

    # fc1 + sigmoid   (exp and approx reciprocal both run on the EUP slot)
    h1 = jnp.dot(x, w1_ref[...], preferred_element_type=jnp.float32) + b1_ref[...]
    h1 = pl.reciprocal(1.0 + jnp.exp(-h1), approx=True)

    # fc2 + sigmoid
    h2 = jnp.dot(h1, w2_ref[...], preferred_element_type=jnp.float32) + b2_ref[...]
    h2 = pl.reciprocal(1.0 + jnp.exp(-h2), approx=True)

    # fc3 + softmax over the feature axis (PyTorch dim=1), max-subtracted
    logits = jnp.dot(h2, w3_ref[...], preferred_element_type=jnp.float32) + b3_ref[...]
    m = jnp.max(logits, axis=-1, keepdims=True)
    e = jnp.exp(logits - m)
    inv_denom = pl.reciprocal(jnp.sum(e, axis=-1, keepdims=True), approx=True)
    o_ref[...] = (e * inv_denom).astype(o_ref.dtype)


def mlp_forward(x, params, *, tm=512):
    """Run the fused MLP over a batch of rows, tiled TM rows per grid step."""
    w1, b1, w2, b2, w3, b3 = params
    n, in_dim = x.shape
    out_dim = w3.shape[1]

    # Batch tile: multiple of 8 (sublane constraint) unless it equals the full batch.
    tm = min(tm, n)
    if tm != n:
        tm = max(8, (tm // 8) * 8)

    grid = (pl.cdiv(n, tm),)

    # Weights / biases: constant index map -> loaded once, VMEM-resident across steps.
    resident = lambda shape: pl.BlockSpec(shape, lambda i: tuple(0 for _ in shape))

    return pl.pallas_call(
        mlp_kernel,
        out_shape=jax.ShapeDtypeStruct((n, out_dim), jnp.float32),
        grid=grid,
        in_specs=[
            pl.BlockSpec((tm, in_dim), lambda i: (i, 0)),
            resident(w1.shape), resident(b1.shape),
            resident(w2.shape), resident(b2.shape),
            resident(w3.shape), resident(b3.shape),
        ],
        out_specs=pl.BlockSpec((tm, out_dim), lambda i: (i, 0)),
        compiler_params=pltpu.CompilerParams(
            dimension_semantics=("parallel",),   # shard batch tiles across TCs (v7x)
        ),
    )(x, w1, b1, w2, b2, w3, b3)


def init_params(key):
    """Deterministic init mimicking torch.nn.Linear defaults (uniform(-1/sqrt(fan_in), +))."""
    dims = [(5, 4), (4, 4), (4, 3)]
    params = []
    for (fan_in, fan_out) in dims:
        key, kw, kb = jax.random.split(key, 3)
        bound = 1.0 / jnp.sqrt(fan_in)
        # stored as (in, out): equivalent to the transpose of PyTorch's (out, in) weight
        w = jax.random.uniform(kw, (fan_in, fan_out), jnp.float32, -bound, bound)
        b = jax.random.uniform(kb, (1, fan_out), jnp.float32, -bound, bound)
        params.extend([w, b])
    return tuple(params)


def mlp_reference(x, params):
    """Pure-JAX reference of the PyTorch forward pass."""
    w1, b1, w2, b2, w3, b3 = params
    h1 = jax.nn.sigmoid(x @ w1 + b1)
    h2 = jax.nn.sigmoid(h1 @ w2 + b2)
    return jax.nn.softmax(h2 @ w3 + b3, axis=1)


if __name__ == "__main__":
    key = jax.random.PRNGKey(0)
    key, kx = jax.random.split(key)

    batch = 1024                         # 2 grid steps of TM=512 (still only ~20 KiB of input)
    x = jax.random.normal(kx, (batch, 5), jnp.float32)
    params = init_params(key)

    out = jax.block_until_ready(mlp_forward(x, params, tm=512))

    expected = mlp_reference(x, params)
    assert out.shape == (batch, 3)
    # softmax rows sum to 1 (loose tolerance: approx EUP reciprocal)
    assert jnp.allclose(jnp.sum(out, axis=1), 1.0, atol=1e-2)
    assert jnp.allclose(out, expected, atol=1e-2, rtol=1e-2)

    print("KERNEL_OK")
</pallas_src>

<mosaic_0001>
module attributes {stable_mosaic.version = 11 : i64} {
  func.func @mlp_kernel(%arg0: i32, %arg1: memref<512x5xf32, #tpu.memory_space<vmem>>, %arg2: memref<5x4xf32, #tpu.memory_space<vmem>>, %arg3: memref<1x4xf32, #tpu.memory_space<vmem>>, %arg4: memref<4x4xf32, #tpu.memory_space<vmem>>, %arg5: memref<1x4xf32, #tpu.memory_space<vmem>>, %arg6: memref<4x3xf32, #tpu.memory_space<vmem>>, %arg7: memref<1x3xf32, #tpu.memory_space<vmem>>, %arg8: memref<512x3xf32, #tpu.memory_space<vmem>>) attributes {dimension_semantics = [#tpu.dimension_semantics<parallel>], iteration_bounds = array<i64: 2>, scalar_prefetch = 0 : i64, scratch_operands = 0 : i64, tpu.core_type = #tpu.core_type<tc>, window_params = [{transform_indices = @transform_0, window_bounds = array<i64: 512, 5>}, {pipeline_mode = #tpu.pipeline_mode<synchronous>, transform_indices = @transform_1, window_bounds = array<i64: 5, 4>}, {pipeline_mode = #tpu.pipeline_mode<synchronous>, transform_indices = @transform_2, window_bounds = array<i64: 1, 4>}, {pipeline_mode = #tpu.pipeline_mode<synchronous>, transform_indices = @transform_3, window_bounds = array<i64: 4, 4>}, {pipeline_mode = #tpu.pipeline_mode<synchronous>, transform_indices = @transform_4, window_bounds = array<i64: 1, 4>}, {pipeline_mode = #tpu.pipeline_mode<synchronous>, transform_indices = @transform_5, window_bounds = array<i64: 4, 3>}, {pipeline_mode = #tpu.pipeline_mode<synchronous>, transform_indices = @transform_6, window_bounds = array<i64: 1, 3>}, {transform_indices = @transform_7, window_bounds = array<i64: 512, 3>}]} {
    %c0 = arith.constant 0 : index
    %c0_0 = arith.constant 0 : index
    %0 = vector.load %arg1[%c0, %c0_0] : memref<512x5xf32, #tpu.memory_space<vmem>>, vector<512x5xf32>
    %c0_1 = arith.constant 0 : index
    %c0_2 = arith.constant 0 : index
    %1 = vector.load %arg2[%c0_1, %c0_2] : memref<5x4xf32, #tpu.memory_space<vmem>>, vector<5x4xf32>
    %cst = arith.constant dense<0.000000e+00> : vector<512x4xf32>
    %2 = tpu.matmul %0, %1, %cst {dimension_numbers = #tpu.dot_dimension_numbers<[1], [0], [0], [1], [0, 0, 1, 1], [], []>} : vector<512x5xf32>, vector<5x4xf32>, vector<512x4xf32> -> vector<512x4xf32>
    %c0_3 = arith.constant 0 : index
    %c0_4 = arith.constant 0 : index
    %3 = vector.load %arg3[%c0_3, %c0_4] : memref<1x4xf32, #tpu.memory_space<vmem>>, vector<1x4xf32>
    %4 = vector.broadcast %3 : vector<1x4xf32> to vector<512x4xf32>
    %5 = arith.addf %2, %4 : vector<512x4xf32>
    %cst_5 = arith.constant 0.000000e+00 : f32
    %6 = vector.broadcast %cst_5 : f32 to vector<512x4xf32>
    %7 = arith.subf %6, %5 : vector<512x4xf32>
    %8 = math.exp %7 : vector<512x4xf32>
    %cst_6 = arith.constant 1.000000e+00 : f32
    %9 = vector.broadcast %cst_6 : f32 to vector<512x4xf32>
    %10 = arith.addf %9, %8 : vector<512x4xf32>
    %11 = tpu.reciprocal %10 {approx = true} : vector<512x4xf32> -> vector<512x4xf32>
    %c0_7 = arith.constant 0 : index
    %c0_8 = arith.constant 0 : index
    %12 = vector.load %arg4[%c0_7, %c0_8] : memref<4x4xf32, #tpu.memory_space<vmem>>, vector<4x4xf32>
    %cst_9 = arith.constant dense<0.000000e+00> : vector<512x4xf32>
    %13 = tpu.matmul %11, %12, %cst_9 {dimension_numbers = #tpu.dot_dimension_numbers<[1], [0], [0], [1], [0, 0, 1, 1], [], []>} : vector<512x4xf32>, vector<4x4xf32>, vector<512x4xf32> -> vector<512x4xf32>
    %c0_10 = arith.constant 0 : index
    %c0_11 = arith.constant 0 : index
    %14 = vector.load %arg5[%c0_10, %c0_11] : memref<1x4xf32, #tpu.memory_space<vmem>>, vector<1x4xf32>
    %15 = vector.broadcast %14 : vector<1x4xf32> to vector<512x4xf32>
    %16 = arith.addf %13, %15 : vector<512x4xf32>
    %cst_12 = arith.constant 0.000000e+00 : f32
    %17 = vector.broadcast %cst_12 : f32 to vector<512x4xf32>
    %18 = arith.subf %17, %16 : vector<512x4xf32>
    %19 = math.exp %18 : vector<512x4xf32>
    %cst_13 = arith.constant 1.000000e+00 : f32
    %20 = vector.broadcast %cst_13 : f32 to vector<512x4xf32>
    %21 = arith.addf %20, %19 : vector<512x4xf32>
    %22 = tpu.reciprocal %21 {approx = true} : vector<512x4xf32> -> vector<512x4xf32>
    %c0_14 = arith.constant 0 : index
    %c0_15 = arith.constant 0 : index
    %23 = vector.load %arg6[%c0_14, %c0_15] : memref<4x3xf32, #tpu.memory_space<vmem>>, vector<4x3xf32>
    %cst_16 = arith.constant dense<0.000000e+00> : vector<512x3xf32>
    %24 = tpu.matmul %22, %23, %cst_16 {dimension_numbers = #tpu.dot_dimension_numbers<[1], [0], [0], [1], [0, 0, 1, 1], [], []>} : vector<512x4xf32>, vector<4x3xf32>, vector<512x3xf32> -> vector<512x3xf32>
    %c0_17 = arith.constant 0 : index
    %c0_18 = arith.constant 0 : index
    %25 = vector.load %arg7[%c0_17, %c0_18] : memref<1x3xf32, #tpu.memory_space<vmem>>, vector<1x3xf32>
    %26 = vector.broadcast %25 : vector<1x3xf32> to vector<512x3xf32>
    %27 = arith.addf %24, %26 : vector<512x3xf32>
    %cst_19 = arith.constant dense<0xFF800000> : vector<512xf32>
    %28 = vector.multi_reduction <maximumf>, %27, %cst_19 [1] : vector<512x3xf32> to vector<512xf32>
    %29 = vector.shape_cast %28 : vector<512xf32> to vector<512x1xf32>
    %30 = vector.broadcast %29 : vector<512x1xf32> to vector<512x3xf32>
    %31 = arith.subf %27, %30 : vector<512x3xf32>
    %32 = math.exp %31 : vector<512x3xf32>
    %cst_20 = arith.constant dense<0.000000e+00> : vector<512xf32>
    %33 = vector.multi_reduction <add>, %32, %cst_20 [1] : vector<512x3xf32> to vector<512xf32>
    %34 = vector.shape_cast %33 : vector<512xf32> to vector<512x1xf32>
    %35 = tpu.reciprocal %34 {approx = true} : vector<512x1xf32> -> vector<512x1xf32>
    %36 = vector.broadcast %35 : vector<512x1xf32> to vector<512x3xf32>
    %37 = arith.mulf %32, %36 : vector<512x3xf32>
    %c0_21 = arith.constant 0 : index
    %c0_22 = arith.constant 0 : index
    %38 = vector.load %arg8[%c0_21, %c0_22] : memref<512x3xf32, #tpu.memory_space<vmem>>, vector<512x3xf32>
    tpu.vector_store %arg8[%c0_21, %c0_22], %37 {strides = array<i32>} : memref<512x3xf32, #tpu.memory_space<vmem>>, vector<512x3xf32>,
    return
  }
  func.func @transform_0(%arg0: i32) -> (i32, i32) {
    %c0_i32 = arith.constant 0 : i32
    %c0_i32_0 = arith.constant 0 : i32
    return %arg0, %c0_i32 : i32, i32
  }
  func.func @transform_1(%arg0: i32) -> (i32, i32) {
    %c0_i32 = arith.constant 0 : i32
    %c0_i32_0 = arith.constant 0 : i32
    %c0_i32_1 = arith.constant 0 : i32
    return %c0_i32, %c0_i32_0 : i32, i32
  }
  func.func @transform_2(%arg0: i32) -> (i32, i32) {
    %c0_i32 = arith.constant 0 : i32
    %c0_i32_0 = arith.constant 0 : i32
    %c0_i32_1 = arith.constant 0 : i32
    return %c0_i32, %c0_i32_0 : i32, i32
  }
  func.func @transform_3(%arg0: i32) -> (i32, i32) {
    %c0_i32 = arith.constant 0 : i32
    %c0_i32_0 = arith.constant 0 : i32
    %c0_i32_1 = arith.constant 0 : i32
    return %c0_i32, %c0_i32_0 : i32, i32
  }
  func.func @transform_4(%arg0: i32) -> (i32, i32) {
    %c0_i32 = arith.constant 0 : i32
    %c0_i32_0 = arith.constant 0 : i32
    %c0_i32_1 = arith.constant 0 : i32
    return %c0_i32, %c0_i32_0 : i32, i32
  }
  func.func @transform_5(%arg0: i32) -> (i32, i32) {
    %c0_i32 = arith.constant 0 : i32
    %c0_i32_0 = arith.constant 0 : i32
    %c0_i32_1 = arith.constant 0 : i32
    return %c0_i32, %c0_i32_0 : i32, i32
  }
  func.func @transform_6(%arg0: i32) -> (i32, i32) {
    %c0_i32 = arith.constant 0 : i32
    %c0_i32_0 = arith.constant 0 : i32
    %c0_i32_1 = arith.constant 0 : i32
    return %c0_i32, %c0_i32_0 : i32, i32
  }
  func.func @transform_7(%arg0: i32) -> (i32, i32) {
    %c0_i32 = arith.constant 0 : i32
    %c0_i32_0 = arith.constant 0 : i32
    return %arg0, %c0_i32 : i32, i32
  }
}

</mosaic_0001>

<llo_original>
// kernel: tpu_custom_call.1
$region0: #{tpu_custom_call.1}
  #allocation0 [shape = 'u32[]', space=smem, size = 0x4, offset = 0x4, fixed_abs, tag = 'smem constant byte address 0x4 - core index']
  #allocation1 [shape = 'u32[144,128]{1,0:T(1,128)}', space=vmem, size = 0x12000, scoped, tag = 'internal scratch']
  %s0 = inlined_call_operand.vmem [shape: f32[1024,5], index: 0, kind: input, shape index: {}]
  %s1 = inlined_call_operand.vmem [shape: f32[5,4], index: 1, kind: input, shape index: {}]
  %s2 = inlined_call_operand.vmem [shape: f32[1,4], index: 2, kind: input, shape index: {}]
  %s3 = inlined_call_operand.vmem [shape: f32[4,4], index: 3, kind: input, shape index: {}]
  %s4 = inlined_call_operand.vmem [shape: f32[1,4], index: 4, kind: input, shape index: {}]
  %s5 = inlined_call_operand.vmem [shape: f32[4,3], index: 5, kind: input, shape index: {}]
  %s6 = inlined_call_operand.vmem [shape: f32[1,3], index: 6, kind: input, shape index: {}]
  %s7 = inlined_call_operand.vmem [shape: f32[1024,3], index: 7, kind: output, shape index: {}]
  %s8 = sld [smem:[#allocation0]]
  $region61: #{tpu_custom_call.1} parent=0
    _
  %s10 = ssub.s32 1, %s8
  %s11 = scalar_select 0, %s10, %s8
  loop: start=0, step=1, limit=4
  $region2: #{tpu_custom_call.1} parent=0 // loop_pre_header
    _
  $region3: #{tpu_custom_call.1} parent=0 // loop_header
    %s13 = sphi 0, %s17
    %p14 = scmp.ge.s32.totalorder %s13, 4
    %s23 = sphi 0, %s25
    %s26 = sphi 0, %s23
    %s27 = sphi 0, %s26
    %s43 = sphi 0, %s27
    %s47 = sphi 0, %s47
    %s49 = sphi 0, %s47
    %s50 = sphi 0, %s49
    %s64 = sphi 0, %s50
    %s68 = sphi 0, %s68
    %s70 = sphi 0, %s68
    %s71 = sphi 0, %s70
    %s85 = sphi 0, %s71
    %s89 = sphi 0, %s89
    %s91 = sphi 0, %s89
    %s92 = sphi 0, %s91
    %s106 = sphi 0, %s92
    %s110 = sphi 0, %s110
    %s112 = sphi 0, %s110
    %s113 = sphi 0, %s112
    %s127 = sphi 0, %s113
    %s131 = sphi 0, %s131
    %s133 = sphi 0, %s131
    %s134 = sphi 0, %s133
    %s148 = sphi 0, %s134
    %s152 = sphi 0, %s152
    %s154 = sphi 0, %s152
    %s155 = sphi 0, %s154
    %s169 = sphi 0, %s155
    %s175 = sphi 0, %s177
    %s178 = sphi 0, %s175
    %s179 = sphi 0, %s178
    %s195 = sphi 0, %s179
  $region4: #{tpu_custom_call.1} parent=0 // loop_header_branch
    %16 = sbr.rel (%p14) target = $region8
  $region5: #{tpu_custom_call.1} parent=0 // loop_body
    %s18 = ssub.s32 %s13, 1
    %s19 = ssub.s32 %s13, 2
    %s20 = sadd.s32 %s13, 1
    %s21 = ssub.s32 %s13, %s20
    %p22 = scmp.eq.s32.totalorder %s21, 0
    %s24 = sadd.s32 %s23, 1
    %s25 = scalar_select %p22, %s23, %s24
    %p28 = pneg %p22
    %p29 = scmp.eq.s32.totalorder %s13, 1
    %p30 = por %p28, %p29
    %p31 = scmp.ne.s32.totalorder %s23, %s26
    %p32 = scmp.eq.s32.totalorder %s13, 0
    %p33 = por %p31, %p32
    %p34 = scmp.ne.s32.totalorder %s23, %s26
    %p35 = scmp.eq.s32.totalorder %s18, 1
    %p36 = por %p34, %p35
    %p37 = scmp.ne.s32.totalorder %s26, %s27
    %p38 = scmp.eq.s32.totalorder %s18, 0
    %p39 = por %p37, %p38
    %p40 = scmp.ne.s32.totalorder %s26, %s27
    %p41 = scmp.eq.s32.totalorder %s19, 1
    %p42 = por %p40, %p41
    %p44 = scmp.ne.s32.totalorder %s27, %s43
    %p45 = scmp.eq.s32.totalorder %s19, 0
    %p46 = por %p44, %p45
    %s48 = sadd.s32 %s47, 1
    %p51 = scmp.eq.s32.totalorder %s13, 1
    %p52 = scmp.ne.s32.totalorder %s47, %s49
    %p53 = scmp.eq.s32.totalorder %s13, 0
    %p54 = por %p52, %p53
    %p55 = scmp.ne.s32.totalorder %s47, %s49
    %p56 = scmp.eq.s32.totalorder %s18, 1
    %p57 = por %p55, %p56
    %p58 = scmp.ne.s32.totalorder %s49, %s50
    %p59 = scmp.eq.s32.totalorder %s18, 0
    %p60 = por %p58, %p59
    %p61 = scmp.ne.s32.totalorder %s49, %s50
    %p62 = scmp.eq.s32.totalorder %s19, 1
    %p63 = por %p61, %p62
    %p65 = scmp.ne.s32.totalorder %s50, %s64
    %p66 = scmp.eq.s32.totalorder %s19, 0
    %p67 = por %p65, %p66
    %s69 = sadd.s32 %s68, 1
    %p72 = scmp.eq.s32.totalorder %s13, 1
    %p73 = scmp.ne.s32.totalorder %s68, %s70
    %p74 = scmp.eq.s32.totalorder %s13, 0
    %p75 = por %p73, %p74
    %p76 = scmp.ne.s32.totalorder %s68, %s70
    %p77 = scmp.eq.s32.totalorder %s18, 1
    %p78 = por %p76, %p77
    %p79 = scmp.ne.s32.totalorder %s70, %s71
    %p80 = scmp.eq.s32.totalorder %s18, 0
    %p81 = por %p79, %p80
    %p82 = scmp.ne.s32.totalorder %s70, %s71
    %p83 = scmp.eq.s32.totalorder %s19, 1
    %p84 = por %p82, %p83
    %p86 = scmp.ne.s32.totalorder %s71, %s85
    %p87 = scmp.eq.s32.totalorder %s19, 0
    %p88 = por %p86, %p87
    %s90 = sadd.s32 %s89, 1
    %p93 = scmp.eq.s32.totalorder %s13, 1
    %p94 = scmp.ne.s32.totalorder %s89, %s91
    %p95 = scmp.eq.s32.totalorder %s13, 0
    %p96 = por %p94, %p95
    %p97 = scmp.ne.s32.totalorder %s89, %s91
    %p98 = scmp.eq.s32.totalorder %s18, 1
    %p99 = por %p97, %p98
    %p100 = scmp.ne.s32.totalorder %s91, %s92
    %p101 = scmp.eq.s32.totalorder %s18, 0
    %p102 = por %p100, %p101
    %p103 = scmp.ne.s32.totalorder %s91, %s92
    %p104 = scmp.eq.s32.totalorder %s19, 1
    %p105 = por %p103, %p104
    %p107 = scmp.ne.s32.totalorder %s92, %s106
    %p108 = scmp.eq.s32.totalorder %s19, 0
    %p109 = por %p107, %p108
    %s111 = sadd.s32 %s110, 1
    %p114 = scmp.eq.s32.totalorder %s13, 1
    %p115 = scmp.ne.s32.totalorder %s110, %s112
    %p116 = scmp.eq.s32.totalorder %s13, 0
    %p117 = por %p115, %p116
    %p118 = scmp.ne.s32.totalorder %s110, %s112
    %p119 = scmp.eq.s32.totalorder %s18, 1
    %p120 = por %p118, %p119
    %p121 = scmp.ne.s32.totalorder %s112, %s113
    %p122 = scmp.eq.s32.totalorder %s18, 0
    %p123 = por %p121, %p122
    %p124 = scmp.ne.s32.totalorder %s112, %s113
    %p125 = scmp.eq.s32.totalorder %s19, 1
    %p126 = por %p124, %p125
    %p128 = scmp.ne.s32.totalorder %s113, %s127
    %p129 = scmp.eq.s32.totalorder %s19, 0
    %p130 = por %p128, %p129
    %s132 = sadd.s32 %s131, 1
    %p135 = scmp.eq.s32.totalorder %s13, 1
    %p136 = scmp.ne.s32.totalorder %s131, %s133
    %p137 = scmp.eq.s32.totalorder %s13, 0
    %p138 = por %p136, %p137
    %p139 = scmp.ne.s32.totalorder %s131, %s133
    %p140 = scmp.eq.s32.totalorder %s18, 1
    %p141 = por %p139, %p140
    %p142 = scmp.ne.s32.totalorder %s133, %s134
    %p143 = scmp.eq.s32.totalorder %s18, 0
    %p144 = por %p142, %p143
    %p145 = scmp.ne.s32.totalorder %s133, %s134
    %p146 = scmp.eq.s32.totalorder %s19, 1
    %p147 = por %p145, %p146
    %p149 = scmp.ne.s32.totalorder %s134, %s148
    %p150 = scmp.eq.s32.totalorder %s19, 0
    %p151 = por %p149, %p150
    %s153 = sadd.s32 %s152, 1
    %p156 = scmp.eq.s32.totalorder %s13, 1
    %p157 = scmp.ne.s32.totalorder %s152, %s154
    %p158 = scmp.eq.s32.totalorder %s13, 0
    %p159 = por %p157, %p158
    %p160 = scmp.ne.s32.totalorder %s152, %s154
    %p161 = scmp.eq.s32.totalorder %s18, 1
    %p162 = por %p160, %p161
    %p163 = scmp.ne.s32.totalorder %s154, %s155
    %p164 = scmp.eq.s32.totalorder %s18, 0
    %p165 = por %p163, %p164
    %p166 = scmp.ne.s32.totalorder %s154, %s155
    %p167 = scmp.eq.s32.totalorder %s19, 1
    %p168 = por %p166, %p167
    %p170 = scmp.ne.s32.totalorder %s155, %s169
    %p171 = scmp.eq.s32.totalorder %s19, 0
    %p172 = por %p170, %p171
    %s173 = ssub.s32 %s13, %s20
    %p174 = scmp.eq.s32.totalorder %s173, 0
    %s176 = sadd.s32 %s175, 1
    %s177 = scalar_select %p174, %s175, %s176
    %p180 = pneg %p174
    %p181 = scmp.eq.s32.totalorder %s13, 1
    %p182 = por %p180, %p181
    %p183 = scmp.ne.s32.totalorder %s175, %s178
    %p184 = scmp.eq.s32.totalorder %s13, 0
    %p185 = por %p183, %p184
    %p186 = scmp.ne.s32.totalorder %s175, %s178
    %p187 = scmp.eq.s32.totalorder %s18, 1
    %p188 = por %p186, %p187
    %p189 = scmp.ne.s32.totalorder %s178, %s179
    %p190 = scmp.eq.s32.totalorder %s18, 0
    %p191 = por %p189, %p190
    %p192 = scmp.ne.s32.totalorder %s178, %s179
    %p193 = scmp.eq.s32.totalorder %s19, 1
    %p194 = por %p192, %p193
    %p196 = scmp.ne.s32.totalorder %s179, %s195
    %p197 = scmp.eq.s32.totalorder %s19, 0
    %p198 = por %p196, %p197
    %p199 = scmp.le.s32.totalorder 1, %s13
    %p200 = scmp.lt.s32.totalorder %s13, 3
    %p201 = pnand %p199, %p200
    %p202 = pneg %p201
    // Predicated region
    $region9: #{tpu_custom_call.1} parent=5 // pred_check
      _
    $region10: #{tpu_custom_call.1} parent=5 // pred_check_branch
      %204 = sbr.rel (%p201) target = $region12
    $region11: #{tpu_custom_call.1} parent=5 // pred_region
      %s205 = ssub.s32 %s13, 1
      // Predicated region
      $region13: #{tpu_custom_call.1} parent=11 // pred_check
        %p206 = pneg %p60
      $region14: #{tpu_custom_call.1} parent=11 // pred_check_branch
        %208 = sbr.rel (%p206) target = $region16
      $region15: #{tpu_custom_call.1} parent=11 // pred_region
        _
      $region16: #{tpu_custom_call.1} parent=11 // pred_fallthru
        _
      // Predicated region
      $region17: #{tpu_custom_call.1} parent=11 // pred_check
        %p209 = pneg %p81
      $region18: #{tpu_custom_call.1} parent=11 // pred_check_branch
        %211 = sbr.rel (%p209) target = $region20
      $region19: #{tpu_custom_call.1} parent=11 // pred_region
        _
      $region20: #{tpu_custom_call.1} parent=11 // pred_fallthru
        _
      // Predicated region
      $region21: #{tpu_custom_call.1} parent=11 // pred_check
        %p212 = pneg %p102
      $region22: #{tpu_custom_call.1} parent=11 // pred_check_branch
        %214 = sbr.rel (%p212) target = $region24
      $region23: #{tpu_custom_call.1} parent=11 // pred_region
        _
      $region24: #{tpu_custom_call.1} parent=11 // pred_fallthru
        _
      // Predicated region
      $region25: #{tpu_custom_call.1} parent=11 // pred_check
        %p215 = pneg %p123
      $region26: #{tpu_custom_call.1} parent=11 // pred_check_branch
        %217 = sbr.rel (%p215) target = $region28
      $region27: #{tpu_custom_call.1} parent=11 // pred_region
        _
      $region28: #{tpu_custom_call.1} parent=11 // pred_fallthru
        _
      // Predicated region
      $region29: #{tpu_custom_call.1} parent=11 // pred_check
        %p218 = pneg %p144
      $region30: #{tpu_custom_call.1} parent=11 // pred_check_branch
        %220 = sbr.rel (%p218) target = $region32
      $region31: #{tpu_custom_call.1} parent=11 // pred_region
        _
      $region32: #{tpu_custom_call.1} parent=11 // pred_fallthru
        _
      // Predicated region
      $region33: #{tpu_custom_call.1} parent=11 // pred_check
        %p221 = pneg %p165
      $region34: #{tpu_custom_call.1} parent=11 // pred_check_branch
        %223 = sbr.rel (%p221) target = $region36
      $region35: #{tpu_custom_call.1} parent=11 // pred_region
        _
      $region36: #{tpu_custom_call.1} parent=11 // pred_fallthru
        _
    $region12: #{tpu_custom_call.1} parent=5 // pred_fallthru
      _
    %p224 = scmp.lt.s32.totalorder %s13, 2
    // Predicated region
    $region37: #{tpu_custom_call.1} parent=5 // pred_check
      %p225 = pneg %p224
    $region38: #{tpu_custom_call.1} parent=5 // pred_check_branch
      %227 = sbr.rel (%p225) target = $region40
    $region39: #{tpu_custom_call.1} parent=5 // pred_region
      // Predicated region
      $region41: #{tpu_custom_call.1} parent=39 // pred_check
        %p228 = pneg %p33
      $region42: #{tpu_custom_call.1} parent=39 // pred_check_branch
        %230 = sbr.rel (%p228) target = $region44
      $region43: #{tpu_custom_call.1} parent=39 // pred_region
        %s231 = smul.u32 64, %s13
        %p232 = scmp.lt.s32.totalorder %s231, 127
        %s233 = scalar_select %p232, %s231, 127
        %s234 = smul.addr %s233, 8
        %s235 = scalar_lea.vmem %s0, %s234
        %s236 = smul.u32 64, %s13
      $region44: #{tpu_custom_call.1} parent=39 // pred_fallthru
        _
    $region40: #{tpu_custom_call.1} parent=5 // pred_fallthru
      _
    %p237 = scmp.le.s32.totalorder 1, %s13
    %p238 = scmp.lt.s32.totalorder %s13, 3
    %p239 = pnand %p237, %p238
    %p240 = pneg %p239
    // Predicated region
    $region45: #{tpu_custom_call.1} parent=5 // pred_check
      _
    $region46: #{tpu_custom_call.1} parent=5 // pred_check_branch
      %242 = sbr.rel (%p239) target = $region48
    $region47: #{tpu_custom_call.1} parent=5 // pred_region
      %s243 = ssub.s32 %s13, 1
      %s244 = smul.u32 64, %s18
      %p245 = scmp.lt.s32.totalorder %s244, 127
      %s246 = scalar_select %p245, %s244, 127
      %s247 = smul.addr %s246, 8
      %s248 = scalar_lea.vmem %s0, %s247
      %p249 = pneg %p39
      %p250 = pneg %p36
      %p251 = pneg %p60
      %p252 = pneg %p57
      %p253 = pneg %p81
      %p254 = pneg %p78
      %p255 = pneg %p102
      %p256 = pneg %p99
      %p257 = pneg %p123
      %p258 = pneg %p120
      %p259 = pneg %p144
      %p260 = pneg %p141
      %p261 = pneg %p165
      %p262 = pneg %p162
      %p263 = pneg %p191
      %p264 = pneg %p188
      %s265 = smul.u32 64, %s18
      %p266 = scmp.lt.s32.totalorder %s265, 127
      %s267 = scalar_select %p266, %s265, 127
      %s268 = smul.addr %s267, 8
      %s269 = scalar_lea.vmem %s7, %s268
      %s270 = smul.u32 64, %s18
      %p271 = scmp.lt.s32.totalorder %s270, 127
      %s272 = scalar_select %p271, %s270, 127
      %s273 = smul.addr %s272, 8
      %s274 = scalar_lea.vmem %s0, %s273
      %s275 = smul.u32 64, %s18
      %s276 = smul.u32 64, %s18
      %p277 = scmp.lt.s32.totalorder %s276, 127
      %s278 = scalar_select %p277, %s276, 127
      %s279 = smul.addr %s278, 8
      %s280 = scalar_lea.vmem %s7, %s279
      %s281 = smul.u32 64, %s18
      %v282 = vld [vmem:[%s274] sm:$0xff]
      %v283 = vld [vmem:[%s274 + $0x8] sm:$0xff]
      %v284 = vld [vmem:[%s274 + $0x10] sm:$0xff]
      %v285 = vld [vmem:[%s274 + $0x18] sm:$0xff]
      %v286 = vld [vmem:[%s274 + $0x20] sm:$0xff]
      %v287 = vld [vmem:[%s274 + $0x28] sm:$0xff]
      %v288 = vld [vmem:[%s274 + $0x30] sm:$0xff]
      %v289 = vld [vmem:[%s274 + $0x38] sm:$0xff]
      %v290 = vld [vmem:[%s274 + $0x40] sm:$0xff]
      %v291 = vld [vmem:[%s274 + $0x48] sm:$0xff]
      %v292 = vld [vmem:[%s274 + $0x50] sm:$0xff]
      %v293 = vld [vmem:[%s274 + $0x58] sm:$0xff]
      %v294 = vld [vmem:[%s274 + $0x60] sm:$0xff]
      %v295 = vld [vmem:[%s274 + $0x68] sm:$0xff]
      %v296 = vld [vmem:[%s274 + $0x70] sm:$0xff]
      %v297 = vld [vmem:[%s274 + $0x78] sm:$0xff]
      %v298 = vld [vmem:[%s274 + $0x80] sm:$0xff]
      %v299 = vld [vmem:[%s274 + $0x88] sm:$0xff]
      %v300 = vld [vmem:[%s274 + $0x90] sm:$0xff]
      %v301 = vld [vmem:[%s274 + $0x98] sm:$0xff]
      %v302 = vld [vmem:[%s274 + $0xa0] sm:$0xff]
      %v303 = vld [vmem:[%s274 + $0xa8] sm:$0xff]
      %v304 = vld [vmem:[%s274 + $0xb0] sm:$0xff]
      %v305 = vld [vmem:[%s274 + $0xb8] sm:$0xff]
      %v306 = vld [vmem:[%s274 + $0xc0] sm:$0xff]
      %v307 = vld [vmem:[%s274 + $0xc8] sm:$0xff]
      %v308 = vld [vmem:[%s274 + $0xd0] sm:$0xff]
      %v309 = vld [vmem:[%s274 + $0xd8] sm:$0xff]
      %v310 = vld [vmem:[%s274 + $0xe0] sm:$0xff]
      %v311 = vld [vmem:[%s274 + $0xe8] sm:$0xff]
      %v312 = vld [vmem:[%s274 + $0xf0] sm:$0xff]
      %v313 = vld [vmem:[%s274 + $0xf8] sm:$0xff]
      %v314 = vld [vmem:[%s274 + $0x100] sm:$0xff]
      %v315 = vld [vmem:[%s274 + $0x108] sm:$0xff]
      %v316 = vld [vmem:[%s274 + $0x110] sm:$0xff]
      %v317 = vld [vmem:[%s274 + $0x118] sm:$0xff]
      %v318 = vld [vmem:[%s274 + $0x120] sm:$0xff]
      %v319 = vld [vmem:[%s274 + $0x128] sm:$0xff]
      %v320 = vld [vmem:[%s274 + $0x130] sm:$0xff]
      %v321 = vld [vmem:[%s274 + $0x138] sm:$0xff]
      %v322 = vld [vmem:[%s274 + $0x140] sm:$0xff]
      %v323 = vld [vmem:[%s274 + $0x148] sm:$0xff]
      %v324 = vld [vmem:[%s274 + $0x150] sm:$0xff]
      %v325 = vld [vmem:[%s274 + $0x158] sm:$0xff]
      %v326 = vld [vmem:[%s274 + $0x160] sm:$0xff]
      %v327 = vld [vmem:[%s274 + $0x168] sm:$0xff]
      %v328 = vld [vmem:[%s274 + $0x170] sm:$0xff]
      %v329 = vld [vmem:[%s274 + $0x178] sm:$0xff]
      %v330 = vld [vmem:[%s274 + $0x180] sm:$0xff]
      %v331 = vld [vmem:[%s274 + $0x188] sm:$0xff]
      %v332 = vld [vmem:[%s274 + $0x190] sm:$0xff]
      %v333 = vld [vmem:[%s274 + $0x198] sm:$0xff]
      %v334 = vld [vmem:[%s274 + $0x1a0] sm:$0xff]
      %v335 = vld [vmem:[%s274 + $0x1a8] sm:$0xff]
      %v336 = vld [vmem:[%s274 + $0x1b0] sm:$0xff]
      %v337 = vld [vmem:[%s274 + $0x1b8] sm:$0xff]
      %v338 = vld [vmem:[%s274 + $0x1c0] sm:$0xff]
      %v339 = vld [vmem:[%s274 + $0x1c8] sm:$0xff]
      %v340 = vld [vmem:[%s274 + $0x1d0] sm:$0xff]
      %v341 = vld [vmem:[%s274 + $0x1d8] sm:$0xff]
      %v342 = vld [vmem:[%s274 + $0x1e0] sm:$0xff]
      %v343 = vld [vmem:[%s274 + $0x1e8] sm:$0xff]
      %v344 = vld [vmem:[%s274 + $0x1f0] sm:$0xff]
      %v345 = vld [vmem:[%s274 + $0x1f8] sm:$0xff]
      %v346 = vld [vmem:[%s1] sm:$0x1f]
      %v347 = vld [vmem:[%s2] sm:$0x1]
      %v349 = vlaneseq
      %v350 = vshrl.u32 %v349, 7
      %v351 = vsub.s32 0, %v350
      %v352 = vrot.slane %v347, %v351
      %vm354 = vcmask 39936
      %v356 = vsel %vm354, %v282, 0
      %v359 = vsel %vm354, %v283, 0
      %v362 = vsel %vm354, %v284, 0
      %v365 = vsel %vm354, %v285, 0
      %v368 = vsel %vm354, %v286, 0
      %v371 = vsel %vm354, %v287, 0
      %v374 = vsel %vm354, %v288, 0
      %v377 = vsel %vm354, %v289, 0
      %v380 = vsel %vm354, %v290, 0
      %v383 = vsel %vm354, %v291, 0
      %v386 = vsel %vm354, %v292, 0
      %v389 = vsel %vm354, %v293, 0
      %v392 = vsel %vm354, %v294, 0
      %v395 = vsel %vm354, %v295, 0
      %v398 = vsel %vm354, %v296, 0
      %v401 = vsel %vm354, %v297, 0
      %v404 = vsel %vm354, %v298, 0
      %v407 = vsel %vm354, %v299, 0
      %v410 = vsel %vm354, %v300, 0
      %v413 = vsel %vm354, %v301, 0
      %v416 = vsel %vm354, %v302, 0
      %v419 = vsel %vm354, %v303, 0
      %v422 = vsel %vm354, %v304, 0
      %v425 = vsel %vm354, %v305, 0
      %v428 = vsel %vm354, %v306, 0
      %v431 = vsel %vm354, %v307, 0
      %v434 = vsel %vm354, %v308, 0
      %v437 = vsel %vm354, %v309, 0
      %v440 = vsel %vm354, %v310, 0
      %v443 = vsel %vm354, %v311, 0
      %v446 = vsel %vm354, %v312, 0
      %v449 = vsel %vm354, %v313, 0
      %v452 = vsel %vm354, %v314, 0
      %v455 = vsel %vm354, %v315, 0
      %v458 = vsel %vm354, %v316, 0
      %v461 = vsel %vm354, %v317, 0
      %v464 = vsel %vm354, %v318, 0
      %v467 = vsel %vm354, %v319, 0
      %v470 = vsel %vm354, %v320, 0
      %v473 = vsel %vm354, %v321, 0
      %v476 = vsel %vm354, %v322, 0
      %v479 = vsel %vm354, %v323, 0
      %v482 = vsel %vm354, %v324, 0
      %v485 = vsel %vm354, %v325, 0
      %v488 = vsel %vm354, %v326, 0
      %v491 = vsel %vm354, %v327, 0
      %v494 = vsel %vm354, %v328, 0
      %v497 = vsel %vm354, %v329, 0
      %v500 = vsel %vm354, %v330, 0
      %v503 = vsel %vm354, %v331, 0
      %v506 = vsel %vm354, %v332, 0
      %v509 = vsel %vm354, %v333, 0
      %v512 = vsel %vm354, %v334, 0
      %v515 = vsel %vm354, %v335, 0
      %v518 = vsel %vm354, %v336, 0
      %v521 = vsel %vm354, %v337, 0
      %v524 = vsel %vm354, %v338, 0
      %v527 = vsel %vm354, %v339, 0
      %v530 = vsel %vm354, %v340, 0
      %v533 = vsel %vm354, %v341, 0
      %v536 = vsel %vm354, %v342, 0
      %v539 = vsel %vm354, %v343, 0
      %v542 = vsel %vm354, %v344, 0
      %v545 = vsel %vm354, %v345, 0
      %vm547 = vcmask 1044480
      %v549 = vsel %vm547, %v346, 0
      %551 = vmatprep.subr.mxu0 0.0
      %552 = vmatpush1.msra.mxu0 %v549
      %553 = vmatprep.subr.mxu0 0.0
      %554 = vmatpush1.msra.mxu0 0.0
      %555 = vmatprep.subr.mxu0 0.0
      %556 = vmatpush1.msra.mxu0 0.0
      %557 = vmatprep.subr.mxu0 0.0
      %558 = vmatpush1.msra.mxu0 0.0
      %559 = vmatprep.subr.mxu0 0.0
      %560 = vmatpush1.msra.mxu0 0.0
      %561 = vmatprep.subr.mxu0 0.0
      %562 = vmatpush1.msra.mxu0 0.0
      %563 = vmatprep.subr.mxu0 0.0
      %564 = vmatpush1.msra.mxu0 0.0
      %565 = vmatprep.subr.mxu0 0.0
      %566 = vmatpush1.msra.mxu0 0.0
      %567 = vmatprep.subr.mxu0 0.0
      %568 = vmatpush1.msra.mxu0 0.0
      %569 = vmatprep.subr.mxu0 0.0
      %570 = vmatpush1.msra.mxu0 0.0
      %571 = vmatprep.subr.mxu0 0.0
      %572 = vmatpush1.msra.mxu0 0.0
      %573 = vmatprep.subr.mxu0 0.0
      %574 = vmatpush1.msra.mxu0 0.0
      %575 = vmatprep.subr.mxu0 0.0
      %576 = vmatpush1.msra.mxu0 0.0
      %577 = vmatprep.subr.mxu0 0.0
      %578 = vmatpush1.msra.mxu0 0.0
      %579 = vmatprep.subr.mxu0 0.0
      %580 = vmatpush1.msra.mxu0 0.0
      %581 = vmatprep.subr.mxu0 0.0
      %582 = vmatpush1.msra.mxu0 0.0
      %583 = vmatprep.subr.mxu0 0.0
      %584 = vmatpush1.msra.mxu0 0.0
      %585 = vmatprep.subr.mxu0 0.0
      %586 = vmatpush1.msra.mxu0 0.0
      %587 = vmatprep.subr.mxu0 0.0
      %588 = vmatpush1.msra.mxu0 0.0
      %589 = vmatprep.subr.mxu0 0.0
      %590 = vmatpush1.msra.mxu0 0.0
      %591 = vmatprep.subr.mxu0 0.0
      %592 = vmatpush1.msra.mxu0 0.0
      %593 = vmatprep.subr.mxu0 0.0
      %594 = vmatpush1.msra.mxu0 0.0
      %595 = vmatprep.subr.mxu0 0.0
      %596 = vmatpush1.msra.mxu0 0.0
      %597 = vmatprep.subr.mxu0 0.0
      %598 = vmatpush1.msra.mxu0 0.0
      %599 = vmatprep.subr.mxu0 0.0
      %600 = vmatpush1.msra.mxu0 0.0
      %601 = vmatprep.subr.mxu0 0.0
      %602 = vmatpush1.msra.mxu0 0.0
      %603 = vmatprep.subr.mxu0 0.0
      %604 = vmatpush1.msra.mxu0 0.0
      %605 = vmatprep.subr.mxu0 0.0
      %606 = vmatpush1.msra.mxu0 0.0
      %607 = vmatprep.subr.mxu0 0.0
      %608 = vmatpush1.msra.mxu0 0.0
      %609 = vmatprep.subr.mxu0 0.0
      %610 = vmatpush1.msra.mxu0 0.0
      %611 = vmatprep.subr.mxu0 0.0
      %612 = vmatpush1.msra.mxu0 0.0
      %613 = vmatprep.subr.mxu0 0.0
      %614 = vmatpush1.msra.mxu0 0.0
      %615 = vmatprep.mubr.f32.mxu0 0.0
      %616 = vmatmul.mubr.f32.gmra.mrb[0].mxu0 %v356
      %v617 = vpop.f32.mrb[0].mxu0
      %v618 = vadd.f32 %v352, %v617
      %v619 = vpop.f32.mrb[0].mxu0
      %620 = vmatprep.mubr.f32.mxu0 0.0
      %621 = vmatmul.mubr.f32.gmra.mrb[0].mxu0 %v359
      %v622 = vpop.f32.mrb[0].mxu0
      %v623 = vadd.f32 %v352, %v622
      %v624 = vpop.f32.mrb[0].mxu0
      %625 = vmatprep.mubr.f32.mxu0 0.0
      %626 = vmatmul.mubr.f32.gmra.mrb[0].mxu0 %v362
      %v627 = vpop.f32.mrb[0].mxu0
      %v628 = vadd.f32 %v352, %v627
      %v629 = vpop.f32.mrb[0].mxu0
      %630 = vmatprep.mubr.f32.mxu0 0.0
      %631 = vmatmul.mubr.f32.gmra.mrb[0].mxu0 %v365
      %v632 = vpop.f32.mrb[0].mxu0
      %v633 = vadd.f32 %v352, %v632
      %v634 = vpop.f32.mrb[0].mxu0
      %635 = vmatprep.mubr.f32.mxu0 0.0
      %636 = vmatmul.mubr.f32.gmra.mrb[0].mxu0 %v368
      %v637 = vpop.f32.mrb[0].mxu0
      %v638 = vadd.f32 %v352, %v637
      %v639 = vpop.f32.mrb[0].mxu0
      %640 = vmatprep.mubr.f32.mxu0 0.0
      %641 = vmatmul.mubr.f32.gmra.mrb[0].mxu0 %v371
      %v642 = vpop.f32.mrb[0].mxu0
      %v643 = vadd.f32 %v352, %v642
      %v644 = vpop.f32.mrb[0].mxu0
      %645 = vmatprep.mubr.f32.mxu0 0.0
      %646 = vmatmul.mubr.f32.gmra.mrb[0].mxu0 %v374
      %v647 = vpop.f32.mrb[0].mxu0
      %v648 = vadd.f32 %v352, %v647
      %v649 = vpop.f32.mrb[0].mxu0
      %650 = vmatprep.mubr.f32.mxu0 0.0
      %651 = vmatmul.mubr.f32.gmra.mrb[0].mxu0 %v377
      %v652 = vpop.f32.mrb[0].mxu0
      %v653 = vadd.f32 %v352, %v652
      %v654 = vpop.f32.mrb[0].mxu0
      %655 = vmatprep.mubr.f32.mxu0 0.0
      %656 = vmatmul.mubr.f32.gmra.mrb[0].mxu0 %v380
      %v657 = vpop.f32.mrb[0].mxu0
      %v658 = vadd.f32 %v352, %v657
      %v659 = vpop.f32.mrb[0].mxu0
      %660 = vmatprep.mubr.f32.mxu0 0.0
      %661 = vmatmul.mubr.f32.gmra.mrb[0].mxu0 %v383
      %v662 = vpop.f32.mrb[0].mxu0
      %v663 = vadd.f32 %v352, %v662
      %v664 = vpop.f32.mrb[0].mxu0
      %665 = vmatprep.mubr.f32.mxu0 0.0
      %666 = vmatmul.mubr.f32.gmra.mrb[0].mxu0 %v386
      %v667 = vpop.f32.mrb[0].mxu0
      %v668 = vadd.f32 %v352, %v667
      %v669 = vpop.f32.mrb[0].mxu0
      %670 = vmatprep.mubr.f32.mxu0 0.0
      %671 = vmatmul.mubr.f32.gmra.mrb[0].mxu0 %v389
      %v672 = vpop.f32.mrb[0].mxu0
      %v673 = vadd.f32 %v352, %v672
      %v674 = vpop.f32.mrb[0].mxu0
      %675 = vmatprep.mubr.f32.mxu0 0.0
      %676 = vmatmul.mubr.f32.gmra.mrb[0].mxu0 %v392
      %v677 = vpop.f32.mrb[0].mxu0
      %v678 = vadd.f32 %v352, %v677
      %v679 = vpop.f32.mrb[0].mxu0
      %680 = vmatprep.mubr.f32.mxu0 0.0
      %681 = vmatmul.mubr.f32.gmra.mrb[0].mxu0 %v395
      %v682 = vpop.f32.mrb[0].mxu0
      %v683 = vadd.f32 %v352, %v682
      %v684 = vpop.f32.mrb[0].mxu0
      %685 = vmatprep.mubr.f32.mxu0 0.0
      %686 = vmatmul.mubr.f32.gmra.mrb[0].mxu0 %v398
      %v687 = vpop.f32.mrb[0].mxu0
      %v688 = vadd.f32 %v352, %v687
      %v689 = vpop.f32.mrb[0].mxu0
      %690 = vmatprep.mubr.f32.mxu0 0.0
      %691 = vmatmul.mubr.f32.gmra.mrb[0].mxu0 %v401
      %v692 = vpop.f32.mrb[0].mxu0
      %v693 = vadd.f32 %v352, %v692
      %v694 = vpop.f32.mrb[0].mxu0
      %695 = vmatprep.mubr.f32.mxu0 0.0
      %696 = vmatmul.mubr.f32.gmra.mrb[0].mxu0 %v404
      %v697 = vpop.f32.mrb[0].mxu0
      %v698 = vadd.f32 %v352, %v697
      %v699 = vpop.f32.mrb[0].mxu0
      %700 = vmatprep.mubr.f32.mxu0 0.0
      %701 = vmatmul.mubr.f32.gmra.mrb[0].mxu0 %v407
      %v702 = vpop.f32.mrb[0].mxu0
      %v703 = vadd.f32 %v352, %v702
      %v704 = vpop.f32.mrb[0].mxu0
      %705 = vmatprep.mubr.f32.mxu0 0.0
      %706 = vmatmul.mubr.f32.gmra.mrb[0].mxu0 %v410
      %v707 = vpop.f32.mrb[0].mxu0
      %v708 = vadd.f32 %v352, %v707
      %v709 = vpop.f32.mrb[0].mxu0
      %710 = vmatprep.mubr.f32.mxu0 0.0
      %711 = vmatmul.mubr.f32.gmra.mrb[0].mxu0 %v413
      %v712 = vpop.f32.mrb[0].mxu0
      %v713 = vadd.f32 %v352, %v712
      %v714 = vpop.f32.mrb[0].mxu0
      %715 = vmatprep.mubr.f32.mxu0 0.0
      %716 = vmatmul.mubr.f32.gmra.mrb[0].mxu0 %v416
      %v717 = vpop.f32.mrb[0].mxu0
      %v718 = vadd.f32 %v352, %v717
      %v719 = vpop.f32.mrb[0].mxu0
      %720 = vmatprep.mubr.f32.mxu0 0.0
      %721 = vmatmul.mubr.f32.gmra.mrb[0].mxu0 %v419
      %v722 = vpop.f32.mrb[0].mxu0
      %v723 = vadd.f32 %v352, %v722
      %v724 = vpop.f32.mrb[0].mxu0
      %725 = vmatprep.mubr.f32.mxu0 0.0
      %726 = vmatmul.mubr.f32.gmra.mrb[0].mxu0 %v422
      %v727 = vpop.f32.mrb[0].mxu0
      %v728 = vadd.f32 %v352, %v727
      %v729 = vpop.f32.mrb[0].mxu0
      %730 = vmatprep.mubr.f32.mxu0 0.0
      %731 = vmatmul.mubr.f32.gmra.mrb[0].mxu0 %v425
      %v732 = vpop.f32.mrb[0].mxu0
      %v733 = vadd.f32 %v352, %v732
      %v734 = vpop.f32.mrb[0].mxu0
      %735 = vmatprep.mubr.f32.mxu0 0.0
      %736 = vmatmul.mubr.f32.gmra.mrb[0].mxu0 %v428
      %v737 = vpop.f32.mrb[0].mxu0
      %v738 = vadd.f32 %v352, %v737
      %v739 = vpop.f32.mrb[0].mxu0
      %740 = vmatprep.mubr.f32.mxu0 0.0
      %741 = vmatmul.mubr.f32.gmra.mrb[0].mxu0 %v431
      %v742 = vpop.f32.mrb[0].mxu0
      %v743 = vadd.f32 %v352, %v742
      %v744 = vpop.f32.mrb[0].mxu0
      %745 = vmatprep.mubr.f32.mxu0 0.0
      %746 = vmatmul.mubr.f32.gmra.mrb[0].mxu0 %v434
      %v747 = vpop.f32.mrb[0].mxu0
      %v748 = vadd.f32 %v352, %v747
      %v749 = vpop.f32.mrb[0].mxu0
      %750 = vmatprep.mubr.f32.mxu0 0.0
      %751 = vmatmul.mubr.f32.gmra.mrb[0].mxu0 %v437
      %v752 = vpop.f32.mrb[0].mxu0
      %v753 = vadd.f32 %v352, %v752
      %v754 = vpop.f32.mrb[0].mxu0
      %755 = vmatprep.mubr.f32.mxu0 0.0
      %756 = vmatmul.mubr.f32.gmra.mrb[0].mxu0 %v440
      %v757 = vpop.f32.mrb[0].mxu0
      %v758 = vadd.f32 %v352, %v757
      %v759 = vpop.f32.mrb[0].mxu0
      %760 = vmatprep.mubr.f32.mxu0 0.0
      %761 = vmatmul.mubr.f32.gmra.mrb[0].mxu0 %v443
      %v762 = vpop.f32.mrb[0].mxu0
      %v763 = vadd.f32 %v352, %v762
      %v764 = vpop.f32.mrb[0].mxu0
      %765 = vmatprep.mubr.f32.mxu0 0.0
      %766 = vmatmul.mubr.f32.gmra.mrb[0].mxu0 %v446
      %v767 = vpop.f32.mrb[0].mxu0
      %v768 = vadd.f32 %v352, %v767
      %v769 = vpop.f32.mrb[0].mxu0
      %770 = vmatprep.mubr.f32.mxu0 0.0
      %771 = vmatmul.mubr.f32.gmra.mrb[0].mxu0 %v449
      %v772 = vpop.f32.mrb[0].mxu0
      %v773 = vadd.f32 %v352, %v772
      %v774 = vpop.f32.mrb[0].mxu0
      %775 = vmatprep.mubr.f32.mxu0 0.0
      %776 = vmatmul.mubr.f32.gmra.mrb[0].mxu0 %v452
      %v777 = vpop.f32.mrb[0].mxu0
      %v778 = vadd.f32 %v352, %v777
      %v779 = vpop.f32.mrb[0].mxu0
      %780 = vmatprep.mubr.f32.mxu0 0.0
      %781 = vmatmul.mubr.f32.gmra.mrb[0].mxu0 %v455
      %v782 = vpop.f32.mrb[0].mxu0
      %v783 = vadd.f32 %v352, %v782
      %v784 = vpop.f32.mrb[0].mxu0
      %785 = vmatprep.mubr.f32.mxu0 0.0
      %786 = vmatmul.mubr.f32.gmra.mrb[0].mxu0 %v458
      %v787 = vpop.f32.mrb[0].mxu0
      %v788 = vadd.f32 %v352, %v787
      %v789 = vpop.f32.mrb[0].mxu0
      %790 = vmatprep.mubr.f32.mxu0 0.0
      %791 = vmatmul.mubr.f32.gmra.mrb[0].mxu0 %v461
      %v792 = vpop.f32.mrb[0].mxu0
      %v793 = vadd.f32 %v352, %v792
      %v794 = vpop.f32.mrb[0].mxu0
      %795 = vmatprep.mubr.f32.mxu0 0.0
      %796 = vmatmul.mubr.f32.gmra.mrb[0].mxu0 %v464
      %v797 = vpop.f32.mrb[0].mxu0
      %v798 = vadd.f32 %v352, %v797
      %v799 = vpop.f32.mrb[0].mxu0
      %800 = vmatprep.mubr.f32.mxu0 0.0
      %801 = vmatmul.mubr.f32.gmra.mrb[0].mxu0 %v467
      %v802 = vpop.f32.mrb[0].mxu0
      %v803 = vadd.f32 %v352, %v802
      %v804 = vpop.f32.mrb[0].mxu0
      %805 = vmatprep.mubr.f32.mxu0 0.0
      %806 = vmatmul.mubr.f32.gmra.mrb[0].mxu0 %v470
      %v807 = vpop.f32.mrb[0].mxu0
      %v808 = vadd.f32 %v352, %v807
      %v809 = vpop.f32.mrb[0].mxu0
      %810 = vmatprep.mubr.f32.mxu0 0.0
      %811 = vmatmul.mubr.f32.gmra.mrb[0].mxu0 %v473
      %v812 = vpop.f32.mrb[0].mxu0
      %v813 = vadd.f32 %v352, %v812
      %v814 = vpop.f32.mrb[0].mxu0
      %815 = vmatprep.mubr.f32.mxu0 0.0
      %816 = vmatmul.mubr.f32.gmra.mrb[0].mxu0 %v476
      %v817 = vpop.f32.mrb[0].mxu0
      %v818 = vadd.f32 %v352, %v817
      %v819 = vpop.f32.mrb[0].mxu0
      %820 = vmatprep.mubr.f32.mxu0 0.0
      %821 = vmatmul.mubr.f32.gmra.mrb[0].mxu0 %v479
      %v822 = vpop.f32.mrb[0].mxu0
      %v823 = vadd.f32 %v352, %v822
      %v824 = vpop.f32.mrb[0].mxu0
      %825 = vmatprep.mubr.f32.mxu0 0.0
      %826 = vmatmul.mubr.f32.gmra.mrb[0].mxu0 %v482
      %v827 = vpop.f32.mrb[0].mxu0
      %v828 = vadd.f32 %v352, %v827
      %v829 = vpop.f32.mrb[0].mxu0
      %830 = vmatprep.mubr.f32.mxu0 0.0
      %831 = vmatmul.mubr.f32.gmra.mrb[0].mxu0 %v485
      %v832 = vpop.f32.mrb[0].mxu0
      %v833 = vadd.f32 %v352, %v832
      %v834 = vpop.f32.mrb[0].mxu0
      %835 = vmatprep.mubr.f32.mxu0 0.0
      %836 = vmatmul.mubr.f32.gmra.mrb[0].mxu0 %v488
      %v837 = vpop.f32.mrb[0].mxu0
      %v838 = vadd.f32 %v352, %v837
      %v839 = vpop.f32.mrb[0].mxu0
      %840 = vmatprep.mubr.f32.mxu0 0.0
      %841 = vmatmul.mubr.f32.gmra.mrb[0].mxu0 %v491
      %v842 = vpop.f32.mrb[0].mxu0
      %v843 = vadd.f32 %v352, %v842
      %v844 = vpop.f32.mrb[0].mxu0
      %845 = vmatprep.mubr.f32.mxu0 0.0
      %846 = vmatmul.mubr.f32.gmra.mrb[0].mxu0 %v494
      %v847 = vpop.f32.mrb[0].mxu0
      %v848 = vadd.f32 %v352, %v847
      %v849 = vpop.f32.mrb[0].mxu0
      %850 = vmatprep.mubr.f32.mxu0 0.0
      %851 = vmatmul.mubr.f32.gmra.mrb[0].mxu0 %v497
      %v852 = vpop.f32.mrb[0].mxu0
      %v853 = vadd.f32 %v352, %v852
      %v854 = vpop.f32.mrb[0].mxu0
      %855 = vmatprep.mubr.f32.mxu0 0.0
      %856 = vmatmul.mubr.f32.gmra.mrb[0].mxu0 %v500
      %v857 = vpop.f32.mrb[0].mxu0
      %v858 = vadd.f32 %v352, %v857
      %v859 = vpop.f32.mrb[0].mxu0
      %860 = vmatprep.mubr.f32.mxu0 0.0
      %861 = vmatmul.mubr.f32.gmra.mrb[0].mxu0 %v503
      %v862 = vpop.f32.mrb[0].mxu0
      %v863 = vadd.f32 %v352, %v862
      %v864 = vpop.f32.mrb[0].mxu0
      %865 = vmatprep.mubr.f32.mxu0 0.0
      %866 = vmatmul.mubr.f32.gmra.mrb[0].mxu0 %v506
      %v867 = vpop.f32.mrb[0].mxu0
      %v868 = vadd.f32 %v352, %v867
      %v869 = vpop.f32.mrb[0].mxu0
      %870 = vmatprep.mubr.f32.mxu0 0.0
      %871 = vmatmul.mubr.f32.gmra.mrb[0].mxu0 %v509
      %v872 = vpop.f32.mrb[0].mxu0
      %v873 = vadd.f32 %v352, %v872
      %v874 = vpop.f32.mrb[0].mxu0
      %875 = vmatprep.mubr.f32.mxu0 0.0
      %876 = vmatmul.mubr.f32.gmra.mrb[0].mxu0 %v512
      %v877 = vpop.f32.mrb[0].mxu0
      %v878 = vadd.f32 %v352, %v877
      %v879 = vpop.f32.mrb[0].mxu0
      %880 = vmatprep.mubr.f32.mxu0 0.0
      %881 = vmatmul.mubr.f32.gmra.mrb[0].mxu0 %v515
      %v882 = vpop.f32.mrb[0].mxu0
      %v883 = vadd.f32 %v352, %v882
      %v884 = vpop.f32.mrb[0].mxu0
      %885 = vmatprep.mubr.f32.mxu0 0.0
      %886 = vmatmul.mubr.f32.gmra.mrb[0].mxu0 %v518
      %v887 = vpop.f32.mrb[0].mxu0
      %v888 = vadd.f32 %v352, %v887
      %v889 = vpop.f32.mrb[0].mxu0
      %890 = vmatprep.mubr.f32.mxu0 0.0
      %891 = vmatmul.mubr.f32.gmra.mrb[0].mxu0 %v521
      %v892 = vpop.f32.mrb[0].mxu0
      %v893 = vadd.f32 %v352, %v892
      %v894 = vpop.f32.mrb[0].mxu0
      %895 = vmatprep.mubr.f32.mxu0 0.0
      %896 = vmatmul.mubr.f32.gmra.mrb[0].mxu0 %v524
      %v897 = vpop.f32.mrb[0].mxu0
      %v898 = vadd.f32 %v352, %v897
      %v899 = vpop.f32.mrb[0].mxu0
      %900 = vmatprep.mubr.f32.mxu0 0.0
      %901 = vmatmul.mubr.f32.gmra.mrb[0].mxu0 %v527
      %v902 = vpop.f32.mrb[0].mxu0
      %v903 = vadd.f32 %v352, %v902
      %v904 = vpop.f32.mrb[0].mxu0
      %905 = vmatprep.mubr.f32.mxu0 0.0
      %906 = vmatmul.mubr.f32.gmra.mrb[0].mxu0 %v530
      %v907 = vpop.f32.mrb[0].mxu0
      %v908 = vadd.f32 %v352, %v907
      %v909 = vpop.f32.mrb[0].mxu0
      %910 = vmatprep.mubr.f32.mxu0 0.0
      %911 = vmatmul.mubr.f32.gmra.mrb[0].mxu0 %v533
      %v912 = vpop.f32.mrb[0].mxu0
      %v913 = vadd.f32 %v352, %v912
      %v914 = vpop.f32.mrb[0].mxu0
      %915 = vmatprep.mubr.f32.mxu0 0.0
      %916 = vmatmul.mubr.f32.gmra.mrb[0].mxu0 %v536
      %v917 = vpop.f32.mrb[0].mxu0
      %v918 = vadd.f32 %v352, %v917
      %v919 = vpop.f32.mrb[0].mxu0
      %920 = vmatprep.mubr.f32.mxu0 0.0
      %921 = vmatmul.mubr.f32.gmra.mrb[0].mxu0 %v539
      %v922 = vpop.f32.mrb[0].mxu0
      %v923 = vadd.f32 %v352, %v922
      %v924 = vpop.f32.mrb[0].mxu0
      %925 = vmatprep.mubr.f32.mxu0 0.0
      %926 = vmatmul.mubr.f32.gmra.mrb[0].mxu0 %v542
      %v927 = vpop.f32.mrb[0].mxu0
      %v928 = vadd.f32 %v352, %v927
      %v929 = vpop.f32.mrb[0].mxu0
      %930 = vmatprep.mubr.f32.mxu0 0.0
      %931 = vmatmul.mubr.f32.gmra.mrb[0].mxu0 %v545
      %v932 = vpop.f32.mrb[0].mxu0
      %v933 = vadd.f32 %v352, %v932
      %v934 = vpop.f32.mrb[0].mxu0
      %935 = vdwg.mxu0
      %v936 = vsub.f32 0.0, %v618
      %v937 = vsub.f32 0.0, %v623
      %v938 = vsub.f32 0.0, %v628
      %v939 = vsub.f32 0.0, %v633
      %v940 = vsub.f32 0.0, %v638
      %v941 = vsub.f32 0.0, %v643
      %v942 = vsub.f32 0.0, %v648
      %v943 = vsub.f32 0.0, %v653
      %v944 = vsub.f32 0.0, %v658
      %v945 = vsub.f32 0.0, %v663
      %v946 = vsub.f32 0.0, %v668
      %v947 = vsub.f32 0.0, %v673
      %v948 = vsub.f32 0.0, %v678
      %v949 = vsub.f32 0.0, %v683
      %v950 = vsub.f32 0.0, %v688
      %v951 = vsub.f32 0.0, %v693
      %v952 = vsub.f32 0.0, %v698
      %v953 = vsub.f32 0.0, %v703
      %v954 = vsub.f32 0.0, %v708
      %v955 = vsub.f32 0.0, %v713
      %v956 = vsub.f32 0.0, %v718
      %v957 = vsub.f32 0.0, %v723
      %v958 = vsub.f32 0.0, %v728
      %v959 = vsub.f32 0.0, %v733
      %v960 = vsub.f32 0.0, %v738
      %v961 = vsub.f32 0.0, %v743
      %v962 = vsub.f32 0.0, %v748
      %v963 = vsub.f32 0.0, %v753
      %v964 = vsub.f32 0.0, %v758
      %v965 = vsub.f32 0.0, %v763
      %v966 = vsub.f32 0.0, %v768
      %v967 = vsub.f32 0.0, %v773
      %v968 = vsub.f32 0.0, %v778
      %v969 = vsub.f32 0.0, %v783
      %v970 = vsub.f32 0.0, %v788
      %v971 = vsub.f32 0.0, %v793
      %v972 = vsub.f32 0.0, %v798
      %v973 = vsub.f32 0.0, %v803
      %v974 = vsub.f32 0.0, %v808
      %v975 = vsub.f32 0.0, %v813
      %v976 = vsub.f32 0.0, %v818
      %v977 = vsub.f32 0.0, %v823
      %v978 = vsub.f32 0.0, %v828
      %v979 = vsub.f32 0.0, %v833
      %v980 = vsub.f32 0.0, %v838
      %v981 = vsub.f32 0.0, %v843
      %v982 = vsub.f32 0.0, %v848
      %v983 = vsub.f32 0.0, %v853
      %v984 = vsub.f32 0.0, %v858
      %v985 = vsub.f32 0.0, %v863
      %v986 = vsub.f32 0.0, %v868
      %v987 = vsub.f32 0.0, %v873
      %v988 = vsub.f32 0.0, %v878
      %v989 = vsub.f32 0.0, %v883
      %v990 = vsub.f32 0.0, %v888
      %v991 = vsub.f32 0.0, %v893
      %v992 = vsub.f32 0.0, %v898
      %v993 = vsub.f32 0.0, %v903
      %v994 = vsub.f32 0.0, %v908
      %v995 = vsub.f32 0.0, %v913
      %v996 = vsub.f32 0.0, %v918
      %v997 = vsub.f32 0.0, %v923
      %v998 = vsub.f32 0.0, %v928
      %v999 = vsub.f32 0.0, %v933
      %v1000 = vmul.f32 %v936, 1.442695
      %v1001 = vpow.pop %v1000
      %v1002 = vmul.f32 %v937, 1.442695
      %v1003 = vpow.pop %v1002
      %v1004 = vmul.f32 %v938, 1.442695
      %v1005 = vpow.pop %v1004
      %v1006 = vmul.f32 %v939, 1.442695
      %v1007 = vpow.pop %v1006
      %v1008 = vmul.f32 %v940, 1.442695
      %v1009 = vpow.pop %v1008
      %v1010 = vmul.f32 %v941, 1.442695
      %v1011 = vpow.pop %v1010
      %v1012 = vmul.f32 %v942, 1.442695
      %v1013 = vpow.pop %v1012
      %v1014 = vmul.f32 %v943, 1.442695
      %v1015 = vpow.pop %v1014
      %v1016 = vmul.f32 %v944, 1.442695
      %v1017 = vpow.pop %v1016
      %v1018 = vmul.f32 %v945, 1.442695
      %v1019 = vpow.pop %v1018
      %v1020 = vmul.f32 %v946, 1.442695
      %v1021 = vpow.pop %v1020
      %v1022 = vmul.f32 %v947, 1.442695
      %v1023 = vpow.pop %v1022
      %v1024 = vmul.f32 %v948, 1.442695
      %v1025 = vpow.pop %v1024
      %v1026 = vmul.f32 %v949, 1.442695
      %v1027 = vpow.pop %v1026
      %v1028 = vmul.f32 %v950, 1.442695
      %v1029 = vpow.pop %v1028
      %v1030 = vmul.f32 %v951, 1.442695
      %v1031 = vpow.pop %v1030
      %v1032 = vmul.f32 %v952, 1.442695
      %v1033 = vpow.pop %v1032
      %v1034 = vmul.f32 %v953, 1.442695
      %v1035 = vpow.pop %v1034
      %v1036 = vmul.f32 %v954, 1.442695
      %v1037 = vpow.pop %v1036
      %v1038 = vmul.f32 %v955, 1.442695
      %v1039 = vpow.pop %v1038
      %v1040 = vmul.f32 %v956, 1.442695
      %v1041 = vpow.pop %v1040
      %v1042 = vmul.f32 %v957, 1.442695
      %v1043 = vpow.pop %v1042
      %v1044 = vmul.f32 %v958, 1.442695
      %v1045 = vpow.pop %v1044
      %v1046 = vmul.f32 %v959, 1.442695
      %v1047 = vpow.pop %v1046
      %v1048 = vmul.f32 %v960, 1.442695
      %v1049 = vpow.pop %v1048
      %v1050 = vmul.f32 %v961, 1.442695
      %v1051 = vpow.pop %v1050
      %v1052 = vmul.f32 %v962, 1.442695
      %v1053 = vpow.pop %v1052
      %v1054 = vmul.f32 %v963, 1.442695
      %v1055 = vpow.pop %v1054
      %v1056 = vmul.f32 %v964, 1.442695
      %v1057 = vpow.pop %v1056
      %v1058 = vmul.f32 %v965, 1.442695
      %v1059 = vpow.pop %v1058
      %v1060 = vmul.f32 %v966, 1.442695
      %v1061 = vpow.pop %v1060
      %v1062 = vmul.f32 %v967, 1.442695
      %v1063 = vpow.pop %v1062
      %v1064 = vmul.f32 %v968, 1.442695
      %v1065 = vpow.pop %v1064
      %v1066 = vmul.f32 %v969, 1.442695
      %v1067 = vpow.pop %v1066
      %v1068 = vmul.f32 %v970, 1.442695
      %v1069 = vpow.pop %v1068
      %v1070 = vmul.f32 %v971, 1.442695
      %v1071 = vpow.pop %v1070
      %v1072 = vmul.f32 %v972, 1.442695
      %v1073 = vpow.pop %v1072
      %v1074 = vmul.f32 %v973, 1.442695
      %v1075 = vpow.pop %v1074
      %v1076 = vmul.f32 %v974, 1.442695
      %v1077 = vpow.pop %v1076
      %v1078 = vmul.f32 %v975, 1.442695
      %v1079 = vpow.pop %v1078
      %v1080 = vmul.f32 %v976, 1.442695
      %v1081 = vpow.pop %v1080
      %v1082 = vmul.f32 %v977, 1.442695
      %v1083 = vpow.pop %v1082
      %v1084 = vmul.f32 %v978, 1.442695
      %v1085 = vpow.pop %v1084
      %v1086 = vmul.f32 %v979, 1.442695
      %v1087 = vpow.pop %v1086
      %v1088 = vmul.f32 %v980, 1.442695
      %v1089 = vpow.pop %v1088
      %v1090 = vmul.f32 %v981, 1.442695
      %v1091 = vpow.pop %v1090
      %v1092 = vmul.f32 %v982, 1.442695
      %v1093 = vpow.pop %v1092
      %v1094 = vmul.f32 %v983, 1.442695
      %v1095 = vpow.pop %v1094
      %v1096 = vmul.f32 %v984, 1.442695
      %v1097 = vpow.pop %v1096
      %v1098 = vmul.f32 %v985, 1.442695
      %v1099 = vpow.pop %v1098
      %v1100 = vmul.f32 %v986, 1.442695
      %v1101 = vpow.pop %v1100
      %v1102 = vmul.f32 %v987, 1.442695
      %v1103 = vpow.pop %v1102
      %v1104 = vmul.f32 %v988, 1.442695
      %v1105 = vpow.pop %v1104
      %v1106 = vmul.f32 %v989, 1.442695
      %v1107 = vpow.pop %v1106
      %v1108 = vmul.f32 %v990, 1.442695
      %v1109 = vpow.pop %v1108
      %v1110 = vmul.f32 %v991, 1.442695
      %v1111 = vpow.pop %v1110
      %v1112 = vmul.f32 %v992, 1.442695
      %v1113 = vpow.pop %v1112
      %v1114 = vmul.f32 %v993, 1.442695
      %v1115 = vpow.pop %v1114
      %v1116 = vmul.f32 %v994, 1.442695
      %v1117 = vpow.pop %v1116
      %v1118 = vmul.f32 %v995, 1.442695
      %v1119 = vpow.pop %v1118
      %v1120 = vmul.f32 %v996, 1.442695
      %v1121 = vpow.pop %v1120
      %v1122 = vmul.f32 %v997, 1.442695
      %v1123 = vpow.pop %v1122
      %v1124 = vmul.f32 %v998, 1.442695
      %v1125 = vpow.pop %v1124
      %v1126 = vmul.f32 %v999, 1.442695
      %v1127 = vpow.pop %v1126
      %v1128 = vadd.f32 %v1001, 1.0
      %v1129 = vadd.f32 %v1003, 1.0
      %v1130 = vadd.f32 %v1005, 1.0
      %v1131 = vadd.f32 %v1007, 1.0
      %v1132 = vadd.f32 %v1009, 1.0
      %v1133 = vadd.f32 %v1011, 1.0
      %v1134 = vadd.f32 %v1013, 1.0
      %v1135 = vadd.f32 %v1015, 1.0
      %v1136 = vadd.f32 %v1017, 1.0
      %v1137 = vadd.f32 %v1019, 1.0
      %v1138 = vadd.f32 %v1021, 1.0
      %v1139 = vadd.f32 %v1023, 1.0
      %v1140 = vadd.f32 %v1025, 1.0
      %v1141 = vadd.f32 %v1027, 1.0
      %v1142 = vadd.f32 %v1029, 1.0
      %v1143 = vadd.f32 %v1031, 1.0
      %v1144 = vadd.f32 %v1033, 1.0
      %v1145 = vadd.f32 %v1035, 1.0
      %v1146 = vadd.f32 %v1037, 1.0
      %v1147 = vadd.f32 %v1039, 1.0
      %v1148 = vadd.f32 %v1041, 1.0
      %v1149 = vadd.f32 %v1043, 1.0
      %v1150 = vadd.f32 %v1045, 1.0
      %v1151 = vadd.f32 %v1047, 1.0
      %v1152 = vadd.f32 %v1049, 1.0
      %v1153 = vadd.f32 %v1051, 1.0
      %v1154 = vadd.f32 %v1053, 1.0
      %v1155 = vadd.f32 %v1055, 1.0
      %v1156 = vadd.f32 %v1057, 1.0
      %v1157 = vadd.f32 %v1059, 1.0
      %v1158 = vadd.f32 %v1061, 1.0
      %v1159 = vadd.f32 %v1063, 1.0
      %v1160 = vadd.f32 %v1065, 1.0
      %v1161 = vadd.f32 %v1067, 1.0
      %v1162 = vadd.f32 %v1069, 1.0
      %v1163 = vadd.f32 %v1071, 1.0
      %v1164 = vadd.f32 %v1073, 1.0
      %v1165 = vadd.f32 %v1075, 1.0
      %v1166 = vadd.f32 %v1077, 1.0
      %v1167 = vadd.f32 %v1079, 1.0
      %v1168 = vadd.f32 %v1081, 1.0
      %v1169 = vadd.f32 %v1083, 1.0
      %v1170 = vadd.f32 %v1085, 1.0
      %v1171 = vadd.f32 %v1087, 1.0
      %v1172 = vadd.f32 %v1089, 1.0
      %v1173 = vadd.f32 %v1091, 1.0
      %v1174 = vadd.f32 %v1093, 1.0
      %v1175 = vadd.f32 %v1095, 1.0
      %v1176 = vadd.f32 %v1097, 1.0
      %v1177 = vadd.f32 %v1099, 1.0
      %v1178 = vadd.f32 %v1101, 1.0
      %v1179 = vadd.f32 %v1103, 1.0
      %v1180 = vadd.f32 %v1105, 1.0
      %v1181 = vadd.f32 %v1107, 1.0
      %v1182 = vadd.f32 %v1109, 1.0
      %v1183 = vadd.f32 %v1111, 1.0
      %v1184 = vadd.f32 %v1113, 1.0
      %v1185 = vadd.f32 %v1115, 1.0
      %v1186 = vadd.f32 %v1117, 1.0
      %v1187 = vadd.f32 %v1119, 1.0
      %v1188 = vadd.f32 %v1121, 1.0
      %v1189 = vadd.f32 %v1123, 1.0
      %v1190 = vadd.f32 %v1125, 1.0
      %v1191 = vadd.f32 %v1127, 1.0
      %v1192 = vrcp.pop %v1128
      %v1193 = vrcp.pop %v1129
      %v1194 = vrcp.pop %v1130
      %v1195 = vrcp.pop %v1131
      %v1196 = vrcp.pop %v1132
      %v1197 = vrcp.pop %v1133
      %v1198 = vrcp.pop %v1134
      %v1199 = vrcp.pop %v1135
      %v1200 = vrcp.pop %v1136
      %v1201 = vrcp.pop %v1137
      %v1202 = vrcp.pop %v1138
      %v1203 = vrcp.pop %v1139
      %v1204 = vrcp.pop %v1140
      %v1205 = vrcp.pop %v1141
      %v1206 = vrcp.pop %v1142
      %v1207 = vrcp.pop %v1143
      %v1208 = vrcp.pop %v1144
      %v1209 = vrcp.pop %v1145
      %v1210 = vrcp.pop %v1146
      %v1211 = vrcp.pop %v1147
      %v1212 = vrcp.pop %v1148
      %v1213 = vrcp.pop %v1149
      %v1214 = vrcp.pop %v1150
      %v1215 = vrcp.pop %v1151
      %v1216 = vrcp.pop %v1152
      %v1217 = vrcp.pop %v1153
      %v1218 = vrcp.pop %v1154
      %v1219 = vrcp.pop %v1155
      %v1220 = vrcp.pop %v1156
      %v1221 = vrcp.pop %v1157
      %v1222 = vrcp.pop %v1158
      %v1223 = vrcp.pop %v1159
      %v1224 = vrcp.pop %v1160
      %v1225 = vrcp.pop %v1161
      %v1226 = vrcp.pop %v1162
      %v1227 = vrcp.pop %v1163
      %v1228 = vrcp.pop %v1164
      %v1229 = vrcp.pop %v1165
      %v1230 = vrcp.pop %v1166
      %v1231 = vrcp.pop %v1167
      %v1232 = vrcp.pop %v1168
      %v1233 = vrcp.pop %v1169
      %v1234 = vrcp.pop %v1170
      %v1235 = vrcp.pop %v1171
      %v1236 = vrcp.pop %v1172
      %v1237 = vrcp.pop %v1173
      %v1238 = vrcp.pop %v1174
      %v1239 = vrcp.pop %v1175
      %v1240 = vrcp.pop %v1176
      %v1241 = vrcp.pop %v1177
      %v1242 = vrcp.pop %v1178
      %v1243 = vrcp.pop %v1179
      %v1244 = vrcp.pop %v1180
      %v1245 = vrcp.pop %v1181
      %v1246 = vrcp.pop %v1182
      %v1247 = vrcp.pop %v1183
      %v1248 = vrcp.pop %v1184
      %v1249 = vrcp.pop %v1185
      %v1250 = vrcp.pop %v1186
      %v1251 = vrcp.pop %v1187
      %v1252 = vrcp.pop %v1188
      %v1253 = vrcp.pop %v1189
      %v1254 = vrcp.pop %v1190
      %v1255 = vrcp.pop %v1191
      %v1256 = vld [vmem:[%s3] sm:$0xf]
      %v1257 = vld [vmem:[%s4] sm:$0x1]
      %v1259 = vlaneseq
      %v1260 = vshrl.u32 %v1259, 7
      %v1261 = vsub.s32 0, %v1260
      %v1262 = vrot.slane %v1257, %v1261
      %vm1264 = vcmask 31744
      %v1266 = vsel %vm1264, %v1192, 0
      %v1269 = vsel %vm1264, %v1193, 0
      %v1272 = vsel %vm1264, %v1194, 0
      %v1275 = vsel %vm1264, %v1195, 0
      %v1278 = vsel %vm1264, %v1196, 0
      %v1281 = vsel %vm1264, %v1197, 0
      %v1284 = vsel %vm1264, %v1198, 0
      %v1287 = vsel %vm1264, %v1199, 0
      %v1290 = vsel %vm1264, %v1200, 0
      %v1293 = vsel %vm1264, %v1201, 0
      %v1296 = vsel %vm1264, %v1202, 0
      %v1299 = vsel %vm1264, %v1203, 0
      %v1302 = vsel %vm1264, %v1204, 0
      %v1305 = vsel %vm1264, %v1205, 0
      %v1308 = vsel %vm1264, %v1206, 0
      %v1311 = vsel %vm1264, %v1207, 0
      %v1314 = vsel %vm1264, %v1208, 0
      %v1317 = vsel %vm1264, %v1209, 0
      %v1320 = vsel %vm1264, %v1210, 0
      %v1323 = vsel %vm1264, %v1211, 0
      %v1326 = vsel %vm1264, %v1212, 0
      %v1329 = vsel %vm1264, %v1213, 0
      %v1332 = vsel %vm1264, %v1214, 0
      %v1335 = vsel %vm1264, %v1215, 0
      %v1338 = vsel %vm1264, %v1216, 0
      %v1341 = vsel %vm1264, %v1217, 0
      %v1344 = vsel %vm1264, %v1218, 0
      %v1347 = vsel %vm1264, %v1219, 0
      %v1350 = vsel %vm1264, %v1220, 0
      %v1353 = vsel %vm1264, %v1221, 0
      %v1356 = vsel %vm1264, %v1222, 0
      %v1359 = vsel %vm1264, %v1223, 0
      %v1362 = vsel %vm1264, %v1224, 0
      %v1365 = vsel %vm1264, %v1225, 0
      %v1368 = vsel %vm1264, %v1226, 0
      %v1371 = vsel %vm1264, %v1227, 0
      %v1374 = vsel %vm1264, %v1228, 0
      %v1377 = vsel %vm1264, %v1229, 0
      %v1380 = vsel %vm1264, %v1230, 0
      %v1383 = vsel %vm1264, %v1231, 0
      %v1386 = vsel %vm1264, %v1232, 0
      %v1389 = vsel %vm1264, %v1233, 0
      %v1392 = vsel %vm1264, %v1234, 0
      %v1395 = vsel %vm1264, %v1235, 0
      %v1398 = vsel %vm1264, %v1236, 0
      %v1401 = vsel %vm1264, %v1237, 0
      %v1404 = vsel %vm1264, %v1238, 0
      %v1407 = vsel %vm1264, %v1239, 0
      %v1410 = vsel %vm1264, %v1240, 0
      %v1413 = vsel %vm1264, %v1241, 0
      %v1416 = vsel %vm1264, %v1242, 0
      %v1419 = vsel %vm1264, %v1243, 0
      %v1422 = vsel %vm1264, %v1244, 0
      %v1425 = vsel %vm1264, %v1245, 0
      %v1428 = vsel %vm1264, %v1246, 0
      %v1431 = vsel %vm1264, %v1247, 0
      %v1434 = vsel %vm1264, %v1248, 0
      %v1437 = vsel %vm1264, %v1249, 0
      %v1440 = vsel %vm1264, %v1250, 0
      %v1443 = vsel %vm1264, %v1251, 0
      %v1446 = vsel %vm1264, %v1252, 0
      %v1449 = vsel %vm1264, %v1253, 0
      %v1452 = vsel %vm1264, %v1254, 0
      %v1455 = vsel %vm1264, %v1255, 0
      %vm1457 = vcmask 1043456
      %v1459 = vsel %vm1457, %v1256, 0
      %1461 = vmatprep.subr.mxu0 0.0
      %1462 = vmatpush1.msra.mxu0 %v1459
      %1463 = vmatprep.subr.mxu0 0.0
      %1464 = vmatpush1.msra.mxu0 0.0
      %1465 = vmatprep.subr.mxu0 0.0
      %1466 = vmatpush1.msra.mxu0 0.0
      %1467 = vmatprep.subr.mxu0 0.0
      %1468 = vmatpush1.msra.mxu0 0.0
      %1469 = vmatprep.subr.mxu0 0.0
      %1470 = vmatpush1.msra.mxu0 0.0
      %1471 = vmatprep.subr.mxu0 0.0
      %1472 = vmatpush1.msra.mxu0 0.0
      %1473 = vmatprep.subr.mxu0 0.0
      %1474 = vmatpush1.msra.mxu0 0.0
      %1475 = vmatprep.subr.mxu0 0.0
      %1476 = vmatpush1.msra.mxu0 0.0
      %1477 = vmatprep.subr.mxu0 0.0
      %1478 = vmatpush1.msra.mxu0 0.0
      %1479 = vmatprep.subr.mxu0 0.0
      %1480 = vmatpush1.msra.mxu0 0.0
      %1481 = vmatprep.subr.mxu0 0.0
      %1482 = vmatpush1.msra.mxu0 0.0
      %1483 = vmatprep.subr.mxu0 0.0
      %1484 = vmatpush1.msra.mxu0 0.0
      %1485 = vmatprep.subr.mxu0 0.0
      %1486 = vmatpush1.msra.mxu0 0.0
      %1487 = vmatprep.subr.mxu0 0.0
      %1488 = vmatpush1.msra.mxu0 0.0
      %1489 = vmatprep.subr.mxu0 0.0
      %1490 = vmatpush1.msra.mxu0 0.0
      %1491 = vmatprep.subr.mxu0 0.0
      %1492 = vmatpush1.msra.mxu0 0.0
      %1493 = vmatprep.subr.mxu0 0.0
      %1494 = vmatpush1.msra.mxu0 0.0
      %1495 = vmatprep.subr.mxu0 0.0
      %1496 = vmatpush1.msra.mxu0 0.0
      %1497 = vmatprep.subr.mxu0 0.0
      %1498 = vmatpush1.msra.mxu0 0.0
      %1499 = vmatprep.subr.mxu0 0.0
      %1500 = vmatpush1.msra.mxu0 0.0
      %1501 = vmatprep.subr.mxu0 0.0
      %1502 = vmatpush1.msra.mxu0 0.0
      %1503 = vmatprep.subr.mxu0 0.0
      %1504 = vmatpush1.msra.mxu0 0.0
      %1505 = vmatprep.subr.mxu0 0.0
      %1506 = vmatpush1.msra.mxu0 0.0
      %1507 = vmatprep.subr.mxu0 0.0
      %1508 = vmatpush1.msra.mxu0 0.0
      %1509 = vmatprep.subr.mxu0 0.0
      %1510 = vmatpush1.msra.mxu0 0.0
      %1511 = vmatprep.subr.mxu0 0.0
      %1512 = vmatpush1.msra.mxu0 0.0
      %1513 = vmatprep.subr.mxu0 0.0
      %1514 = vmatpush1.msra.mxu0 0.0
      %1515 = vmatprep.subr.mxu0 0.0
      %1516 = vmatpush1.msra.mxu0 0.0
      %1517 = vmatprep.subr.mxu0 0.0
      %1518 = vmatpush1.msra.mxu0 0.0
      %1519 = vmatprep.subr.mxu0 0.0
      %1520 = vmatpush1.msra.mxu0 0.0
      %1521 = vmatprep.subr.mxu0 0.0
      %1522 = vmatpush1.msra.mxu0 0.0
      %1523 = vmatprep.subr.mxu0 0.0
      %1524 = vmatpush1.msra.mxu0 0.0
      %1525 = vmatprep.mubr.f32.mxu0 0.0
      %1526 = vmatmul.mubr.f32.gmra.mrb[0].mxu0 %v1266
      %v1527 = vpop.f32.mrb[0].mxu0
      %v1528 = vadd.f32 %v1262, %v1527
      %v1529 = vpop.f32.mrb[0].mxu0
      %1530 = vmatprep.mubr.f32.mxu0 0.0
      %1531 = vmatmul.mubr.f32.gmra.mrb[0].mxu0 %v1269
      %v1532 = vpop.f32.mrb[0].mxu0
      %v1533 = vadd.f32 %v1262, %v1532
      %v1534 = vpop.f32.mrb[0].mxu0
      %1535 = vmatprep.mubr.f32.mxu0 0.0
      %1536 = vmatmul.mubr.f32.gmra.mrb[0].mxu0 %v1272
      %v1537 = vpop.f32.mrb[0].mxu0
      %v1538 = vadd.f32 %v1262, %v1537
      %v1539 = vpop.f32.mrb[0].mxu0
      %1540 = vmatprep.mubr.f32.mxu0 0.0
      %1541 = vmatmul.mubr.f32.gmra.mrb[0].mxu0 %v1275
      %v1542 = vpop.f32.mrb[0].mxu0
      %v1543 = vadd.f32 %v1262, %v1542
      %v1544 = vpop.f32.mrb[0].mxu0
      %1545 = vmatprep.mubr.f32.mxu0 0.0
      %1546 = vmatmul.mubr.f32.gmra.mrb[0].mxu0 %v1278
      %v1547 = vpop.f32.mrb[0].mxu0
      %v1548 = vadd.f32 %v1262, %v1547
      %v1549 = vpop.f32.mrb[0].mxu0
      %1550 = vmatprep.mubr.f32.mxu0 0.0
      %1551 = vmatmul.mubr.f32.gmra.mrb[0].mxu0 %v1281
      %v1552 = vpop.f32.mrb[0].mxu0
      %v1553 = vadd.f32 %v1262, %v1552
      %v1554 = vpop.f32.mrb[0].mxu0
      %1555 = vmatprep.mubr.f32.mxu0 0.0
      %1556 = vmatmul.mubr.f32.gmra.mrb[0].mxu0 %v1284
      %v1557 = vpop.f32.mrb[0].mxu0
      %v1558 = vadd.f32 %v1262, %v1557
      %v1559 = vpop.f32.mrb[0].mxu0
      %1560 = vmatprep.mubr.f32.mxu0 0.0
      %1561 = vmatmul.mubr.f32.gmra.mrb[0].mxu0 %v1287
      %v1562 = vpop.f32.mrb[0].mxu0
      %v1563 = vadd.f32 %v1262, %v1562
      %v1564 = vpop.f32.mrb[0].mxu0
      %1565 = vmatprep.mubr.f32.mxu0 0.0
      %1566 = vmatmul.mubr.f32.gmra.mrb[0].mxu0 %v1290
      %v1567 = vpop.f32.mrb[0].mxu0
      %v1568 = vadd.f32 %v1262, %v1567
      %v1569 = vpop.f32.mrb[0].mxu0
      %1570 = vmatprep.mubr.f32.mxu0 0.0
      %1571 = vmatmul.mubr.f32.gmra.mrb[0].mxu0 %v1293
      %v1572 = vpop.f32.mrb[0].mxu0
      %v1573 = vadd.f32 %v1262, %v1572
      %v1574 = vpop.f32.mrb[0].mxu0
      %1575 = vmatprep.mubr.f32.mxu0 0.0
      %1576 = vmatmul.mubr.f32.gmra.mrb[0].mxu0 %v1296
      %v1577 = vpop.f32.mrb[0].mxu0
      %v1578 = vadd.f32 %v1262, %v1577
      %v1579 = vpop.f32.mrb[0].mxu0
      %1580 = vmatprep.mubr.f32.mxu0 0.0
      %1581 = vmatmul.mubr.f32.gmra.mrb[0].mxu0 %v1299
      %v1582 = vpop.f32.mrb[0].mxu0
      %v1583 = vadd.f32 %v1262, %v1582
      %v1584 = vpop.f32.mrb[0].mxu0
      %1585 = vmatprep.mubr.f32.mxu0 0.0
      %1586 = vmatmul.mubr.f32.gmra.mrb[0].mxu0 %v1302
      %v1587 = vpop.f32.mrb[0].mxu0
      %v1588 = vadd.f32 %v1262, %v1587
      %v1589 = vpop.f32.mrb[0].mxu0
      %1590 = vmatprep.mubr.f32.mxu0 0.0
      %1591 = vmatmul.mubr.f32.gmra.mrb[0].mxu0 %v1305
      %v1592 = vpop.f32.mrb[0].mxu0
      %v1593 = vadd.f32 %v1262, %v1592
      %v1594 = vpop.f32.mrb[0].mxu0
      %1595 = vmatprep.mubr.f32.mxu0 0.0
      %1596 = vmatmul.mubr.f32.gmra.mrb[0].mxu0 %v1308
      %v1597 = vpop.f32.mrb[0].mxu0
      %v1598 = vadd.f32 %v1262, %v1597
      %v1599 = vpop.f32.mrb[0].mxu0
      %1600 = vmatprep.mubr.f32.mxu0 0.0
      %1601 = vmatmul.mubr.f32.gmra.mrb[0].mxu0 %v1311
      %v1602 = vpop.f32.mrb[0].mxu0
      %v1603 = vadd.f32 %v1262, %v1602
      %v1604 = vpop.f32.mrb[0].mxu0
      %1605 = vmatprep.mubr.f32.mxu0 0.0
      %1606 = vmatmul.mubr.f32.gmra.mrb[0].mxu0 %v1314
      %v1607 = vpop.f32.mrb[0].mxu0
      %v1608 = vadd.f32 %v1262, %v1607
      %v1609 = vpop.f32.mrb[0].mxu0
      %1610 = vmatprep.mubr.f32.mxu0 0.0
      %1611 = vmatmul.mubr.f32.gmra.mrb[0].mxu0 %v1317
      %v1612 = vpop.f32.mrb[0].mxu0
      %v1613 = vadd.f32 %v1262, %v1612
      %v1614 = vpop.f32.mrb[0].mxu0
      %1615 = vmatprep.mubr.f32.mxu0 0.0
      %1616 = vmatmul.mubr.f32.gmra.mrb[0].mxu0 %v1320
      %v1617 = vpop.f32.mrb[0].mxu0
      %v1618 = vadd.f32 %v1262, %v1617
      %v1619 = vpop.f32.mrb[0].mxu0
      %1620 = vmatprep.mubr.f32.mxu0 0.0
      %1621 = vmatmul.mubr.f32.gmra.mrb[0].mxu0 %v1323
      %v1622 = vpop.f32.mrb[0].mxu0
      %v1623 = vadd.f32 %v1262, %v1622
      %v1624 = vpop.f32.mrb[0].mxu0
      %1625 = vmatprep.mubr.f32.mxu0 0.0
      %1626 = vmatmul.mubr.f32.gmra.mrb[0].mxu0 %v1326
      %v1627 = vpop.f32.mrb[0].mxu0
      %v1628 = vadd.f32 %v1262, %v1627
      %v1629 = vpop.f32.mrb[0].mxu0
      %1630 = vmatprep.mubr.f32.mxu0 0.0
      %1631 = vmatmul.mubr.f32.gmra.mrb[0].mxu0 %v1329
      %v1632 = vpop.f32.mrb[0].mxu0
      %v1633 = vadd.f32 %v1262, %v1632
      %v1634 = vpop.f32.mrb[0].mxu0
      %1635 = vmatprep.mubr.f32.mxu0 0.0
      %1636 = vmatmul.mubr.f32.gmra.mrb[0].mxu0 %v1332
      %v1637 = vpop.f32.mrb[0].mxu0
      %v1638 = vadd.f32 %v1262, %v1637
      %v1639 = vpop.f32.mrb[0].mxu0
      %1640 = vmatprep.mubr.f32.mxu0 0.0
      %1641 = vmatmul.mubr.f32.gmra.mrb[0].mxu0 %v1335
      %v1642 = vpop.f32.mrb[0].mxu0
      %v1643 = vadd.f32 %v1262, %v1642
      %v1644 = vpop.f32.mrb[0].mxu0
      %1645 = vmatprep.mubr.f32.mxu0 0.0
      %1646 = vmatmul.mubr.f32.gmra.mrb[0].mxu0 %v1338
      %v1647 = vpop.f32.mrb[0].mxu0
      %v1648 = vadd.f32 %v1262, %v1647
      %v1649 = vpop.f32.mrb[0].mxu0
      %1650 = vmatprep.mubr.f32.mxu0 0.0
      %1651 = vmatmul.mubr.f32.gmra.mrb[0].mxu0 %v1341
      %v1652 = vpop.f32.mrb[0].mxu0
      %v1653 = vadd.f32 %v1262, %v1652
      %v1654 = vpop.f32.mrb[0].mxu0
      %1655 = vmatprep.mubr.f32.mxu0 0.0
      %1656 = vmatmul.mubr.f32.gmra.mrb[0].mxu0 %v1344
      %v1657 = vpop.f32.mrb[0].mxu0
      %v1658 = vadd.f32 %v1262, %v1657
      %v1659 = vpop.f32.mrb[0].mxu0
      %1660 = vmatprep.mubr.f32.mxu0 0.0
      %1661 = vmatmul.mubr.f32.gmra.mrb[0].mxu0 %v1347
      %v1662 = vpop.f32.mrb[0].mxu0
      %v1663 = vadd.f32 %v1262, %v1662
      %v1664 = vpop.f32.mrb[0].mxu0
      %1665 = vmatprep.mubr.f32.mxu0 0.0
      %1666 = vmatmul.mubr.f32.gmra.mrb[0].mxu0 %v1350
      %v1667 = vpop.f32.mrb[0].mxu0
      %v1668 = vadd.f32 %v1262, %v1667
      %v1669 = vpop.f32.mrb[0].mxu0
      %1670 = vmatprep.mubr.f32.mxu0 0.0
      %1671 = vmatmul.mubr.f32.gmra.mrb[0].mxu0 %v1353
      %v1672 = vpop.f32.mrb[0].mxu0
      %v1673 = vadd.f32 %v1262, %v1672
      %v1674 = vpop.f32.mrb[0].mxu0
      %1675 = vmatprep.mubr.f32.mxu0 0.0
      %1676 = vmatmul.mubr.f32.gmra.mrb[0].mxu0 %v1356
      %v1677 = vpop.f32.mrb[0].mxu0
      %v1678 = vadd.f32 %v1262, %v1677
      %v1679 = vpop.f32.mrb[0].mxu0
      %1680 = vmatprep.mubr.f32.mxu0 0.0
      %1681 = vmatmul.mubr.f32.gmra.mrb[0].mxu0 %v1359
      %v1682 = vpop.f32.mrb[0].mxu0
      %v1683 = vadd.f32 %v1262, %v1682
      %v1684 = vpop.f32.mrb[0].mxu0
      %1685 = vmatprep.mubr.f32.mxu0 0.0
      %1686 = vmatmul.mubr.f32.gmra.mrb[0].mxu0 %v1362
      %v1687 = vpop.f32.mrb[0].mxu0
      %v1688 = vadd.f32 %v1262, %v1687
      %v1689 = vpop.f32.mrb[0].mxu0
      %1690 = vmatprep.mubr.f32.mxu0 0.0
      %1691 = vmatmul.mubr.f32.gmra.mrb[0].mxu0 %v1365
      %v1692 = vpop.f32.mrb[0].mxu0
      %v1693 = vadd.f32 %v1262, %v1692
      %v1694 = vpop.f32.mrb[0].mxu0
      %1695 = vmatprep.mubr.f32.mxu0 0.0
      %1696 = vmatmul.mubr.f32.gmra.mrb[0].mxu0 %v1368
      %v1697 = vpop.f32.mrb[0].mxu0
      %v1698 = vadd.f32 %v1262, %v1697
      %v1699 = vpop.f32.mrb[0].mxu0
      %1700 = vmatprep.mubr.f32.mxu0 0.0
      %1701 = vmatmul.mubr.f32.gmra.mrb[0].mxu0 %v1371
      %v1702 = vpop.f32.mrb[0].mxu0
      %v1703 = vadd.f32 %v1262, %v1702
      %v1704 = vpop.f32.mrb[0].mxu0
      %1705 = vmatprep.mubr.f32.mxu0 0.0
      %1706 = vmatmul.mubr.f32.gmra.mrb[0].mxu0 %v1374
      %v1707 = vpop.f32.mrb[0].mxu0
      %v1708 = vadd.f32 %v1262, %v1707
      %v1709 = vpop.f32.mrb[0].mxu0
      %1710 = vmatprep.mubr.f32.mxu0 0.0
      %1711 = vmatmul.mubr.f32.gmra.mrb[0].mxu0 %v1377
      %v1712 = vpop.f32.mrb[0].mxu0
      %v1713 = vadd.f32 %v1262, %v1712
      %v1714 = vpop.f32.mrb[0].mxu0
      %1715 = vmatprep.mubr.f32.mxu0 0.0
      %1716 = vmatmul.mubr.f32.gmra.mrb[0].mxu0 %v1380
      %v1717 = vpop.f32.mrb[0].mxu0
      %v1718 = vadd.f32 %v1262, %v1717
      %v1719 = vpop.f32.mrb[0].mxu0
      %1720 = vmatprep.mubr.f32.mxu0 0.0
      %1721 = vmatmul.mubr.f32.gmra.mrb[0].mxu0 %v1383
      %v1722 = vpop.f32.mrb[0].mxu0
      %v1723 = vadd.f32 %v1262, %v1722
      %v1724 = vpop.f32.mrb[0].mxu0
      %1725 = vmatprep.mubr.f32.mxu0 0.0
      %1726 = vmatmul.mubr.f32.gmra.mrb[0].mxu0 %v1386
      %v1727 = vpop.f32.mrb[0].mxu0
      %v1728 = vadd.f32 %v1262, %v1727
      %v1729 = vpop.f32.mrb[0].mxu0
      %1730 = vmatprep.mubr.f32.mxu0 0.0
      %1731 = vmatmul.mubr.f32.gmra.mrb[0].mxu0 %v1389
      %v1732 = vpop.f32.mrb[0].mxu0
      %v1733 = vadd.f32 %v1262, %v1732
      %v1734 = vpop.f32.mrb[0].mxu0
      %1735 = vmatprep.mubr.f32.mxu0 0.0
      %1736 = vmatmul.mubr.f32.gmra.mrb[0].mxu0 %v1392
      %v1737 = vpop.f32.mrb[0].mxu0
      %v1738 = vadd.f32 %v1262, %v1737
      %v1739 = vpop.f32.mrb[0].mxu0
      %1740 = vmatprep.mubr.f32.mxu0 0.0
      %1741 = vmatmul.mubr.f32.gmra.mrb[0].mxu0 %v1395
      %v1742 = vpop.f32.mrb[0].mxu0
      %v1743 = vadd.f32 %v1262, %v1742
      %v1744 = vpop.f32.mrb[0].mxu0
      %1745 = vmatprep.mubr.f32.mxu0 0.0
      %1746 = vmatmul.mubr.f32.gmra.mrb[0].mxu0 %v1398
      %v1747 = vpop.f32.mrb[0].mxu0
      %v1748 = vadd.f32 %v1262, %v1747
      %v1749 = vpop.f32.mrb[0].mxu0
      %1750 = vmatprep.mubr.f32.mxu0 0.0
      %1751 = vmatmul.mubr.f32.gmra.mrb[0].mxu0 %v1401
      %v1752 = vpop.f32.mrb[0].mxu0
      %v1753 = vadd.f32 %v1262, %v1752
      %v1754 = vpop.f32.mrb[0].mxu0
      %1755 = vmatprep.mubr.f32.mxu0 0.0
      %1756 = vmatmul.mubr.f32.gmra.mrb[0].mxu0 %v1404
      %v1757 = vpop.f32.mrb[0].mxu0
      %v1758 = vadd.f32 %v1262, %v1757
      %v1759 = vpop.f32.mrb[0].mxu0
      %1760 = vmatprep.mubr.f32.mxu0 0.0
      %1761 = vmatmul.mubr.f32.gmra.mrb[0].mxu0 %v1407
      %v1762 = vpop.f32.mrb[0].mxu0
      %v1763 = vadd.f32 %v1262, %v1762
      %v1764 = vpop.f32.mrb[0].mxu0
      %1765 = vmatprep.mubr.f32.mxu0 0.0
      %1766 = vmatmul.mubr.f32.gmra.mrb[0].mxu0 %v1410
      %v1767 = vpop.f32.mrb[0].mxu0
      %v1768 = vadd.f32 %v1262, %v1767
      %v1769 = vpop.f32.mrb[0].mxu0
      %1770 = vmatprep.mubr.f32.mxu0 0.0
      %1771 = vmatmul.mubr.f32.gmra.mrb[0].mxu0 %v1413
      %v1772 = vpop.f32.mrb[0].mxu0
      %v1773 = vadd.f32 %v1262, %v1772
      %v1774 = vpop.f32.mrb[0].mxu0
      %1775 = vmatprep.mubr.f32.mxu0 0.0
      %1776 = vmatmul.mubr.f32.gmra.mrb[0].mxu0 %v1416
      %v1777 = vpop.f32.mrb[0].mxu0
      %v1778 = vadd.f32 %v1262, %v1777
      %v1779 = vpop.f32.mrb[0].mxu0
      %1780 = vmatprep.mubr.f32.mxu0 0.0
      %1781 = vmatmul.mubr.f32.gmra.mrb[0].mxu0 %v1419
      %v1782 = vpop.f32.mrb[0].mxu0
      %v1783 = vadd.f32 %v1262, %v1782
      %v1784 = vpop.f32.mrb[0].mxu0
      %1785 = vmatprep.mubr.f32.mxu0 0.0
      %1786 = vmatmul.mubr.f32.gmra.mrb[0].mxu0 %v1422
      %v1787 = vpop.f32.mrb[0].mxu0
      %v1788 = vadd.f32 %v1262, %v1787
      %v1789 = vpop.f32.mrb[0].mxu0
      %1790 = vmatprep.mubr.f32.mxu0 0.0
      %1791 = vmatmul.mubr.f32.gmra.mrb[0].mxu0 %v1425
      %v1792 = vpop.f32.mrb[0].mxu0
      %v1793 = vadd.f32 %v1262, %v1792
      %v1794 = vpop.f32.mrb[0].mxu0
      %1795 = vmatprep.mubr.f32.mxu0 0.0
      %1796 = vmatmul.mubr.f32.gmra.mrb[0].mxu0 %v1428
      %v1797 = vpop.f32.mrb[0].mxu0
      %v1798 = vadd.f32 %v1262, %v1797
      %v1799 = vpop.f32.mrb[0].mxu0
      %1800 = vmatprep.mubr.f32.mxu0 0.0
      %1801 = vmatmul.mubr.f32.gmra.mrb[0].mxu0 %v1431
      %v1802 = vpop.f32.mrb[0].mxu0
      %v1803 = vadd.f32 %v1262, %v1802
      %v1804 = vpop.f32.mrb[0].mxu0
      %1805 = vmatprep.mubr.f32.mxu0 0.0
      %1806 = vmatmul.mubr.f32.gmra.mrb[0].mxu0 %v1434
      %v1807 = vpop.f32.mrb[0].mxu0
      %v1808 = vadd.f32 %v1262, %v1807
      %v1809 = vpop.f32.mrb[0].mxu0
      %1810 = vmatprep.mubr.f32.mxu0 0.0
      %1811 = vmatmul.mubr.f32.gmra.mrb[0].mxu0 %v1437
      %v1812 = vpop.f32.mrb[0].mxu0
      %v1813 = vadd.f32 %v1262, %v1812
      %v1814 = vpop.f32.mrb[0].mxu0
      %1815 = vmatprep.mubr.f32.mxu0 0.0
      %1816 = vmatmul.mubr.f32.gmra.mrb[0].mxu0 %v1440
      %v1817 = vpop.f32.mrb[0].mxu0
      %v1818 = vadd.f32 %v1262, %v1817
      %v1819 = vpop.f32.mrb[0].mxu0
      %1820 = vmatprep.mubr.f32.mxu0 0.0
      %1821 = vmatmul.mubr.f32.gmra.mrb[0].mxu0 %v1443
      %v1822 = vpop.f32.mrb[0].mxu0
      %v1823 = vadd.f32 %v1262, %v1822
      %v1824 = vpop.f32.mrb[0].mxu0
      %1825 = vmatprep.mubr.f32.mxu0 0.0
      %1826 = vmatmul.mubr.f32.gmra.mrb[0].mxu0 %v1446
      %v1827 = vpop.f32.mrb[0].mxu0
      %v1828 = vadd.f32 %v1262, %v1827
      %v1829 = vpop.f32.mrb[0].mxu0
      %1830 = vmatprep.mubr.f32.mxu0 0.0
      %1831 = vmatmul.mubr.f32.gmra.mrb[0].mxu0 %v1449
      %v1832 = vpop.f32.mrb[0].mxu0
      %v1833 = vadd.f32 %v1262, %v1832
      %v1834 = vpop.f32.mrb[0].mxu0
      %1835 = vmatprep.mubr.f32.mxu0 0.0
      %1836 = vmatmul.mubr.f32.gmra.mrb[0].mxu0 %v1452
      %v1837 = vpop.f32.mrb[0].mxu0
      %v1838 = vadd.f32 %v1262, %v1837
      %v1839 = vpop.f32.mrb[0].mxu0
      %1840 = vmatprep.mubr.f32.mxu0 0.0
      %1841 = vmatmul.mubr.f32.gmra.mrb[0].mxu0 %v1455
      %v1842 = vpop.f32.mrb[0].mxu0
      %v1843 = vadd.f32 %v1262, %v1842
      %v1844 = vpop.f32.mrb[0].mxu0
      %1845 = vdwg.mxu0
      %v1846 = vsub.f32 0.0, %v1528
      %v1847 = vsub.f32 0.0, %v1533
      %v1848 = vsub.f32 0.0, %v1538
      %v1849 = vsub.f32 0.0, %v1543
      %v1850 = vsub.f32 0.0, %v1548
      %v1851 = vsub.f32 0.0, %v1553
      %v1852 = vsub.f32 0.0, %v1558
      %v1853 = vsub.f32 0.0, %v1563
      %v1854 = vsub.f32 0.0, %v1568
      %v1855 = vsub.f32 0.0, %v1573
      %v1856 = vsub.f32 0.0, %v1578
      %v1857 = vsub.f32 0.0, %v1583
      %v1858 = vsub.f32 0.0, %v1588
      %v1859 = vsub.f32 0.0, %v1593
      %v1860 = vsub.f32 0.0, %v1598
      %v1861 = vsub.f32 0.0, %v1603
      %v1862 = vsub.f32 0.0, %v1608
      %v1863 = vsub.f32 0.0, %v1613
      %v1864 = vsub.f32 0.0, %v1618
      %v1865 = vsub.f32 0.0, %v1623
      %v1866 = vsub.f32 0.0, %v1628
      %v1867 = vsub.f32 0.0, %v1633
      %v1868 = vsub.f32 0.0, %v1638
      %v1869 = vsub.f32 0.0, %v1643
      %v1870 = vsub.f32 0.0, %v1648
      %v1871 = vsub.f32 0.0, %v1653
      %v1872 = vsub.f32 0.0, %v1658
      %v1873 = vsub.f32 0.0, %v1663
      %v1874 = vsub.f32 0.0, %v1668
      %v1875 = vsub.f32 0.0, %v1673
      %v1876 = vsub.f32 0.0, %v1678
      %v1877 = vsub.f32 0.0, %v1683
      %v1878 = vsub.f32 0.0, %v1688
      %v1879 = vsub.f32 0.0, %v1693
      %v1880 = vsub.f32 0.0, %v1698
      %v1881 = vsub.f32 0.0, %v1703
      %v1882 = vsub.f32 0.0, %v1708
      %v1883 = vsub.f32 0.0, %v1713
      %v1884 = vsub.f32 0.0, %v1718
      %v1885 = vsub.f32 0.0, %v1723
      %v1886 = vsub.f32 0.0, %v1728
      %v1887 = vsub.f32 0.0, %v1733
      %v1888 = vsub.f32 0.0, %v1738
      %v1889 = vsub.f32 0.0, %v1743
      %v1890 = vsub.f32 0.0, %v1748
      %v1891 = vsub.f32 0.0, %v1753
      %v1892 = vsub.f32 0.0, %v1758
      %v1893 = vsub.f32 0.0, %v1763
      %v1894 = vsub.f32 0.0, %v1768
      %v1895 = vsub.f32 0.0, %v1773
      %v1896 = vsub.f32 0.0, %v1778
      %v1897 = vsub.f32 0.0, %v1783
      %v1898 = vsub.f32 0.0, %v1788
      %v1899 = vsub.f32 0.0, %v1793
      %v1900 = vsub.f32 0.0, %v1798
      %v1901 = vsub.f32 0.0, %v1803
      %v1902 = vsub.f32 0.0, %v1808
      %v1903 = vsub.f32 0.0, %v1813
      %v1904 = vsub.f32 0.0, %v1818
      %v1905 = vsub.f32 0.0, %v1823
      %v1906 = vsub.f32 0.0, %v1828
      %v1907 = vsub.f32 0.0, %v1833
      %v1908 = vsub.f32 0.0, %v1838
      %v1909 = vsub.f32 0.0, %v1843
      %v1910 = vmul.f32 %v1846, 1.442695
      %v1911 = vpow.pop %v1910
      %v1912 = vmul.f32 %v1847, 1.442695
      %v1913 = vpow.pop %v1912
      %v1914 = vmul.f32 %v1848, 1.442695
      %v1915 = vpow.pop %v1914
      %v1916 = vmul.f32 %v1849, 1.442695
      %v1917 = vpow.pop %v1916
      %v1918 = vmul.f32 %v1850, 1.442695
      %v1919 = vpow.pop %v1918
      %v1920 = vmul.f32 %v1851, 1.442695
      %v1921 = vpow.pop %v1920
      %v1922 = vmul.f32 %v1852, 1.442695
      %v1923 = vpow.pop %v1922
      %v1924 = vmul.f32 %v1853, 1.442695
      %v1925 = vpow.pop %v1924
      %v1926 = vmul.f32 %v1854, 1.442695
      %v1927 = vpow.pop %v1926
      %v1928 = vmul.f32 %v1855, 1.442695
      %v1929 = vpow.pop %v1928
      %v1930 = vmul.f32 %v1856, 1.442695
      %v1931 = vpow.pop %v1930
      %v1932 = vmul.f32 %v1857, 1.442695
      %v1933 = vpow.pop %v1932
      %v1934 = vmul.f32 %v1858, 1.442695
      %v1935 = vpow.pop %v1934
      %v1936 = vmul.f32 %v1859, 1.442695
      %v1937 = vpow.pop %v1936
      %v1938 = vmul.f32 %v1860, 1.442695
      %v1939 = vpow.pop %v1938
      %v1940 = vmul.f32 %v1861, 1.442695
      %v1941 = vpow.pop %v1940
      %v1942 = vmul.f32 %v1862, 1.442695
      %v1943 = vpow.pop %v1942
      %v1944 = vmul.f32 %v1863, 1.442695
      %v1945 = vpow.pop %v1944
      %v1946 = vmul.f32 %v1864, 1.442695
      %v1947 = vpow.pop %v1946
      %v1948 = vmul.f32 %v1865, 1.442695
      %v1949 = vpow.pop %v1948
      %v1950 = vmul.f32 %v1866, 1.442695
      %v1951 = vpow.pop %v1950
      %v1952 = vmul.f32 %v1867, 1.442695
      %v1953 = vpow.pop %v1952
      %v1954 = vmul.f32 %v1868, 1.442695
      %v1955 = vpow.pop %v1954
      %v1956 = vmul.f32 %v1869, 1.442695
      %v1957 = vpow.pop %v1956
      %v1958 = vmul.f32 %v1870, 1.442695
      %v1959 = vpow.pop %v1958
      %v1960 = vmul.f32 %v1871, 1.442695
      %v1961 = vpow.pop %v1960
      %v1962 = vmul.f32 %v1872, 1.442695
      %v1963 = vpow.pop %v1962
      %v1964 = vmul.f32 %v1873, 1.442695
      %v1965 = vpow.pop %v1964
      %v1966 = vmul.f32 %v1874, 1.442695
      %v1967 = vpow.pop %v1966
      %v1968 = vmul.f32 %v1875, 1.442695
      %v1969 = vpow.pop %v1968
      %v1970 = vmul.f32 %v1876, 1.442695
      %v1971 = vpow.pop %v1970
      %v1972 = vmul.f32 %v1877, 1.442695
      %v1973 = vpow.pop %v1972
      %v1974 = vmul.f32 %v1878, 1.442695
      %v1975 = vpow.pop %v1974
      %v1976 = vmul.f32 %v1879, 1.442695
      %v1977 = vpow.pop %v1976
      %v1978 = vmul.f32 %v1880, 1.442695
      %v1979 = vpow.pop %v1978
      %v1980 = vmul.f32 %v1881, 1.442695
      %v1981 = vpow.pop %v1980
      %v1982 = vmul.f32 %v1882, 1.442695
      %v1983 = vpow.pop %v1982
      %v1984 = vmul.f32 %v1883, 1.442695
      %v1985 = vpow.pop %v1984
      %v1986 = vmul.f32 %v1884, 1.442695
      %v1987 = vpow.pop %v1986
      %v1988 = vmul.f32 %v1885, 1.442695
      %v1989 = vpow.pop %v1988
      %v1990 = vmul.f32 %v1886, 1.442695
      %v1991 = vpow.pop %v1990
      %v1992 = vmul.f32 %v1887, 1.442695
      %v1993 = vpow.pop %v1992
      %v1994 = vmul.f32 %v1888, 1.442695
      %v1995 = vpow.pop %v1994
      %v1996 = vmul.f32 %v1889, 1.442695
      %v1997 = vpow.pop %v1996
      %v1998 = vmul.f32 %v1890, 1.442695
      %v1999 = vpow.pop %v1998
      %v2000 = vmul.f32 %v1891, 1.442695
      %v2001 = vpow.pop %v2000
      %v2002 = vmul.f32 %v1892, 1.442695
      %v2003 = vpow.pop %v2002
      %v2004 = vmul.f32 %v1893, 1.442695
      %v2005 = vpow.pop %v2004
      %v2006 = vmul.f32 %v1894, 1.442695
      %v2007 = vpow.pop %v2006
      %v2008 = vmul.f32 %v1895, 1.442695
      %v2009 = vpow.pop %v2008
      %v2010 = vmul.f32 %v1896, 1.442695
      %v2011 = vpow.pop %v2010
      %v2012 = vmul.f32 %v1897, 1.442695
      %v2013 = vpow.pop %v2012
      %v2014 = vmul.f32 %v1898, 1.442695
      %v2015 = vpow.pop %v2014
      %v2016 = vmul.f32 %v1899, 1.442695
      %v2017 = vpow.pop %v2016
      %v2018 = vmul.f32 %v1900, 1.442695
      %v2019 = vpow.pop %v2018
      %v2020 = vmul.f32 %v1901, 1.442695
      %v2021 = vpow.pop %v2020
      %v2022 = vmul.f32 %v1902, 1.442695
      %v2023 = vpow.pop %v2022
      %v2024 = vmul.f32 %v1903, 1.442695
      %v2025 = vpow.pop %v2024
      %v2026 = vmul.f32 %v1904, 1.442695
      %v2027 = vpow.pop %v2026
      %v2028 = vmul.f32 %v1905, 1.442695
      %v2029 = vpow.pop %v2028
      %v2030 = vmul.f32 %v1906, 1.442695
      %v2031 = vpow.pop %v2030
      %v2032 = vmul.f32 %v1907, 1.442695
      %v2033 = vpow.pop %v2032
      %v2034 = vmul.f32 %v1908, 1.442695
      %v2035 = vpow.pop %v2034
      %v2036 = vmul.f32 %v1909, 1.442695
      %v2037 = vpow.pop %v2036
      %v2038 = vadd.f32 %v1911, 1.0
      %v2039 = vadd.f32 %v1913, 1.0
      %v2040 = vadd.f32 %v1915, 1.0
      %v2041 = vadd.f32 %v1917, 1.0
      %v2042 = vadd.f32 %v1919, 1.0
      %v2043 = vadd.f32 %v1921, 1.0
      %v2044 = vadd.f32 %v1923, 1.0
      %v2045 = vadd.f32 %v1925, 1.0
      %v2046 = vadd.f32 %v1927, 1.0
      %v2047 = vadd.f32 %v1929, 1.0
      %v2048 = vadd.f32 %v1931, 1.0
      %v2049 = vadd.f32 %v1933, 1.0
      %v2050 = vadd.f32 %v1935, 1.0
      %v2051 = vadd.f32 %v1937, 1.0
      %v2052 = vadd.f32 %v1939, 1.0
      %v2053 = vadd.f32 %v1941, 1.0
      %v2054 = vadd.f32 %v1943, 1.0
      %v2055 = vadd.f32 %v1945, 1.0
      %v2056 = vadd.f32 %v1947, 1.0
      %v2057 = vadd.f32 %v1949, 1.0
      %v2058 = vadd.f32 %v1951, 1.0
      %v2059 = vadd.f32 %v1953, 1.0
      %v2060 = vadd.f32 %v1955, 1.0
      %v2061 = vadd.f32 %v1957, 1.0
      %v2062 = vadd.f32 %v1959, 1.0
      %v2063 = vadd.f32 %v1961, 1.0
      %v2064 = vadd.f32 %v1963, 1.0
      %v2065 = vadd.f32 %v1965, 1.0
      %v2066 = vadd.f32 %v1967, 1.0
      %v2067 = vadd.f32 %v1969, 1.0
      %v2068 = vadd.f32 %v1971, 1.0
      %v2069 = vadd.f32 %v1973, 1.0
      %v2070 = vadd.f32 %v1975, 1.0
      %v2071 = vadd.f32 %v1977, 1.0
      %v2072 = vadd.f32 %v1979, 1.0
      %v2073 = vadd.f32 %v1981, 1.0
      %v2074 = vadd.f32 %v1983, 1.0
      %v2075 = vadd.f32 %v1985, 1.0
      %v2076 = vadd.f32 %v1987, 1.0
      %v2077 = vadd.f32 %v1989, 1.0
      %v2078 = vadd.f32 %v1991, 1.0
      %v2079 = vadd.f32 %v1993, 1.0
      %v2080 = vadd.f32 %v1995, 1.0
      %v2081 = vadd.f32 %v1997, 1.0
      %v2082 = vadd.f32 %v1999, 1.0
      %v2083 = vadd.f32 %v2001, 1.0
      %v2084 = vadd.f32 %v2003, 1.0
      %v2085 = vadd.f32 %v2005, 1.0
      %v2086 = vadd.f32 %v2007, 1.0
      %v2087 = vadd.f32 %v2009, 1.0
      %v2088 = vadd.f32 %v2011, 1.0
      %v2089 = vadd.f32 %v2013, 1.0
      %v2090 = vadd.f32 %v2015, 1.0
      %v2091 = vadd.f32 %v2017, 1.0
      %v2092 = vadd.f32 %v2019, 1.0
      %v2093 = vadd.f32 %v2021, 1.0
      %v2094 = vadd.f32 %v2023, 1.0
      %v2095 = vadd.f32 %v2025, 1.0
      %v2096 = vadd.f32 %v2027, 1.0
      %v2097 = vadd.f32 %v2029, 1.0
      %v2098 = vadd.f32 %v2031, 1.0
      %v2099 = vadd.f32 %v2033, 1.0
      %v2100 = vadd.f32 %v2035, 1.0
      %v2101 = vadd.f32 %v2037, 1.0
      %v2102 = vrcp.pop %v2038
      %v2103 = vrcp.pop %v2039
      %v2104 = vrcp.pop %v2040
      %v2105 = vrcp.pop %v2041
      %v2106 = vrcp.pop %v2042
      %v2107 = vrcp.pop %v2043
      %v2108 = vrcp.pop %v2044
      %v2109 = vrcp.pop %v2045
      %v2110 = vrcp.pop %v2046
      %v2111 = vrcp.pop %v2047
      %v2112 = vrcp.pop %v2048
      %v2113 = vrcp.pop %v2049
      %v2114 = vrcp.pop %v2050
      %v2115 = vrcp.pop %v2051
      %v2116 = vrcp.pop %v2052
      %v2117 = vrcp.pop %v2053
      %v2118 = vrcp.pop %v2054
      %v2119 = vrcp.pop %v2055
      %v2120 = vrcp.pop %v2056
      %v2121 = vrcp.pop %v2057
      %v2122 = vrcp.pop %v2058
      %v2123 = vrcp.pop %v2059
      %v2124 = vrcp.pop %v2060
      %v2125 = vrcp.pop %v2061
      %v2126 = vrcp.pop %v2062
      %v2127 = vrcp.pop %v2063
      %v2128 = vrcp.pop %v2064
      %v2129 = vrcp.pop %v2065
      %v2130 = vrcp.pop %v2066
      %v2131 = vrcp.pop %v2067
      %v2132 = vrcp.pop %v2068
      %v2133 = vrcp.pop %v2069
      %v2134 = vrcp.pop %v2070
      %v2135 = vrcp.pop %v2071
      %v2136 = vrcp.pop %v2072
      %v2137 = vrcp.pop %v2073
      %v2138 = vrcp.pop %v2074
      %v2139 = vrcp.pop %v2075
      %v2140 = vrcp.pop %v2076
      %v2141 = vrcp.pop %v2077
      %v2142 = vrcp.pop %v2078
      %v2143 = vrcp.pop %v2079
      %v2144 = vrcp.pop %v2080
      %v2145 = vrcp.pop %v2081
      %v2146 = vrcp.pop %v2082
      %v2147 = vrcp.pop %v2083
      %v2148 = vrcp.pop %v2084
      %v2149 = vrcp.pop %v2085
      %v2150 = vrcp.pop %v2086
      %v2151 = vrcp.pop %v2087
      %v2152 = vrcp.pop %v2088
      %v2153 = vrcp.pop %v2089
      %v2154 = vrcp.pop %v2090
      %v2155 = vrcp.pop %v2091
      %v2156 = vrcp.pop %v2092
      %v2157 = vrcp.pop %v2093
      %v2158 = vrcp.pop %v2094
      %v2159 = vrcp.pop %v2095
      %v2160 = vrcp.pop %v2096
      %v2161 = vrcp.pop %v2097
      %v2162 = vrcp.pop %v2098
      %v2163 = vrcp.pop %v2099
      %v2164 = vrcp.pop %v2100
      %v2165 = vrcp.pop %v2101
      %v2166 = vld [vmem:[%s5] sm:$0xf]
      %v2167 = vld [vmem:[%s6] sm:$0x1]
      %v2169 = vlaneseq
      %v2170 = vshrl.u32 %v2169, 7
      %v2171 = vsub.s32 0, %v2170
      %v2172 = vrot.slane %v2167, %v2171
      %v2175 = vsel %vm1264, %v2102, 0
      %v2178 = vsel %vm1264, %v2103, 0
      %v2181 = vsel %vm1264, %v2104, 0
      %v2184 = vsel %vm1264, %v2105, 0
      %v2187 = vsel %vm1264, %v2106, 0
      %v2190 = vsel %vm1264, %v2107, 0
      %v2193 = vsel %vm1264, %v2108, 0
      %v2196 = vsel %vm1264, %v2109, 0
      %v2199 = vsel %vm1264, %v2110, 0
      %v2202 = vsel %vm1264, %v2111, 0
      %v2205 = vsel %vm1264, %v2112, 0
      %v2208 = vsel %vm1264, %v2113, 0
      %v2211 = vsel %vm1264, %v2114, 0
      %v2214 = vsel %vm1264, %v2115, 0
      %v2217 = vsel %vm1264, %v2116, 0
      %v2220 = vsel %vm1264, %v2117, 0
      %v2223 = vsel %vm1264, %v2118, 0
      %v2226 = vsel %vm1264, %v2119, 0
      %v2229 = vsel %vm1264, %v2120, 0
      %v2232 = vsel %vm1264, %v2121, 0
      %v2235 = vsel %vm1264, %v2122, 0
      %v2238 = vsel %vm1264, %v2123, 0
      %v2241 = vsel %vm1264, %v2124, 0
      %v2244 = vsel %vm1264, %v2125, 0
      %v2247 = vsel %vm1264, %v2126, 0
      %v2250 = vsel %vm1264, %v2127, 0
      %v2253 = vsel %vm1264, %v2128, 0
      %v2256 = vsel %vm1264, %v2129, 0
      %v2259 = vsel %vm1264, %v2130, 0
      %v2262 = vsel %vm1264, %v2131, 0
      %v2265 = vsel %vm1264, %v2132, 0
      %v2268 = vsel %vm1264, %v2133, 0
      %v2271 = vsel %vm1264, %v2134, 0
      %v2274 = vsel %vm1264, %v2135, 0
      %v2277 = vsel %vm1264, %v2136, 0
      %v2280 = vsel %vm1264, %v2137, 0
      %v2283 = vsel %vm1264, %v2138, 0
      %v2286 = vsel %vm1264, %v2139, 0
      %v2289 = vsel %vm1264, %v2140, 0
      %v2292 = vsel %vm1264, %v2141, 0
      %v2295 = vsel %vm1264, %v2142, 0
      %v2298 = vsel %vm1264, %v2143, 0
      %v2301 = vsel %vm1264, %v2144, 0
      %v2304 = vsel %vm1264, %v2145, 0
      %v2307 = vsel %vm1264, %v2146, 0
      %v2310 = vsel %vm1264, %v2147, 0
      %v2313 = vsel %vm1264, %v2148, 0
      %v2316 = vsel %vm1264, %v2149, 0
      %v2319 = vsel %vm1264, %v2150, 0
      %v2322 = vsel %vm1264, %v2151, 0
      %v2325 = vsel %vm1264, %v2152, 0
      %v2328 = vsel %vm1264, %v2153, 0
      %v2331 = vsel %vm1264, %v2154, 0
      %v2334 = vsel %vm1264, %v2155, 0
      %v2337 = vsel %vm1264, %v2156, 0
      %v2340 = vsel %vm1264, %v2157, 0
      %v2343 = vsel %vm1264, %v2158, 0
      %v2346 = vsel %vm1264, %v2159, 0
      %v2349 = vsel %vm1264, %v2160, 0
      %v2352 = vsel %vm1264, %v2161, 0
      %v2355 = vsel %vm1264, %v2162, 0
      %v2358 = vsel %vm1264, %v2163, 0
      %v2361 = vsel %vm1264, %v2164, 0
      %v2364 = vsel %vm1264, %v2165, 0
      %v2367 = vsel %vm1457, %v2166, 0
      %2369 = vmatprep.subr.mxu0 0.0
      %2370 = vmatpush1.msra.mxu0 %v2367
      %2371 = vmatprep.subr.mxu0 0.0
      %2372 = vmatpush1.msra.mxu0 0.0
      %2373 = vmatprep.subr.mxu0 0.0
      %2374 = vmatpush1.msra.mxu0 0.0
      %2375 = vmatprep.subr.mxu0 0.0
      %2376 = vmatpush1.msra.mxu0 0.0
      %2377 = vmatprep.subr.mxu0 0.0
      %2378 = vmatpush1.msra.mxu0 0.0
      %2379 = vmatprep.subr.mxu0 0.0
      %2380 = vmatpush1.msra.mxu0 0.0
      %2381 = vmatprep.subr.mxu0 0.0
      %2382 = vmatpush1.msra.mxu0 0.0
      %2383 = vmatprep.subr.mxu0 0.0
      %2384 = vmatpush1.msra.mxu0 0.0
      %2385 = vmatprep.subr.mxu0 0.0
      %2386 = vmatpush1.msra.mxu0 0.0
      %2387 = vmatprep.subr.mxu0 0.0
      %2388 = vmatpush1.msra.mxu0 0.0
      %2389 = vmatprep.subr.mxu0 0.0
      %2390 = vmatpush1.msra.mxu0 0.0
      %2391 = vmatprep.subr.mxu0 0.0
      %2392 = vmatpush1.msra.mxu0 0.0
      %2393 = vmatprep.subr.mxu0 0.0
      %2394 = vmatpush1.msra.mxu0 0.0
      %2395 = vmatprep.subr.mxu0 0.0
      %2396 = vmatpush1.msra.mxu0 0.0
      %2397 = vmatprep.subr.mxu0 0.0
      %2398 = vmatpush1.msra.mxu0 0.0
      %2399 = vmatprep.subr.mxu0 0.0
      %2400 = vmatpush1.msra.mxu0 0.0
      %2401 = vmatprep.subr.mxu0 0.0
      %2402 = vmatpush1.msra.mxu0 0.0
      %2403 = vmatprep.subr.mxu0 0.0
      %2404 = vmatpush1.msra.mxu0 0.0
      %2405 = vmatprep.subr.mxu0 0.0
      %2406 = vmatpush1.msra.mxu0 0.0
      %2407 = vmatprep.subr.mxu0 0.0
      %2408 = vmatpush1.msra.mxu0 0.0
      %2409 = vmatprep.subr.mxu0 0.0
      %2410 = vmatpush1.msra.mxu0 0.0
      %2411 = vmatprep.subr.mxu0 0.0
      %2412 = vmatpush1.msra.mxu0 0.0
      %2413 = vmatprep.subr.mxu0 0.0
      %2414 = vmatpush1.msra.mxu0 0.0
      %2415 = vmatprep.subr.mxu0 0.0
      %2416 = vmatpush1.msra.mxu0 0.0
      %2417 = vmatprep.subr.mxu0 0.0
      %2418 = vmatpush1.msra.mxu0 0.0
      %2419 = vmatprep.subr.mxu0 0.0
      %2420 = vmatpush1.msra.mxu0 0.0
      %2421 = vmatprep.subr.mxu0 0.0
      %2422 = vmatpush1.msra.mxu0 0.0
      %2423 = vmatprep.subr.mxu0 0.0
      %2424 = vmatpush1.msra.mxu0 0.0
      %2425 = vmatprep.subr.mxu0 0.0
      %2426 = vmatpush1.msra.mxu0 0.0
      %2427 = vmatprep.subr.mxu0 0.0
      %2428 = vmatpush1.msra.mxu0 0.0
      %2429 = vmatprep.subr.mxu0 0.0
      %2430 = vmatpush1.msra.mxu0 0.0
      %2431 = vmatprep.subr.mxu0 0.0
      %2432 = vmatpush1.msra.mxu0 0.0
      %2433 = vmatprep.mubr.f32.mxu0 0.0
      %2434 = vmatmul.mubr.f32.gmra.mrb[0].mxu0 %v2175
      %v2435 = vpop.f32.mrb[0].mxu0
      %v2436 = vadd.f32 %v2172, %v2435
      %v2437 = vpop.f32.mrb[0].mxu0
      %2438 = vmatprep.mubr.f32.mxu0 0.0
      %2439 = vmatmul.mubr.f32.gmra.mrb[0].mxu0 %v2178
      %v2440 = vpop.f32.mrb[0].mxu0
      %v2441 = vadd.f32 %v2172, %v2440
      %v2442 = vpop.f32.mrb[0].mxu0
      %2443 = vmatprep.mubr.f32.mxu0 0.0
      %2444 = vmatmul.mubr.f32.gmra.mrb[0].mxu0 %v2181
      %v2445 = vpop.f32.mrb[0].mxu0
      %v2446 = vadd.f32 %v2172, %v2445
      %v2447 = vpop.f32.mrb[0].mxu0
      %2448 = vmatprep.mubr.f32.mxu0 0.0
      %2449 = vmatmul.mubr.f32.gmra.mrb[0].mxu0 %v2184
      %v2450 = vpop.f32.mrb[0].mxu0
      %v2451 = vadd.f32 %v2172, %v2450
      %v2452 = vpop.f32.mrb[0].mxu0
      %2453 = vmatprep.mubr.f32.mxu0 0.0
      %2454 = vmatmul.mubr.f32.gmra.mrb[0].mxu0 %v2187
      %v2455 = vpop.f32.mrb[0].mxu0
      %v2456 = vadd.f32 %v2172, %v2455
      %v2457 = vpop.f32.mrb[0].mxu0
      %2458 = vmatprep.mubr.f32.mxu0 0.0
      %2459 = vmatmul.mubr.f32.gmra.mrb[0].mxu0 %v2190
      %v2460 = vpop.f32.mrb[0].mxu0
      %v2461 = vadd.f32 %v2172, %v2460
      %v2462 = vpop.f32.mrb[0].mxu0
      %2463 = vmatprep.mubr.f32.mxu0 0.0
      %2464 = vmatmul.mubr.f32.gmra.mrb[0].mxu0 %v2193
      %v2465 = vpop.f32.mrb[0].mxu0
      %v2466 = vadd.f32 %v2172, %v2465
      %v2467 = vpop.f32.mrb[0].mxu0
      %2468 = vmatprep.mubr.f32.mxu0 0.0
      %2469 = vmatmul.mubr.f32.gmra.mrb[0].mxu0 %v2196
      %v2470 = vpop.f32.mrb[0].mxu0
      %v2471 = vadd.f32 %v2172, %v2470
      %v2472 = vpop.f32.mrb[0].mxu0
      %2473 = vmatprep.mubr.f32.mxu0 0.0
      %2474 = vmatmul.mubr.f32.gmra.mrb[0].mxu0 %v2199
      %v2475 = vpop.f32.mrb[0].mxu0
      %v2476 = vadd.f32 %v2172, %v2475
      %v2477 = vpop.f32.mrb[0].mxu0
      %2478 = vmatprep.mubr.f32.mxu0 0.0
      %2479 = vmatmul.mubr.f32.gmra.mrb[0].mxu0 %v2202
      %v2480 = vpop.f32.mrb[0].mxu0
      %v2481 = vadd.f32 %v2172, %v2480
      %v2482 = vpop.f32.mrb[0].mxu0
      %2483 = vmatprep.mubr.f32.mxu0 0.0
      %2484 = vmatmul.mubr.f32.gmra.mrb[0].mxu0 %v2205
      %v2485 = vpop.f32.mrb[0].mxu0
      %v2486 = vadd.f32 %v2172, %v2485
      %v2487 = vpop.f32.mrb[0].mxu0
      %2488 = vmatprep.mubr.f32.mxu0 0.0
      %2489 = vmatmul.mubr.f32.gmra.mrb[0].mxu0 %v2208
      %v2490 = vpop.f32.mrb[0].mxu0
      %v2491 = vadd.f32 %v2172, %v2490
      %v2492 = vpop.f32.mrb[0].mxu0
      %2493 = vmatprep.mubr.f32.mxu0 0.0
      %2494 = vmatmul.mubr.f32.gmra.mrb[0].mxu0 %v2211
      %v2495 = vpop.f32.mrb[0].mxu0
      %v2496 = vadd.f32 %v2172, %v2495
      %v2497 = vpop.f32.mrb[0].mxu0
      %2498 = vmatprep.mubr.f32.mxu0 0.0
      %2499 = vmatmul.mubr.f32.gmra.mrb[0].mxu0 %v2214
      %v2500 = vpop.f32.mrb[0].mxu0
      %v2501 = vadd.f32 %v2172, %v2500
      %v2502 = vpop.f32.mrb[0].mxu0
      %2503 = vmatprep.mubr.f32.mxu0 0.0
      %2504 = vmatmul.mubr.f32.gmra.mrb[0].mxu0 %v2217
      %v2505 = vpop.f32.mrb[0].mxu0
      %v2506 = vadd.f32 %v2172, %v2505
      %v2507 = vpop.f32.mrb[0].mxu0
      %2508 = vmatprep.mubr.f32.mxu0 0.0
      %2509 = vmatmul.mubr.f32.gmra.mrb[0].mxu0 %v2220
      %v2510 = vpop.f32.mrb[0].mxu0
      %v2511 = vadd.f32 %v2172, %v2510
      %v2512 = vpop.f32.mrb[0].mxu0
      %2513 = vmatprep.mubr.f32.mxu0 0.0
      %2514 = vmatmul.mubr.f32.gmra.mrb[0].mxu0 %v2223
      %v2515 = vpop.f32.mrb[0].mxu0
      %v2516 = vadd.f32 %v2172, %v2515
      %v2517 = vpop.f32.mrb[0].mxu0
      %2518 = vmatprep.mubr.f32.mxu0 0.0
      %2519 = vmatmul.mubr.f32.gmra.mrb[0].mxu0 %v2226
      %v2520 = vpop.f32.mrb[0].mxu0
      %v2521 = vadd.f32 %v2172, %v2520
      %v2522 = vpop.f32.mrb[0].mxu0
      %2523 = vmatprep.mubr.f32.mxu0 0.0
      %2524 = vmatmul.mubr.f32.gmra.mrb[0].mxu0 %v2229
      %v2525 = vpop.f32.mrb[0].mxu0
      %v2526 = vadd.f32 %v2172, %v2525
      %v2527 = vpop.f32.mrb[0].mxu0
      %2528 = vmatprep.mubr.f32.mxu0 0.0
      %2529 = vmatmul.mubr.f32.gmra.mrb[0].mxu0 %v2232
      %v2530 = vpop.f32.mrb[0].mxu0
      %v2531 = vadd.f32 %v2172, %v2530
      %v2532 = vpop.f32.mrb[0].mxu0
      %2533 = vmatprep.mubr.f32.mxu0 0.0
      %2534 = vmatmul.mubr.f32.gmra.mrb[0].mxu0 %v2235
      %v2535 = vpop.f32.mrb[0].mxu0
      %v2536 = vadd.f32 %v2172, %v2535
      %v2537 = vpop.f32.mrb[0].mxu0
      %2538 = vmatprep.mubr.f32.mxu0 0.0
      %2539 = vmatmul.mubr.f32.gmra.mrb[0].mxu0 %v2238
      %v2540 = vpop.f32.mrb[0].mxu0
      %v2541 = vadd.f32 %v2172, %v2540
      %v2542 = vpop.f32.mrb[0].mxu0
      %2543 = vmatprep.mubr.f32.mxu0 0.0
      %2544 = vmatmul.mubr.f32.gmra.mrb[0].mxu0 %v2241
      %v2545 = vpop.f32.mrb[0].mxu0
      %v2546 = vadd.f32 %v2172, %v2545
      %v2547 = vpop.f32.mrb[0].mxu0
      %2548 = vmatprep.mubr.f32.mxu0 0.0
      %2549 = vmatmul.mubr.f32.gmra.mrb[0].mxu0 %v2244
      %v2550 = vpop.f32.mrb[0].mxu0
      %v2551 = vadd.f32 %v2172, %v2550
      %v2552 = vpop.f32.mrb[0].mxu0
      %2553 = vmatprep.mubr.f32.mxu0 0.0
      %2554 = vmatmul.mubr.f32.gmra.mrb[0].mxu0 %v2247
      %v2555 = vpop.f32.mrb[0].mxu0
      %v2556 = vadd.f32 %v2172, %v2555
      %v2557 = vpop.f32.mrb[0].mxu0
      %2558 = vmatprep.mubr.f32.mxu0 0.0
      %2559 = vmatmul.mubr.f32.gmra.mrb[0].mxu0 %v2250
      %v2560 = vpop.f32.mrb[0].mxu0
      %v2561 = vadd.f32 %v2172, %v2560
      %v2562 = vpop.f32.mrb[0].mxu0
      %2563 = vmatprep.mubr.f32.mxu0 0.0
      %2564 = vmatmul.mubr.f32.gmra.mrb[0].mxu0 %v2253
      %v2565 = vpop.f32.mrb[0].mxu0
      %v2566 = vadd.f32 %v2172, %v2565
      %v2567 = vpop.f32.mrb[0].mxu0
      %2568 = vmatprep.mubr.f32.mxu0 0.0
      %2569 = vmatmul.mubr.f32.gmra.mrb[0].mxu0 %v2256
      %v2570 = vpop.f32.mrb[0].mxu0
      %v2571 = vadd.f32 %v2172, %v2570
      %v2572 = vpop.f32.mrb[0].mxu0
      %2573 = vmatprep.mubr.f32.mxu0 0.0
      %2574 = vmatmul.mubr.f32.gmra.mrb[0].mxu0 %v2259
      %v2575 = vpop.f32.mrb[0].mxu0
      %v2576 = vadd.f32 %v2172, %v2575
      %v2577 = vpop.f32.mrb[0].mxu0
      %2578 = vmatprep.mubr.f32.mxu0 0.0
      %2579 = vmatmul.mubr.f32.gmra.mrb[0].mxu0 %v2262
      %v2580 = vpop.f32.mrb[0].mxu0
      %v2581 = vadd.f32 %v2172, %v2580
      %v2582 = vpop.f32.mrb[0].mxu0
      %2583 = vmatprep.mubr.f32.mxu0 0.0
      %2584 = vmatmul.mubr.f32.gmra.mrb[0].mxu0 %v2265
      %v2585 = vpop.f32.mrb[0].mxu0
      %v2586 = vadd.f32 %v2172, %v2585
      %v2587 = vpop.f32.mrb[0].mxu0
      %2588 = vmatprep.mubr.f32.mxu0 0.0
      %2589 = vmatmul.mubr.f32.gmra.mrb[0].mxu0 %v2268
      %v2590 = vpop.f32.mrb[0].mxu0
      %v2591 = vadd.f32 %v2172, %v2590
      %v2592 = vpop.f32.mrb[0].mxu0
      %2593 = vmatprep.mubr.f32.mxu0 0.0
      %2594 = vmatmul.mubr.f32.gmra.mrb[0].mxu0 %v2271
      %v2595 = vpop.f32.mrb[0].mxu0
      %v2596 = vadd.f32 %v2172, %v2595
      %v2597 = vpop.f32.mrb[0].mxu0
      %2598 = vmatprep.mubr.f32.mxu0 0.0
      %2599 = vmatmul.mubr.f32.gmra.mrb[0].mxu0 %v2274
      %v2600 = vpop.f32.mrb[0].mxu0
      %v2601 = vadd.f32 %v2172, %v2600
      %v2602 = vpop.f32.mrb[0].mxu0
      %2603 = vmatprep.mubr.f32.mxu0 0.0
      %2604 = vmatmul.mubr.f32.gmra.mrb[0].mxu0 %v2277
      %v2605 = vpop.f32.mrb[0].mxu0
      %v2606 = vadd.f32 %v2172, %v2605
      %v2607 = vpop.f32.mrb[0].mxu0
      %2608 = vmatprep.mubr.f32.mxu0 0.0
      %2609 = vmatmul.mubr.f32.gmra.mrb[0].mxu0 %v2280
      %v2610 = vpop.f32.mrb[0].mxu0
      %v2611 = vadd.f32 %v2172, %v2610
      %v2612 = vpop.f32.mrb[0].mxu0
      %2613 = vmatprep.mubr.f32.mxu0 0.0
      %2614 = vmatmul.mubr.f32.gmra.mrb[0].mxu0 %v2283
      %v2615 = vpop.f32.mrb[0].mxu0
      %v2616 = vadd.f32 %v2172, %v2615
      %v2617 = vpop.f32.mrb[0].mxu0
      %2618 = vmatprep.mubr.f32.mxu0 0.0
      %2619 = vmatmul.mubr.f32.gmra.mrb[0].mxu0 %v2286
      %v2620 = vpop.f32.mrb[0].mxu0
      %v2621 = vadd.f32 %v2172, %v2620
      %v2622 = vpop.f32.mrb[0].mxu0
      %2623 = vmatprep.mubr.f32.mxu0 0.0
      %2624 = vmatmul.mubr.f32.gmra.mrb[0].mxu0 %v2289
      %v2625 = vpop.f32.mrb[0].mxu0
      %v2626 = vadd.f32 %v2172, %v2625
      %v2627 = vpop.f32.mrb[0].mxu0
      %2628 = vmatprep.mubr.f32.mxu0 0.0
      %2629 = vmatmul.mubr.f32.gmra.mrb[0].mxu0 %v2292
      %v2630 = vpop.f32.mrb[0].mxu0
      %v2631 = vadd.f32 %v2172, %v2630
      %v2632 = vpop.f32.mrb[0].mxu0
      %2633 = vmatprep.mubr.f32.mxu0 0.0
      %2634 = vmatmul.mubr.f32.gmra.mrb[0].mxu0 %v2295
      %v2635 = vpop.f32.mrb[0].mxu0
      %v2636 = vadd.f32 %v2172, %v2635
      %v2637 = vpop.f32.mrb[0].mxu0
      %2638 = vmatprep.mubr.f32.mxu0 0.0
      %2639 = vmatmul.mubr.f32.gmra.mrb[0].mxu0 %v2298
      %v2640 = vpop.f32.mrb[0].mxu0
      %v2641 = vadd.f32 %v2172, %v2640
      %v2642 = vpop.f32.mrb[0].mxu0
      %2643 = vmatprep.mubr.f32.mxu0 0.0
      %2644 = vmatmul.mubr.f32.gmra.mrb[0].mxu0 %v2301
      %v2645 = vpop.f32.mrb[0].mxu0
      %v2646 = vadd.f32 %v2172, %v2645
      %v2647 = vpop.f32.mrb[0].mxu0
      %2648 = vmatprep.mubr.f32.mxu0 0.0
      %2649 = vmatmul.mubr.f32.gmra.mrb[0].mxu0 %v2304
      %v2650 = vpop.f32.mrb[0].mxu0
      %v2651 = vadd.f32 %v2172, %v2650
      %v2652 = vpop.f32.mrb[0].mxu0
      %2653 = vmatprep.mubr.f32.mxu0 0.0
      %2654 = vmatmul.mubr.f32.gmra.mrb[0].mxu0 %v2307
      %v2655 = vpop.f32.mrb[0].mxu0
      %v2656 = vadd.f32 %v2172, %v2655
      %v2657 = vpop.f32.mrb[0].mxu0
      %2658 = vmatprep.mubr.f32.mxu0 0.0
      %2659 = vmatmul.mubr.f32.gmra.mrb[0].mxu0 %v2310
      %v2660 = vpop.f32.mrb[0].mxu0
      %v2661 = vadd.f32 %v2172, %v2660
      %v2662 = vpop.f32.mrb[0].mxu0
      %2663 = vmatprep.mubr.f32.mxu0 0.0
      %2664 = vmatmul.mubr.f32.gmra.mrb[0].mxu0 %v2313
      %v2665 = vpop.f32.mrb[0].mxu0
      %v2666 = vadd.f32 %v2172, %v2665
      %v2667 = vpop.f32.mrb[0].mxu0
      %2668 = vmatprep.mubr.f32.mxu0 0.0
      %2669 = vmatmul.mubr.f32.gmra.mrb[0].mxu0 %v2316
      %v2670 = vpop.f32.mrb[0].mxu0
      %v2671 = vadd.f32 %v2172, %v2670
      %v2672 = vpop.f32.mrb[0].mxu0
      %2673 = vmatprep.mubr.f32.mxu0 0.0
      %2674 = vmatmul.mubr.f32.gmra.mrb[0].mxu0 %v2319
      %v2675 = vpop.f32.mrb[0].mxu0
      %v2676 = vadd.f32 %v2172, %v2675
      %v2677 = vpop.f32.mrb[0].mxu0
      %2678 = vmatprep.mubr.f32.mxu0 0.0
      %2679 = vmatmul.mubr.f32.gmra.mrb[0].mxu0 %v2322
      %v2680 = vpop.f32.mrb[0].mxu0
      %v2681 = vadd.f32 %v2172, %v2680
      %v2682 = vpop.f32.mrb[0].mxu0
      %2683 = vmatprep.mubr.f32.mxu0 0.0
      %2684 = vmatmul.mubr.f32.gmra.mrb[0].mxu0 %v2325
      %v2685 = vpop.f32.mrb[0].mxu0
      %v2686 = vadd.f32 %v2172, %v2685
      %v2687 = vpop.f32.mrb[0].mxu0
      %2688 = vmatprep.mubr.f32.mxu0 0.0
      %2689 = vmatmul.mubr.f32.gmra.mrb[0].mxu0 %v2328
      %v2690 = vpop.f32.mrb[0].mxu0
      %v2691 = vadd.f32 %v2172, %v2690
      %v2692 = vpop.f32.mrb[0].mxu0
      %2693 = vmatprep.mubr.f32.mxu0 0.0
      %2694 = vmatmul.mubr.f32.gmra.mrb[0].mxu0 %v2331
      %v2695 = vpop.f32.mrb[0].mxu0
      %v2696 = vadd.f32 %v2172, %v2695
      %v2697 = vpop.f32.mrb[0].mxu0
      %2698 = vmatprep.mubr.f32.mxu0 0.0
      %2699 = vmatmul.mubr.f32.gmra.mrb[0].mxu0 %v2334
      %v2700 = vpop.f32.mrb[0].mxu0
      %v2701 = vadd.f32 %v2172, %v2700
      %v2702 = vpop.f32.mrb[0].mxu0
      %2703 = vmatprep.mubr.f32.mxu0 0.0
      %2704 = vmatmul.mubr.f32.gmra.mrb[0].mxu0 %v2337
      %v2705 = vpop.f32.mrb[0].mxu0
      %v2706 = vadd.f32 %v2172, %v2705
      %v2707 = vpop.f32.mrb[0].mxu0
      %2708 = vmatprep.mubr.f32.mxu0 0.0
      %2709 = vmatmul.mubr.f32.gmra.mrb[0].mxu0 %v2340
      %v2710 = vpop.f32.mrb[0].mxu0
      %v2711 = vadd.f32 %v2172, %v2710
      %v2712 = vpop.f32.mrb[0].mxu0
      %2713 = vmatprep.mubr.f32.mxu0 0.0
      %2714 = vmatmul.mubr.f32.gmra.mrb[0].mxu0 %v2343
      %v2715 = vpop.f32.mrb[0].mxu0
      %v2716 = vadd.f32 %v2172, %v2715
      %v2717 = vpop.f32.mrb[0].mxu0
      %2718 = vmatprep.mubr.f32.mxu0 0.0
      %2719 = vmatmul.mubr.f32.gmra.mrb[0].mxu0 %v2346
      %v2720 = vpop.f32.mrb[0].mxu0
      %v2721 = vadd.f32 %v2172, %v2720
      %v2722 = vpop.f32.mrb[0].mxu0
      %2723 = vmatprep.mubr.f32.mxu0 0.0
      %2724 = vmatmul.mubr.f32.gmra.mrb[0].mxu0 %v2349
      %v2725 = vpop.f32.mrb[0].mxu0
      %v2726 = vadd.f32 %v2172, %v2725
      %v2727 = vpop.f32.mrb[0].mxu0
      %2728 = vmatprep.mubr.f32.mxu0 0.0
      %2729 = vmatmul.mubr.f32.gmra.mrb[0].mxu0 %v2352
      %v2730 = vpop.f32.mrb[0].mxu0
      %v2731 = vadd.f32 %v2172, %v2730
      %v2732 = vpop.f32.mrb[0].mxu0
      %2733 = vmatprep.mubr.f32.mxu0 0.0
      %2734 = vmatmul.mubr.f32.gmra.mrb[0].mxu0 %v2355
      %v2735 = vpop.f32.mrb[0].mxu0
      %v2736 = vadd.f32 %v2172, %v2735
      %v2737 = vpop.f32.mrb[0].mxu0
      %2738 = vmatprep.mubr.f32.mxu0 0.0
      %2739 = vmatmul.mubr.f32.gmra.mrb[0].mxu0 %v2358
      %v2740 = vpop.f32.mrb[0].mxu0
      %v2741 = vadd.f32 %v2172, %v2740
      %v2742 = vpop.f32.mrb[0].mxu0
      %2743 = vmatprep.mubr.f32.mxu0 0.0
      %2744 = vmatmul.mubr.f32.gmra.mrb[0].mxu0 %v2361
      %v2745 = vpop.f32.mrb[0].mxu0
      %v2746 = vadd.f32 %v2172, %v2745
      %v2747 = vpop.f32.mrb[0].mxu0
      %2748 = vmatprep.mubr.f32.mxu0 0.0
      %2749 = vmatmul.mubr.f32.gmra.mrb[0].mxu0 %v2364
      %v2750 = vpop.f32.mrb[0].mxu0
      %v2751 = vadd.f32 %v2172, %v2750
      %v2752 = vpop.f32.mrb[0].mxu0
      %2753 = vdwg.mxu0
      %vm2754 = vcmask 23552
      %v2755 = vsel %vm2754, %v2436, -inf
      %2756 = vmax.xlane.f32.xlu0 %v2755
      %v2757 = vpop.xlane.xlu0 %2756
      %v2758 = vsel %vm2754, %v2441, -inf
      %2759 = vmax.xlane.f32.xlu0 %v2758
      %v2760 = vpop.xlane.xlu0 %2759
      %v2761 = vsel %vm2754, %v2446, -inf
      %2762 = vmax.xlane.f32.xlu0 %v2761
      %v2763 = vpop.xlane.xlu0 %2762
      %v2764 = vsel %vm2754, %v2451, -inf
      %2765 = vmax.xlane.f32.xlu0 %v2764
      %v2766 = vpop.xlane.xlu0 %2765
      %v2767 = vsel %vm2754, %v2456, -inf
      %2768 = vmax.xlane.f32.xlu0 %v2767
      %v2769 = vpop.xlane.xlu0 %2768
      %v2770 = vsel %vm2754, %v2461, -inf
      %2771 = vmax.xlane.f32.xlu0 %v2770
      %v2772 = vpop.xlane.xlu0 %2771
      %v2773 = vsel %vm2754, %v2466, -inf
      %2774 = vmax.xlane.f32.xlu0 %v2773
      %v2775 = vpop.xlane.xlu0 %2774
      %v2776 = vsel %vm2754, %v2471, -inf
      %2777 = vmax.xlane.f32.xlu0 %v2776
      %v2778 = vpop.xlane.xlu0 %2777
      %v2779 = vsel %vm2754, %v2476, -inf
      %2780 = vmax.xlane.f32.xlu0 %v2779
      %v2781 = vpop.xlane.xlu0 %2780
      %v2782 = vsel %vm2754, %v2481, -inf
      %2783 = vmax.xlane.f32.xlu0 %v2782
      %v2784 = vpop.xlane.xlu0 %2783
      %v2785 = vsel %vm2754, %v2486, -inf
      %2786 = vmax.xlane.f32.xlu0 %v2785
      %v2787 = vpop.xlane.xlu0 %2786
      %v2788 = vsel %vm2754, %v2491, -inf
      %2789 = vmax.xlane.f32.xlu0 %v2788
      %v2790 = vpop.xlane.xlu0 %2789
      %v2791 = vsel %vm2754, %v2496, -inf
      %2792 = vmax.xlane.f32.xlu0 %v2791
      %v2793 = vpop.xlane.xlu0 %2792
      %v2794 = vsel %vm2754, %v2501, -inf
      %2795 = vmax.xlane.f32.xlu0 %v2794
      %v2796 = vpop.xlane.xlu0 %2795
      %v2797 = vsel %vm2754, %v2506, -inf
      %2798 = vmax.xlane.f32.xlu0 %v2797
      %v2799 = vpop.xlane.xlu0 %2798
      %v2800 = vsel %vm2754, %v2511, -inf
      %2801 = vmax.xlane.f32.xlu0 %v2800
      %v2802 = vpop.xlane.xlu0 %2801
      %v2803 = vsel %vm2754, %v2516, -inf
      %2804 = vmax.xlane.f32.xlu0 %v2803
      %v2805 = vpop.xlane.xlu0 %2804
      %v2806 = vsel %vm2754, %v2521, -inf
      %2807 = vmax.xlane.f32.xlu0 %v2806
      %v2808 = vpop.xlane.xlu0 %2807
      %v2809 = vsel %vm2754, %v2526, -inf
      %2810 = vmax.xlane.f32.xlu0 %v2809
      %v2811 = vpop.xlane.xlu0 %2810
      %v2812 = vsel %vm2754, %v2531, -inf
      %2813 = vmax.xlane.f32.xlu0 %v2812
      %v2814 = vpop.xlane.xlu0 %2813
      %v2815 = vsel %vm2754, %v2536, -inf
      %2816 = vmax.xlane.f32.xlu0 %v2815
      %v2817 = vpop.xlane.xlu0 %2816
      %v2818 = vsel %vm2754, %v2541, -inf
      %2819 = vmax.xlane.f32.xlu0 %v2818
      %v2820 = vpop.xlane.xlu0 %2819
      %v2821 = vsel %vm2754, %v2546, -inf
      %2822 = vmax.xlane.f32.xlu0 %v2821
      %v2823 = vpop.xlane.xlu0 %2822
      %v2824 = vsel %vm2754, %v2551, -inf
      %2825 = vmax.xlane.f32.xlu0 %v2824
      %v2826 = vpop.xlane.xlu0 %2825
      %v2827 = vsel %vm2754, %v2556, -inf
      %2828 = vmax.xlane.f32.xlu0 %v2827
      %v2829 = vpop.xlane.xlu0 %2828
      %v2830 = vsel %vm2754, %v2561, -inf
      %2831 = vmax.xlane.f32.xlu0 %v2830
      %v2832 = vpop.xlane.xlu0 %2831
      %v2833 = vsel %vm2754, %v2566, -inf
      %2834 = vmax.xlane.f32.xlu0 %v2833
      %v2835 = vpop.xlane.xlu0 %2834
      %v2836 = vsel %vm2754, %v2571, -inf
      %2837 = vmax.xlane.f32.xlu0 %v2836
      %v2838 = vpop.xlane.xlu0 %2837
      %v2839 = vsel %vm2754, %v2576, -inf
      %2840 = vmax.xlane.f32.xlu0 %v2839
      %v2841 = vpop.xlane.xlu0 %2840
      %v2842 = vsel %vm2754, %v2581, -inf
      %2843 = vmax.xlane.f32.xlu0 %v2842
      %v2844 = vpop.xlane.xlu0 %2843
      %v2845 = vsel %vm2754, %v2586, -inf
      %2846 = vmax.xlane.f32.xlu0 %v2845
      %v2847 = vpop.xlane.xlu0 %2846
      %v2848 = vsel %vm2754, %v2591, -inf
      %2849 = vmax.xlane.f32.xlu0 %v2848
      %v2850 = vpop.xlane.xlu0 %2849
      %v2851 = vsel %vm2754, %v2596, -inf
      %2852 = vmax.xlane.f32.xlu0 %v2851
      %v2853 = vpop.xlane.xlu0 %2852
      %v2854 = vsel %vm2754, %v2601, -inf
      %2855 = vmax.xlane.f32.xlu0 %v2854
      %v2856 = vpop.xlane.xlu0 %2855
      %v2857 = vsel %vm2754, %v2606, -inf
      %2858 = vmax.xlane.f32.xlu0 %v2857
      %v2859 = vpop.xlane.xlu0 %2858
      %v2860 = vsel %vm2754, %v2611, -inf
      %2861 = vmax.xlane.f32.xlu0 %v2860
      %v2862 = vpop.xlane.xlu0 %2861
      %v2863 = vsel %vm2754, %v2616, -inf
      %2864 = vmax.xlane.f32.xlu0 %v2863
      %v2865 = vpop.xlane.xlu0 %2864
      %v2866 = vsel %vm2754, %v2621, -inf
      %2867 = vmax.xlane.f32.xlu0 %v2866
      %v2868 = vpop.xlane.xlu0 %2867
      %v2869 = vsel %vm2754, %v2626, -inf
      %2870 = vmax.xlane.f32.xlu0 %v2869
      %v2871 = vpop.xlane.xlu0 %2870
      %v2872 = vsel %vm2754, %v2631, -inf
      %2873 = vmax.xlane.f32.xlu0 %v2872
      %v2874 = vpop.xlane.xlu0 %2873
      %v2875 = vsel %vm2754, %v2636, -inf
      %2876 = vmax.xlane.f32.xlu0 %v2875
      %v2877 = vpop.xlane.xlu0 %2876
      %v2878 = vsel %vm2754, %v2641, -inf
      %2879 = vmax.xlane.f32.xlu0 %v2878
      %v2880 = vpop.xlane.xlu0 %2879
      %v2881 = vsel %vm2754, %v2646, -inf
      %2882 = vmax.xlane.f32.xlu0 %v2881
      %v2883 = vpop.xlane.xlu0 %2882
      %v2884 = vsel %vm2754, %v2651, -inf
      %2885 = vmax.xlane.f32.xlu0 %v2884
      %v2886 = vpop.xlane.xlu0 %2885
      %v2887 = vsel %vm2754, %v2656, -inf
      %2888 = vmax.xlane.f32.xlu0 %v2887
      %v2889 = vpop.xlane.xlu0 %2888
      %v2890 = vsel %vm2754, %v2661, -inf
      %2891 = vmax.xlane.f32.xlu0 %v2890
      %v2892 = vpop.xlane.xlu0 %2891
      %v2893 = vsel %vm2754, %v2666, -inf
      %2894 = vmax.xlane.f32.xlu0 %v2893
      %v2895 = vpop.xlane.xlu0 %2894
      %v2896 = vsel %vm2754, %v2671, -inf
      %2897 = vmax.xlane.f32.xlu0 %v2896
      %v2898 = vpop.xlane.xlu0 %2897
      %v2899 = vsel %vm2754, %v2676, -inf
      %2900 = vmax.xlane.f32.xlu0 %v2899
      %v2901 = vpop.xlane.xlu0 %2900
      %v2902 = vsel %vm2754, %v2681, -inf
      %2903 = vmax.xlane.f32.xlu0 %v2902
      %v2904 = vpop.xlane.xlu0 %2903
      %v2905 = vsel %vm2754, %v2686, -inf
      %2906 = vmax.xlane.f32.xlu0 %v2905
      %v2907 = vpop.xlane.xlu0 %2906
      %v2908 = vsel %vm2754, %v2691, -inf
      %2909 = vmax.xlane.f32.xlu0 %v2908
      %v2910 = vpop.xlane.xlu0 %2909
      %v2911 = vsel %vm2754, %v2696, -inf
      %2912 = vmax.xlane.f32.xlu0 %v2911
      %v2913 = vpop.xlane.xlu0 %2912
      %v2914 = vsel %vm2754, %v2701, -inf
      %2915 = vmax.xlane.f32.xlu0 %v2914
      %v2916 = vpop.xlane.xlu0 %2915
      %v2917 = vsel %vm2754, %v2706, -inf
      %2918 = vmax.xlane.f32.xlu0 %v2917
      %v2919 = vpop.xlane.xlu0 %2918
      %v2920 = vsel %vm2754, %v2711, -inf
      %2921 = vmax.xlane.f32.xlu0 %v2920
      %v2922 = vpop.xlane.xlu0 %2921
      %v2923 = vsel %vm2754, %v2716, -inf
      %2924 = vmax.xlane.f32.xlu0 %v2923
      %v2925 = vpop.xlane.xlu0 %2924
      %v2926 = vsel %vm2754, %v2721, -inf
      %2927 = vmax.xlane.f32.xlu0 %v2926
      %v2928 = vpop.xlane.xlu0 %2927
      %v2929 = vsel %vm2754, %v2726, -inf
      %2930 = vmax.xlane.f32.xlu0 %v2929
      %v2931 = vpop.xlane.xlu0 %2930
      %v2932 = vsel %vm2754, %v2731, -inf
      %2933 = vmax.xlane.f32.xlu0 %v2932
      %v2934 = vpop.xlane.xlu0 %2933
      %v2935 = vsel %vm2754, %v2736, -inf
      %2936 = vmax.xlane.f32.xlu0 %v2935
      %v2937 = vpop.xlane.xlu0 %2936
      %v2938 = vsel %vm2754, %v2741, -inf
      %2939 = vmax.xlane.f32.xlu0 %v2938
      %v2940 = vpop.xlane.xlu0 %2939
      %v2941 = vsel %vm2754, %v2746, -inf
      %2942 = vmax.xlane.f32.xlu0 %v2941
      %v2943 = vpop.xlane.xlu0 %2942
      %v2944 = vsel %vm2754, %v2751, -inf
      %2945 = vmax.xlane.f32.xlu0 %v2944
      %v2946 = vpop.xlane.xlu0 %2945
      %v2947 = vsub.f32 %v2436, %v2757
      %v2948 = vsub.f32 %v2441, %v2760
      %v2949 = vsub.f32 %v2446, %v2763
      %v2950 = vsub.f32 %v2451, %v2766
      %v2951 = vsub.f32 %v2456, %v2769
      %v2952 = vsub.f32 %v2461, %v2772
      %v2953 = vsub.f32 %v2466, %v2775
      %v2954 = vsub.f32 %v2471, %v2778
      %v2955 = vsub.f32 %v2476, %v2781
      %v2956 = vsub.f32 %v2481, %v2784
      %v2957 = vsub.f32 %v2486, %v2787
      %v2958 = vsub.f32 %v2491, %v2790
      %v2959 = vsub.f32 %v2496, %v2793
      %v2960 = vsub.f32 %v2501, %v2796
      %v2961 = vsub.f32 %v2506, %v2799
      %v2962 = vsub.f32 %v2511, %v2802
      %v2963 = vsub.f32 %v2516, %v2805
      %v2964 = vsub.f32 %v2521, %v2808
      %v2965 = vsub.f32 %v2526, %v2811
      %v2966 = vsub.f32 %v2531, %v2814
      %v2967 = vsub.f32 %v2536, %v2817
      %v2968 = vsub.f32 %v2541, %v2820
      %v2969 = vsub.f32 %v2546, %v2823
      %v2970 = vsub.f32 %v2551, %v2826
      %v2971 = vsub.f32 %v2556, %v2829
      %v2972 = vsub.f32 %v2561, %v2832
      %v2973 = vsub.f32 %v2566, %v2835
      %v2974 = vsub.f32 %v2571, %v2838
      %v2975 = vsub.f32 %v2576, %v2841
      %v2976 = vsub.f32 %v2581, %v2844
      %v2977 = vsub.f32 %v2586, %v2847
      %v2978 = vsub.f32 %v2591, %v2850
      %v2979 = vsub.f32 %v2596, %v2853
      %v2980 = vsub.f32 %v2601, %v2856
      %v2981 = vsub.f32 %v2606, %v2859
      %v2982 = vsub.f32 %v2611, %v2862
      %v2983 = vsub.f32 %v2616, %v2865
      %v2984 = vsub.f32 %v2621, %v2868
      %v2985 = vsub.f32 %v2626, %v2871
      %v2986 = vsub.f32 %v2631, %v2874
      %v2987 = vsub.f32 %v2636, %v2877
      %v2988 = vsub.f32 %v2641, %v2880
      %v2989 = vsub.f32 %v2646, %v2883
      %v2990 = vsub.f32 %v2651, %v2886
      %v2991 = vsub.f32 %v2656, %v2889
      %v2992 = vsub.f32 %v2661, %v2892
      %v2993 = vsub.f32 %v2666, %v2895
      %v2994 = vsub.f32 %v2671, %v2898
      %v2995 = vsub.f32 %v2676, %v2901
      %v2996 = vsub.f32 %v2681, %v2904
      %v2997 = vsub.f32 %v2686, %v2907
      %v2998 = vsub.f32 %v2691, %v2910
      %v2999 = vsub.f32 %v2696, %v2913
      %v3000 = vsub.f32 %v2701, %v2916
      %v3001 = vsub.f32 %v2706, %v2919
      %v3002 = vsub.f32 %v2711, %v2922
      %v3003 = vsub.f32 %v2716, %v2925
      %v3004 = vsub.f32 %v2721, %v2928
      %v3005 = vsub.f32 %v2726, %v2931
      %v3006 = vsub.f32 %v2731, %v2934
      %v3007 = vsub.f32 %v2736, %v2937
      %v3008 = vsub.f32 %v2741, %v2940
      %v3009 = vsub.f32 %v2746, %v2943
      %v3010 = vsub.f32 %v2751, %v2946
      %v3011 = vmul.f32 %v2947, 1.442695
      %v3012 = vpow.pop %v3011
      %v3013 = vmul.f32 %v2948, 1.442695
      %v3014 = vpow.pop %v3013
      %v3015 = vmul.f32 %v2949, 1.442695
      %v3016 = vpow.pop %v3015
      %v3017 = vmul.f32 %v2950, 1.442695
      %v3018 = vpow.pop %v3017
      %v3019 = vmul.f32 %v2951, 1.442695
      %v3020 = vpow.pop %v3019
      %v3021 = vmul.f32 %v2952, 1.442695
      %v3022 = vpow.pop %v3021
      %v3023 = vmul.f32 %v2953, 1.442695
      %v3024 = vpow.pop %v3023
      %v3025 = vmul.f32 %v2954, 1.442695
      %v3026 = vpow.pop %v3025
      %v3027 = vmul.f32 %v2955, 1.442695
      %v3028 = vpow.pop %v3027
      %v3029 = vmul.f32 %v2956, 1.442695
      %v3030 = vpow.pop %v3029
      %v3031 = vmul.f32 %v2957, 1.442695
      %v3032 = vpow.pop %v3031
      %v3033 = vmul.f32 %v2958, 1.442695
      %v3034 = vpow.pop %v3033
      %v3035 = vmul.f32 %v2959, 1.442695
      %v3036 = vpow.pop %v3035
      %v3037 = vmul.f32 %v2960, 1.442695
      %v3038 = vpow.pop %v3037
      %v3039 = vmul.f32 %v2961, 1.442695
      %v3040 = vpow.pop %v3039
      %v3041 = vmul.f32 %v2962, 1.442695
      %v3042 = vpow.pop %v3041
      %v3043 = vmul.f32 %v2963, 1.442695
      %v3044 = vpow.pop %v3043
      %v3045 = vmul.f32 %v2964, 1.442695
      %v3046 = vpow.pop %v3045
      %v3047 = vmul.f32 %v2965, 1.442695
      %v3048 = vpow.pop %v3047
      %v3049 = vmul.f32 %v2966, 1.442695
      %v3050 = vpow.pop %v3049
      %v3051 = vmul.f32 %v2967, 1.442695
      %v3052 = vpow.pop %v3051
      %v3053 = vmul.f32 %v2968, 1.442695
      %v3054 = vpow.pop %v3053
      %v3055 = vmul.f32 %v2969, 1.442695
      %v3056 = vpow.pop %v3055
      %v3057 = vmul.f32 %v2970, 1.442695
      %v3058 = vpow.pop %v3057
      %v3059 = vmul.f32 %v2971, 1.442695
      %v3060 = vpow.pop %v3059
      %v3061 = vmul.f32 %v2972, 1.442695
      %v3062 = vpow.pop %v3061
      %v3063 = vmul.f32 %v2973, 1.442695
      %v3064 = vpow.pop %v3063
      %v3065 = vmul.f32 %v2974, 1.442695
      %v3066 = vpow.pop %v3065
      %v3067 = vmul.f32 %v2975, 1.442695
      %v3068 = vpow.pop %v3067
      %v3069 = vmul.f32 %v2976, 1.442695
      %v3070 = vpow.pop %v3069
      %v3071 = vmul.f32 %v2977, 1.442695
      %v3072 = vpow.pop %v3071
      %v3073 = vmul.f32 %v2978, 1.442695
      %v3074 = vpow.pop %v3073
      %v3075 = vmul.f32 %v2979, 1.442695
      %v3076 = vpow.pop %v3075
      %v3077 = vmul.f32 %v2980, 1.442695
      %v3078 = vpow.pop %v3077
      %v3079 = vmul.f32 %v2981, 1.442695
      %v3080 = vpow.pop %v3079
      %v3081 = vmul.f32 %v2982, 1.442695
      %v3082 = vpow.pop %v3081
      %v3083 = vmul.f32 %v2983, 1.442695
      %v3084 = vpow.pop %v3083
      %v3085 = vmul.f32 %v2984, 1.442695
      %v3086 = vpow.pop %v3085
      %v3087 = vmul.f32 %v2985, 1.442695
      %v3088 = vpow.pop %v3087
      %v3089 = vmul.f32 %v2986, 1.442695
      %v3090 = vpow.pop %v3089
      %v3091 = vmul.f32 %v2987, 1.442695
      %v3092 = vpow.pop %v3091
      %v3093 = vmul.f32 %v2988, 1.442695
      %v3094 = vpow.pop %v3093
      %v3095 = vmul.f32 %v2989, 1.442695
      %v3096 = vpow.pop %v3095
      %v3097 = vmul.f32 %v2990, 1.442695
      %v3098 = vpow.pop %v3097
      %v3099 = vmul.f32 %v2991, 1.442695
      %v3100 = vpow.pop %v3099
      %v3101 = vmul.f32 %v2992, 1.442695
      %v3102 = vpow.pop %v3101
      %v3103 = vmul.f32 %v2993, 1.442695
      %v3104 = vpow.pop %v3103
      %v3105 = vmul.f32 %v2994, 1.442695
      %v3106 = vpow.pop %v3105
      %v3107 = vmul.f32 %v2995, 1.442695
      %v3108 = vpow.pop %v3107
      %v3109 = vmul.f32 %v2996, 1.442695
      %v3110 = vpow.pop %v3109
      %v3111 = vmul.f32 %v2997, 1.442695
      %v3112 = vpow.pop %v3111
      %v3113 = vmul.f32 %v2998, 1.442695
      %v3114 = vpow.pop %v3113
      %v3115 = vmul.f32 %v2999, 1.442695
      %v3116 = vpow.pop %v3115
      %v3117 = vmul.f32 %v3000, 1.442695
      %v3118 = vpow.pop %v3117
      %v3119 = vmul.f32 %v3001, 1.442695
      %v3120 = vpow.pop %v3119
      %v3121 = vmul.f32 %v3002, 1.442695
      %v3122 = vpow.pop %v3121
      %v3123 = vmul.f32 %v3003, 1.442695
      %v3124 = vpow.pop %v3123
      %v3125 = vmul.f32 %v3004, 1.442695
      %v3126 = vpow.pop %v3125
      %v3127 = vmul.f32 %v3005, 1.442695
      %v3128 = vpow.pop %v3127
      %v3129 = vmul.f32 %v3006, 1.442695
      %v3130 = vpow.pop %v3129
      %v3131 = vmul.f32 %v3007, 1.442695
      %v3132 = vpow.pop %v3131
      %v3133 = vmul.f32 %v3008, 1.442695
      %v3134 = vpow.pop %v3133
      %v3135 = vmul.f32 %v3009, 1.442695
      %v3136 = vpow.pop %v3135
      %v3137 = vmul.f32 %v3010, 1.442695
      %v3138 = vpow.pop %v3137
      %v3139 = vsel %vm2754, %v3012, 0.0
      %3140 = vadd.xlane.f32.xlu0 %v3139
      %v3141 = vpop.xlane.xlu0 %3140
      %v3142 = vsel %vm2754, %v3014, 0.0
      %3143 = vadd.xlane.f32.xlu0 %v3142
      %v3144 = vpop.xlane.xlu0 %3143
      %v3145 = vsel %vm2754, %v3016, 0.0
      %3146 = vadd.xlane.f32.xlu0 %v3145
      %v3147 = vpop.xlane.xlu0 %3146
      %v3148 = vsel %vm2754, %v3018, 0.0
      %3149 = vadd.xlane.f32.xlu0 %v3148
      %v3150 = vpop.xlane.xlu0 %3149
      %v3151 = vsel %vm2754, %v3020, 0.0
      %3152 = vadd.xlane.f32.xlu0 %v3151
      %v3153 = vpop.xlane.xlu0 %3152
      %v3154 = vsel %vm2754, %v3022, 0.0
      %3155 = vadd.xlane.f32.xlu0 %v3154
      %v3156 = vpop.xlane.xlu0 %3155
      %v3157 = vsel %vm2754, %v3024, 0.0
      %3158 = vadd.xlane.f32.xlu0 %v3157
      %v3159 = vpop.xlane.xlu0 %3158
      %v3160 = vsel %vm2754, %v3026, 0.0
      %3161 = vadd.xlane.f32.xlu0 %v3160
      %v3162 = vpop.xlane.xlu0 %3161
      %v3163 = vsel %vm2754, %v3028, 0.0
      %3164 = vadd.xlane.f32.xlu0 %v3163
      %v3165 = vpop.xlane.xlu0 %3164
      %v3166 = vsel %vm2754, %v3030, 0.0
      %3167 = vadd.xlane.f32.xlu0 %v3166
      %v3168 = vpop.xlane.xlu0 %3167
      %v3169 = vsel %vm2754, %v3032, 0.0
      %3170 = vadd.xlane.f32.xlu0 %v3169
      %v3171 = vpop.xlane.xlu0 %3170
      %v3172 = vsel %vm2754, %v3034, 0.0
      %3173 = vadd.xlane.f32.xlu0 %v3172
      %v3174 = vpop.xlane.xlu0 %3173
      %v3175 = vsel %vm2754, %v3036, 0.0
      %3176 = vadd.xlane.f32.xlu0 %v3175
      %v3177 = vpop.xlane.xlu0 %3176
      %v3178 = vsel %vm2754, %v3038, 0.0
      %3179 = vadd.xlane.f32.xlu0 %v3178
      %v3180 = vpop.xlane.xlu0 %3179
      %v3181 = vsel %vm2754, %v3040, 0.0
      %3182 = vadd.xlane.f32.xlu0 %v3181
      %v3183 = vpop.xlane.xlu0 %3182
      %v3184 = vsel %vm2754, %v3042, 0.0
      %3185 = vadd.xlane.f32.xlu0 %v3184
      %v3186 = vpop.xlane.xlu0 %3185
      %v3187 = vsel %vm2754, %v3044, 0.0
      %3188 = vadd.xlane.f32.xlu0 %v3187
      %v3189 = vpop.xlane.xlu0 %3188
      %v3190 = vsel %vm2754, %v3046, 0.0
      %3191 = vadd.xlane.f32.xlu0 %v3190
      %v3192 = vpop.xlane.xlu0 %3191
      %v3193 = vsel %vm2754, %v3048, 0.0
      %3194 = vadd.xlane.f32.xlu0 %v3193
      %v3195 = vpop.xlane.xlu0 %3194
      %v3196 = vsel %vm2754, %v3050, 0.0
      %3197 = vadd.xlane.f32.xlu0 %v3196
      %v3198 = vpop.xlane.xlu0 %3197
      %v3199 = vsel %vm2754, %v3052, 0.0
      %3200 = vadd.xlane.f32.xlu0 %v3199
      %v3201 = vpop.xlane.xlu0 %3200
      %v3202 = vsel %vm2754, %v3054, 0.0
      %3203 = vadd.xlane.f32.xlu0 %v3202
      %v3204 = vpop.xlane.xlu0 %3203
      %v3205 = vsel %vm2754, %v3056, 0.0
      %3206 = vadd.xlane.f32.xlu0 %v3205
      %v3207 = vpop.xlane.xlu0 %3206
      %v3208 = vsel %vm2754, %v3058, 0.0
      %3209 = vadd.xlane.f32.xlu0 %v3208
      %v3210 = vpop.xlane.xlu0 %3209
      %v3211 = vsel %vm2754, %v3060, 0.0
      %3212 = vadd.xlane.f32.xlu0 %v3211
      %v3213 = vpop.xlane.xlu0 %3212
      %v3214 = vsel %vm2754, %v3062, 0.0
      %3215 = vadd.xlane.f32.xlu0 %v3214
      %v3216 = vpop.xlane.xlu0 %3215
      %v3217 = vsel %vm2754, %v3064, 0.0
      %3218 = vadd.xlane.f32.xlu0 %v3217
      %v3219 = vpop.xlane.xlu0 %3218
      %v3220 = vsel %vm2754, %v3066, 0.0
      %3221 = vadd.xlane.f32.xlu0 %v3220
      %v3222 = vpop.xlane.xlu0 %3221
      %v3223 = vsel %vm2754, %v3068, 0.0
      %3224 = vadd.xlane.f32.xlu0 %v3223
      %v3225 = vpop.xlane.xlu0 %3224
      %v3226 = vsel %vm2754, %v3070, 0.0
      %3227 = vadd.xlane.f32.xlu0 %v3226
      %v3228 = vpop.xlane.xlu0 %3227
      %v3229 = vsel %vm2754, %v3072, 0.0
      %3230 = vadd.xlane.f32.xlu0 %v3229
      %v3231 = vpop.xlane.xlu0 %3230
      %v3232 = vsel %vm2754, %v3074, 0.0
      %3233 = vadd.xlane.f32.xlu0 %v3232
      %v3234 = vpop.xlane.xlu0 %3233
      %v3235 = vsel %vm2754, %v3076, 0.0
      %3236 = vadd.xlane.f32.xlu0 %v3235
      %v3237 = vpop.xlane.xlu0 %3236
      %v3238 = vsel %vm2754, %v3078, 0.0
      %3239 = vadd.xlane.f32.xlu0 %v3238
      %v3240 = vpop.xlane.xlu0 %3239
      %v3241 = vsel %vm2754, %v3080, 0.0
      %3242 = vadd.xlane.f32.xlu0 %v3241
      %v3243 = vpop.xlane.xlu0 %3242
      %v3244 = vsel %vm2754, %v3082, 0.0
      %3245 = vadd.xlane.f32.xlu0 %v3244
      %v3246 = vpop.xlane.xlu0 %3245
      %v3247 = vsel %vm2754, %v3084, 0.0
      %3248 = vadd.xlane.f32.xlu0 %v3247
      %v3249 = vpop.xlane.xlu0 %3248
      %v3250 = vsel %vm2754, %v3086, 0.0
      %3251 = vadd.xlane.f32.xlu0 %v3250
      %v3252 = vpop.xlane.xlu0 %3251
      %v3253 = vsel %vm2754, %v3088, 0.0
      %3254 = vadd.xlane.f32.xlu0 %v3253
      %v3255 = vpop.xlane.xlu0 %3254
      %v3256 = vsel %vm2754, %v3090, 0.0
      %3257 = vadd.xlane.f32.xlu0 %v3256
      %v3258 = vpop.xlane.xlu0 %3257
      %v3259 = vsel %vm2754, %v3092, 0.0
      %3260 = vadd.xlane.f32.xlu0 %v3259
      %v3261 = vpop.xlane.xlu0 %3260
      %v3262 = vsel %vm2754, %v3094, 0.0
      %3263 = vadd.xlane.f32.xlu0 %v3262
      %v3264 = vpop.xlane.xlu0 %3263
      %v3265 = vsel %vm2754, %v3096, 0.0
      %3266 = vadd.xlane.f32.xlu0 %v3265
      %v3267 = vpop.xlane.xlu0 %3266
      %v3268 = vsel %vm2754, %v3098, 0.0
      %3269 = vadd.xlane.f32.xlu0 %v3268
      %v3270 = vpop.xlane.xlu0 %3269
      %v3271 = vsel %vm2754, %v3100, 0.0
      %3272 = vadd.xlane.f32.xlu0 %v3271
      %v3273 = vpop.xlane.xlu0 %3272
      %v3274 = vsel %vm2754, %v3102, 0.0
      %3275 = vadd.xlane.f32.xlu0 %v3274
      %v3276 = vpop.xlane.xlu0 %3275
      %v3277 = vsel %vm2754, %v3104, 0.0
      %3278 = vadd.xlane.f32.xlu0 %v3277
      %v3279 = vpop.xlane.xlu0 %3278
      %v3280 = vsel %vm2754, %v3106, 0.0
      %3281 = vadd.xlane.f32.xlu0 %v3280
      %v3282 = vpop.xlane.xlu0 %3281
      %v3283 = vsel %vm2754, %v3108, 0.0
      %3284 = vadd.xlane.f32.xlu0 %v3283
      %v3285 = vpop.xlane.xlu0 %3284
      %v3286 = vsel %vm2754, %v3110, 0.0
      %3287 = vadd.xlane.f32.xlu0 %v3286
      %v3288 = vpop.xlane.xlu0 %3287
      %v3289 = vsel %vm2754, %v3112, 0.0
      %3290 = vadd.xlane.f32.xlu0 %v3289
      %v3291 = vpop.xlane.xlu0 %3290
      %v3292 = vsel %vm2754, %v3114, 0.0
      %3293 = vadd.xlane.f32.xlu0 %v3292
      %v3294 = vpop.xlane.xlu0 %3293
      %v3295 = vsel %vm2754, %v3116, 0.0
      %3296 = vadd.xlane.f32.xlu0 %v3295
      %v3297 = vpop.xlane.xlu0 %3296
      %v3298 = vsel %vm2754, %v3118, 0.0
      %3299 = vadd.xlane.f32.xlu0 %v3298
      %v3300 = vpop.xlane.xlu0 %3299
      %v3301 = vsel %vm2754, %v3120, 0.0
      %3302 = vadd.xlane.f32.xlu0 %v3301
      %v3303 = vpop.xlane.xlu0 %3302
      %v3304 = vsel %vm2754, %v3122, 0.0
      %3305 = vadd.xlane.f32.xlu0 %v3304
      %v3306 = vpop.xlane.xlu0 %3305
      %v3307 = vsel %vm2754, %v3124, 0.0
      %3308 = vadd.xlane.f32.xlu0 %v3307
      %v3309 = vpop.xlane.xlu0 %3308
      %v3310 = vsel %vm2754, %v3126, 0.0
      %3311 = vadd.xlane.f32.xlu0 %v3310
      %v3312 = vpop.xlane.xlu0 %3311
      %v3313 = vsel %vm2754, %v3128, 0.0
      %3314 = vadd.xlane.f32.xlu0 %v3313
      %v3315 = vpop.xlane.xlu0 %3314
      %v3316 = vsel %vm2754, %v3130, 0.0
      %3317 = vadd.xlane.f32.xlu0 %v3316
      %v3318 = vpop.xlane.xlu0 %3317
      %v3319 = vsel %vm2754, %v3132, 0.0
      %3320 = vadd.xlane.f32.xlu0 %v3319
      %v3321 = vpop.xlane.xlu0 %3320
      %v3322 = vsel %vm2754, %v3134, 0.0
      %3323 = vadd.xlane.f32.xlu0 %v3322
      %v3324 = vpop.xlane.xlu0 %3323
      %v3325 = vsel %vm2754, %v3136, 0.0
      %3326 = vadd.xlane.f32.xlu0 %v3325
      %v3327 = vpop.xlane.xlu0 %3326
      %v3328 = vsel %vm2754, %v3138, 0.0
      %3329 = vadd.xlane.f32.xlu0 %v3328
      %v3330 = vpop.xlane.xlu0 %3329
      %v3331 = vrcp.pop %v3141
      %v3332 = vrcp.pop %v3144
      %v3333 = vrcp.pop %v3147
      %v3334 = vrcp.pop %v3150
      %v3335 = vrcp.pop %v3153
      %v3336 = vrcp.pop %v3156
      %v3337 = vrcp.pop %v3159
      %v3338 = vrcp.pop %v3162
      %v3339 = vrcp.pop %v3165
      %v3340 = vrcp.pop %v3168
      %v3341 = vrcp.pop %v3171
      %v3342 = vrcp.pop %v3174
      %v3343 = vrcp.pop %v3177
      %v3344 = vrcp.pop %v3180
      %v3345 = vrcp.pop %v3183
      %v3346 = vrcp.pop %v3186
      %v3347 = vrcp.pop %v3189
      %v3348 = vrcp.pop %v3192
      %v3349 = vrcp.pop %v3195
      %v3350 = vrcp.pop %v3198
      %v3351 = vrcp.pop %v3201
      %v3352 = vrcp.pop %v3204
      %v3353 = vrcp.pop %v3207
      %v3354 = vrcp.pop %v3210
      %v3355 = vrcp.pop %v3213
      %v3356 = vrcp.pop %v3216
      %v3357 = vrcp.pop %v3219
      %v3358 = vrcp.pop %v3222
      %v3359 = vrcp.pop %v3225
      %v3360 = vrcp.pop %v3228
      %v3361 = vrcp.pop %v3231
      %v3362 = vrcp.pop %v3234
      %v3363 = vrcp.pop %v3237
      %v3364 = vrcp.pop %v3240
      %v3365 = vrcp.pop %v3243
      %v3366 = vrcp.pop %v3246
      %v3367 = vrcp.pop %v3249
      %v3368 = vrcp.pop %v3252
      %v3369 = vrcp.pop %v3255
      %v3370 = vrcp.pop %v3258
      %v3371 = vrcp.pop %v3261
      %v3372 = vrcp.pop %v3264
      %v3373 = vrcp.pop %v3267
      %v3374 = vrcp.pop %v3270
      %v3375 = vrcp.pop %v3273
      %v3376 = vrcp.pop %v3276
      %v3377 = vrcp.pop %v3279
      %v3378 = vrcp.pop %v3282
      %v3379 = vrcp.pop %v3285
      %v3380 = vrcp.pop %v3288
      %v3381 = vrcp.pop %v3291
      %v3382 = vrcp.pop %v3294
      %v3383 = vrcp.pop %v3297
      %v3384 = vrcp.pop %v3300
      %v3385 = vrcp.pop %v3303
      %v3386 = vrcp.pop %v3306
      %v3387 = vrcp.pop %v3309
      %v3388 = vrcp.pop %v3312
      %v3389 = vrcp.pop %v3315
      %v3390 = vrcp.pop %v3318
      %v3391 = vrcp.pop %v3321
      %v3392 = vrcp.pop %v3324
      %v3393 = vrcp.pop %v3327
      %v3394 = vrcp.pop %v3330
      %v3395 = vmul.f32 %v3012, %v3331
      %v3396 = vmul.f32 %v3014, %v3332
      %v3397 = vmul.f32 %v3016, %v3333
      %v3398 = vmul.f32 %v3018, %v3334
      %v3399 = vmul.f32 %v3020, %v3335
      %v3400 = vmul.f32 %v3022, %v3336
      %v3401 = vmul.f32 %v3024, %v3337
      %v3402 = vmul.f32 %v3026, %v3338
      %v3403 = vmul.f32 %v3028, %v3339
      %v3404 = vmul.f32 %v3030, %v3340
      %v3405 = vmul.f32 %v3032, %v3341
      %v3406 = vmul.f32 %v3034, %v3342
      %v3407 = vmul.f32 %v3036, %v3343
      %v3408 = vmul.f32 %v3038, %v3344
      %v3409 = vmul.f32 %v3040, %v3345
      %v3410 = vmul.f32 %v3042, %v3346
      %v3411 = vmul.f32 %v3044, %v3347
      %v3412 = vmul.f32 %v3046, %v3348
      %v3413 = vmul.f32 %v3048, %v3349
      %v3414 = vmul.f32 %v3050, %v3350
      %v3415 = vmul.f32 %v3052, %v3351
      %v3416 = vmul.f32 %v3054, %v3352
      %v3417 = vmul.f32 %v3056, %v3353
      %v3418 = vmul.f32 %v3058, %v3354
      %v3419 = vmul.f32 %v3060, %v3355
      %v3420 = vmul.f32 %v3062, %v3356
      %v3421 = vmul.f32 %v3064, %v3357
      %v3422 = vmul.f32 %v3066, %v3358
      %v3423 = vmul.f32 %v3068, %v3359
      %v3424 = vmul.f32 %v3070, %v3360
      %v3425 = vmul.f32 %v3072, %v3361
      %v3426 = vmul.f32 %v3074, %v3362
      %v3427 = vmul.f32 %v3076, %v3363
      %v3428 = vmul.f32 %v3078, %v3364
      %v3429 = vmul.f32 %v3080, %v3365
      %v3430 = vmul.f32 %v3082, %v3366
      %v3431 = vmul.f32 %v3084, %v3367
      %v3432 = vmul.f32 %v3086, %v3368
      %v3433 = vmul.f32 %v3088, %v3369
      %v3434 = vmul.f32 %v3090, %v3370
      %v3435 = vmul.f32 %v3092, %v3371
      %v3436 = vmul.f32 %v3094, %v3372
      %v3437 = vmul.f32 %v3096, %v3373
      %v3438 = vmul.f32 %v3098, %v3374
      %v3439 = vmul.f32 %v3100, %v3375
      %v3440 = vmul.f32 %v3102, %v3376
      %v3441 = vmul.f32 %v3104, %v3377
      %v3442 = vmul.f32 %v3106, %v3378
      %v3443 = vmul.f32 %v3108, %v3379
      %v3444 = vmul.f32 %v3110, %v3380
      %v3445 = vmul.f32 %v3112, %v3381
      %v3446 = vmul.f32 %v3114, %v3382
      %v3447 = vmul.f32 %v3116, %v3383
      %v3448 = vmul.f32 %v3118, %v3384
      %v3449 = vmul.f32 %v3120, %v3385
      %v3450 = vmul.f32 %v3122, %v3386
      %v3451 = vmul.f32 %v3124, %v3387
      %v3452 = vmul.f32 %v3126, %v3388
      %v3453 = vmul.f32 %v3128, %v3389
      %v3454 = vmul.f32 %v3130, %v3390
      %v3455 = vmul.f32 %v3132, %v3391
      %v3456 = vmul.f32 %v3134, %v3392
      %v3457 = vmul.f32 %v3136, %v3393
      %v3458 = vmul.f32 %v3138, %v3394
      %3459 = vst.msk [vmem:[%s280] sm:$0xff] %vm2754, %v3395
      %3460 = vst.msk [vmem:[%s280 + $0x8] sm:$0xff] %vm2754, %v3396
      %3461 = vst.msk [vmem:[%s280 + $0x10] sm:$0xff] %vm2754, %v3397
      %3462 = vst.msk [vmem:[%s280 + $0x18] sm:$0xff] %vm2754, %v3398
      %3463 = vst.msk [vmem:[%s280 + $0x20] sm:$0xff] %vm2754, %v3399
      %3464 = vst.msk [vmem:[%s280 + $0x28] sm:$0xff] %vm2754, %v3400
      %3465 = vst.msk [vmem:[%s280 + $0x30] sm:$0xff] %vm2754, %v3401
      %3466 = vst.msk [vmem:[%s280 + $0x38] sm:$0xff] %vm2754, %v3402
      %3467 = vst.msk [vmem:[%s280 + $0x40] sm:$0xff] %vm2754, %v3403
      %3468 = vst.msk [vmem:[%s280 + $0x48] sm:$0xff] %vm2754, %v3404
      %3469 = vst.msk [vmem:[%s280 + $0x50] sm:$0xff] %vm2754, %v3405
      %3470 = vst.msk [vmem:[%s280 + $0x58] sm:$0xff] %vm2754, %v3406
      %3471 = vst.msk [vmem:[%s280 + $0x60] sm:$0xff] %vm2754, %v3407
      %3472 = vst.msk [vmem:[%s280 + $0x68] sm:$0xff] %vm2754, %v3408
      %3473 = vst.msk [vmem:[%s280 + $0x70] sm:$0xff] %vm2754, %v3409
      %3474 = vst.msk [vmem:[%s280 + $0x78] sm:$0xff] %vm2754, %v3410
      %3475 = vst.msk [vmem:[%s280 + $0x80] sm:$0xff] %vm2754, %v3411
      %3476 = vst.msk [vmem:[%s280 + $0x88] sm:$0xff] %vm2754, %v3412
      %3477 = vst.msk [vmem:[%s280 + $0x90] sm:$0xff] %vm2754, %v3413
      %3478 = vst.msk [vmem:[%s280 + $0x98] sm:$0xff] %vm2754, %v3414
      %3479 = vst.msk [vmem:[%s280 + $0xa0] sm:$0xff] %vm2754, %v3415
      %3480 = vst.msk [vmem:[%s280 + $0xa8] sm:$0xff] %vm2754, %v3416
      %3481 = vst.msk [vmem:[%s280 + $0xb0] sm:$0xff] %vm2754, %v3417
      %3482 = vst.msk [vmem:[%s280 + $0xb8] sm:$0xff] %vm2754, %v3418
      %3483 = vst.msk [vmem:[%s280 + $0xc0] sm:$0xff] %vm2754, %v3419
      %3484 = vst.msk [vmem:[%s280 + $0xc8] sm:$0xff] %vm2754, %v3420
      %3485 = vst.msk [vmem:[%s280 + $0xd0] sm:$0xff] %vm2754, %v3421
      %3486 = vst.msk [vmem:[%s280 + $0xd8] sm:$0xff] %vm2754, %v3422
      %3487 = vst.msk [vmem:[%s280 + $0xe0] sm:$0xff] %vm2754, %v3423
      %3488 = vst.msk [vmem:[%s280 + $0xe8] sm:$0xff] %vm2754, %v3424
      %3489 = vst.msk [vmem:[%s280 + $0xf0] sm:$0xff] %vm2754, %v3425
      %3490 = vst.msk [vmem:[%s280 + $0xf8] sm:$0xff] %vm2754, %v3426
      %3491 = vst.msk [vmem:[%s280 + $0x100] sm:$0xff] %vm2754, %v3427
      %3492 = vst.msk [vmem:[%s280 + $0x108] sm:$0xff] %vm2754, %v3428
      %3493 = vst.msk [vmem:[%s280 + $0x110] sm:$0xff] %vm2754, %v3429
      %3494 = vst.msk [vmem:[%s280 + $0x118] sm:$0xff] %vm2754, %v3430
      %3495 = vst.msk [vmem:[%s280 + $0x120] sm:$0xff] %vm2754, %v3431
      %3496 = vst.msk [vmem:[%s280 + $0x128] sm:$0xff] %vm2754, %v3432
      %3497 = vst.msk [vmem:[%s280 + $0x130] sm:$0xff] %vm2754, %v3433
      %3498 = vst.msk [vmem:[%s280 + $0x138] sm:$0xff] %vm2754, %v3434
      %3499 = vst.msk [vmem:[%s280 + $0x140] sm:$0xff] %vm2754, %v3435
      %3500 = vst.msk [vmem:[%s280 + $0x148] sm:$0xff] %vm2754, %v3436
      %3501 = vst.msk [vmem:[%s280 + $0x150] sm:$0xff] %vm2754, %v3437
      %3502 = vst.msk [vmem:[%s280 + $0x158] sm:$0xff] %vm2754, %v3438
      %3503 = vst.msk [vmem:[%s280 + $0x160] sm:$0xff] %vm2754, %v3439
      %3504 = vst.msk [vmem:[%s280 + $0x168] sm:$0xff] %vm2754, %v3440
      %3505 = vst.msk [vmem:[%s280 + $0x170] sm:$0xff] %vm2754, %v3441
      %3506 = vst.msk [vmem:[%s280 + $0x178] sm:$0xff] %vm2754, %v3442
      %3507 = vst.msk [vmem:[%s280 + $0x180] sm:$0xff] %vm2754, %v3443
      %3508 = vst.msk [vmem:[%s280 + $0x188] sm:$0xff] %vm2754, %v3444
      %3509 = vst.msk [vmem:[%s280 + $0x190] sm:$0xff] %vm2754, %v3445
      %3510 = vst.msk [vmem:[%s280 + $0x198] sm:$0xff] %vm2754, %v3446
      %3511 = vst.msk [vmem:[%s280 + $0x1a0] sm:$0xff] %vm2754, %v3447
      %3512 = vst.msk [vmem:[%s280 + $0x1a8] sm:$0xff] %vm2754, %v3448
      %3513 = vst.msk [vmem:[%s280 + $0x1b0] sm:$0xff] %vm2754, %v3449
      %3514 = vst.msk [vmem:[%s280 + $0x1b8] sm:$0xff] %vm2754, %v3450
      %3515 = vst.msk [vmem:[%s280 + $0x1c0] sm:$0xff] %vm2754, %v3451
      %3516 = vst.msk [vmem:[%s280 + $0x1c8] sm:$0xff] %vm2754, %v3452
      %3517 = vst.msk [vmem:[%s280 + $0x1d0] sm:$0xff] %vm2754, %v3453
      %3518 = vst.msk [vmem:[%s280 + $0x1d8] sm:$0xff] %vm2754, %v3454
      %3519 = vst.msk [vmem:[%s280 + $0x1e0] sm:$0xff] %vm2754, %v3455
      %3520 = vst.msk [vmem:[%s280 + $0x1e8] sm:$0xff] %vm2754, %v3456
      %3521 = vst.msk [vmem:[%s280 + $0x1f0] sm:$0xff] %vm2754, %v3457
      %3522 = vst.msk [vmem:[%s280 + $0x1f8] sm:$0xff] %vm2754, %v3458
      %s3523 = smul.u32 64, %s18
      %p3524 = scmp.lt.s32.totalorder %s3523, 127
      %s3525 = scalar_select %p3524, %s3523, 127
      %s3526 = smul.addr %s3525, 8
      %s3527 = scalar_lea.vmem %s7, %s3526
      // Predicated region
      $region49: #{tpu_custom_call.1} parent=47 // pred_check
        %p3528 = pneg %p188
      $region50: #{tpu_custom_call.1} parent=47 // pred_check_branch
        %3530 = sbr.rel (%p3528) target = $region52
      $region51: #{tpu_custom_call.1} parent=47 // pred_region
        %s3531 = smul.u32 64, %s18
      $region52: #{tpu_custom_call.1} parent=47 // pred_fallthru
        _
    $region48: #{tpu_custom_call.1} parent=5 // pred_fallthru
      _
    %p3532 = scmp.le.s32.totalorder 2, %s13
    // Predicated region
    $region53: #{tpu_custom_call.1} parent=5 // pred_check
      %p3533 = pneg %p3532
    $region54: #{tpu_custom_call.1} parent=5 // pred_check_branch
      %3535 = sbr.rel (%p3533) target = $region56
    $region55: #{tpu_custom_call.1} parent=5 // pred_region
      %s3536 = ssub.s32 %s13, 2
      // Predicated region
      $region57: #{tpu_custom_call.1} parent=55 // pred_check
        %p3537 = pneg %p194
      $region58: #{tpu_custom_call.1} parent=55 // pred_check_branch
        %3539 = sbr.rel (%p3537) target = $region60
      $region59: #{tpu_custom_call.1} parent=55 // pred_region
        %s3540 = smul.u32 64, %s19
        %p3541 = scmp.lt.s32.totalorder %s3540, 127
        %s3542 = scalar_select %p3541, %s3540, 127
        %s3543 = smul.addr %s3542, 8
        %s3544 = scalar_lea.vmem %s7, %s3543
      $region60: #{tpu_custom_call.1} parent=55 // pred_fallthru
        _
    $region56: #{tpu_custom_call.1} parent=5 // pred_fallthru
      _
  $region6: #{tpu_custom_call.1} parent=0 // loop_footer
    %s17 = sadd.s32 1, %s13
  $region7: #{tpu_custom_call.1} parent=0 // loop_footer_branch
    %12 = sbr.rel target = $region3
  $region8: #{tpu_custom_call.1} parent=0 // loop_exit
    _

</llo_original>
